<compile_context>
chip_gen: v6e
topology: v6e:2x2x1
jax: 0.10.0
libtpu: 0.0.40
codegen_flags: <defaults>
</compile_context>

<pallas_src>
import jax
import jax.numpy as jnp
from jax.experimental import pallas as pl
from jax.experimental.pallas import tpu as pltpu

# ----------------------- small synthetic configuration -----------------------
B, T, C = 2, 8, 32          # batch, sequence length, args.encoder_embed_dim
N = T * B                   # flattened token rows (row index = t*B + b)
HEADS = 4
HEAD_DIM = C // HEADS
FFN = 64                    # encoder_ffn_embed_dim
LATENT = 16                 # args.latent_dim (default 200; small synthetic)
LN_EPS = 1e-5
NEG_INF = -1e30
OUT_W = 128                 # lane-dense packed output width
assert 3 * LATENT + C <= OUT_W


def _layer_norm(v, g, b):
    mu = jnp.mean(v, axis=-1, keepdims=True)
    var = jnp.mean((v - mu) ** 2, axis=-1, keepdims=True)
    return (v - mu) * jax.lax.rsqrt(var + LN_EPS) * g + b


# --------------------------- the single fused kernel --------------------------
def vae_posterior_kernel(x2_ref, y2_ref, px_ref, py_ref, bias_ref, eps_ref,
                         wq_ref, bq_ref, wk_ref, bk_ref, wv_ref, bv_ref,
                         wo_ref, bo_ref, ln1g_ref, ln1b_ref,
                         w1_ref, b1_ref, w2_ref, b2_ref, ln2g_ref, ln2b_ref,
                         wmx_ref, wmy_ref, bm_ref,
                         wlvx_ref, wlvy_ref, blv_ref,
                         wout_ref, bout_ref,
                         out_ref):
    y2 = y2_ref[...]                    # (N, C) y token rows, original order
    bias = bias_ref[...]                # (N, N) additive attention bias (hoisted)

    # ---- SelfATTEncoder: one fairseq-style post-norm layer --------------------
    # QKV projections on the whole batch slab (one matmul each).
    q = jnp.dot(y2, wq_ref[...], preferred_element_type=jnp.float32) + bq_ref[...]
    k = jnp.dot(y2, wk_ref[...], preferred_element_type=jnp.float32) + bk_ref[...]
    v = jnp.dot(y2, wv_ref[...], preferred_element_type=jnp.float32) + bv_ref[...]
    q = q * (HEAD_DIM ** -0.5)
    wo = wo_ref[...]                    # (C, C)

    # Per-head contractions (heads cannot share one dense contraction over C);
    # batch is folded into each head's (N, N) score matmul and the cross-batch
    # entries are removed by the additive bias.  Head outputs are folded through
    # the matching rows of the output projection and accumulated (no concat).
    attn = jnp.zeros((N, C), jnp.float32)
    for h in range(HEADS):              # static unroll, HEADS = 4
        lo, hi = h * HEAD_DIM, (h + 1) * HEAD_DIM
        s = jnp.dot(q[:, lo:hi], k[:, lo:hi].T,
                    preferred_element_type=jnp.float32)          # (N, N)
        s = s + bias                    # key padding + cross-batch masking
        s = s - jnp.max(s, axis=-1, keepdims=True)
        p = jnp.exp(s)
        p = p * pl.reciprocal(jnp.sum(p, axis=-1, keepdims=True), approx=True)
        # TODO(synk): a fully padded key row would give uniform attention over
        # padding here where the PyTorch reference produces NaN.
        hd = jnp.dot(p, v[:, lo:hi], preferred_element_type=jnp.float32)   # (N, Dh)
        attn = attn + jnp.dot(hd, wo[lo:hi, :], preferred_element_type=jnp.float32)
    attn = attn + bo_ref[...]

    x1 = _layer_norm(y2 + attn, ln1g_ref[...], ln1b_ref[...])

    ff = jnp.maximum(
        jnp.dot(x1, w1_ref[...], preferred_element_type=jnp.float32) + b1_ref[...],
        0.0)
    ff = jnp.dot(ff, w2_ref[...], preferred_element_type=jnp.float32) + b2_ref[...]
    y_enc = _layer_norm(x1 + ff, ln2g_ref[...], ln2b_ref[...])   # (N, C)

    # ---- masked mean pooling (as matmuls with normalized pooling matrices) ----
    h_f = jnp.dot(px_ref[...], x2_ref[...], preferred_element_type=jnp.float32)  # (B, C)
    h_e = jnp.dot(py_ref[...], y_enc, preferred_element_type=jnp.float32)        # (B, C)

    # ---- GaussianVariable: cat([h_f, h_e]) @ W == h_f @ W[:C] + h_e @ W[C:] ---
    mean = (jnp.dot(h_f, wmx_ref[...], preferred_element_type=jnp.float32)
            + jnp.dot(h_e, wmy_ref[...], preferred_element_type=jnp.float32)
            + bm_ref[...])
    logv = (jnp.dot(h_f, wlvx_ref[...], preferred_element_type=jnp.float32)
            + jnp.dot(h_e, wlvy_ref[...], preferred_element_type=jnp.float32)
            + blv_ref[...])
    z = mean + eps_ref[...] * jnp.exp(0.5 * logv)                 # reparameterize
    rec = jnp.dot(z, wout_ref[...], preferred_element_type=jnp.float32) + bout_ref[...]

    # lane-dense packed output: [mean | logv | z | rec | zero pad] -> (B, 128)
    parts = [mean, logv, z, rec]
    pad_w = OUT_W - (3 * LATENT + C)
    if pad_w:
        parts.append(jnp.zeros((B, pad_w), jnp.float32))
    out_ref[...] = jnp.concatenate(parts, axis=-1)


# ------------------------------ JAX wrapper -----------------------------------
def vae_posterior_forward(enc_p, lat_p, x_embed, y_embed, x_mask, y_mask, eps):
    """x_embed/y_embed: (T, B, C) float; x_mask/y_mask: (B, T) bool, True == valid."""
    # Free row-major reshapes (no transpose, no extra HBM pass): row = t*B + b.
    x2 = x_embed.astype(jnp.float32).reshape(N, C)
    y2 = y_embed.astype(jnp.float32).reshape(N, C)

    xmf = x_mask.astype(jnp.float32)          # (B, T)
    ymf = y_mask.astype(jnp.float32)

    def pooling_matrix(mask_bt):
        # P[b, t*B + b'] = mask[b, t] / cnt_b if b' == b else 0
        # clamp avoids NaN for all-padding rows (reference NaNs); no-op otherwise.
        cnt = jnp.maximum(mask_bt.sum(axis=1, keepdims=True), 1.0)
        w = mask_bt / cnt                                             # (B, T)
        p = w[:, :, None] * jnp.eye(B, dtype=jnp.float32)[:, None, :]  # (B, T, B)
        return p.reshape(B, N)

    px = pooling_matrix(xmf)                  # (B, N)
    py = pooling_matrix(ymf)

    # Additive attention bias over flattened token rows: NEG_INF where the key
    # is a padded y position or belongs to a different batch element.
    key_valid = ymf.T.reshape(N)              # valid[t*B + b] = y_mask[b, t]
    b_of = jnp.arange(N, dtype=jnp.int32) % B
    same_batch = (b_of[:, None] == b_of[None, :]).astype(jnp.float32)
    attn_bias = (1.0 - same_batch * key_valid[None, :]) * NEG_INF      # (N, N)

    def full(shape):
        n = len(shape)
        return pl.BlockSpec(shape, lambda i, _n=n: (0,) * _n)

    in_specs = [
        full((N, C)), full((N, C)),                     # x2, y2
        full((B, N)), full((B, N)),                     # px, py
        full((N, N)),                                   # attention bias
        full((B, LATENT)),                              # eps
        full((C, C)), full((1, C)),                     # wq, bq
        full((C, C)), full((1, C)),                     # wk, bk
        full((C, C)), full((1, C)),                     # wv, bv
        full((C, C)), full((1, C)),                     # wo, bo
        full((1, C)), full((1, C)),                     # ln1 gamma, beta
        full((C, FFN)), full((1, FFN)),                 # ffn w1, b1
        full((FFN, C)), full((1, C)),                   # ffn w2, b2
        full((1, C)), full((1, C)),                     # ln2 gamma, beta
        full((C, LATENT)), full((C, LATENT)), full((1, LATENT)),   # mean head
        full((C, LATENT)), full((C, LATENT)), full((1, LATENT)),   # logv head
        full((LATENT, C)), full((1, C)),                            # output proj
    ]

    packed = pl.pallas_call(
        vae_posterior_kernel,
        out_shape=jax.ShapeDtypeStruct((B, OUT_W), jnp.float32),
        grid=(1,),                                      # single fused step
        in_specs=in_specs,
        out_specs=full((B, OUT_W)),
        # single grid step -> no megacore parallel axis needed (working set is
        # tiny; acceptable per review even on v7x's 2 TensorCores).
        compiler_params=pltpu.CompilerParams(dimension_semantics=("arbitrary",)),
    )(x2, y2, px, py, attn_bias, eps,
      enc_p["wq"], enc_p["bq"], enc_p["wk"], enc_p["bk"],
      enc_p["wv"], enc_p["bv"], enc_p["wo"], enc_p["bo"],
      enc_p["ln1g"], enc_p["ln1b"],
      enc_p["w1"], enc_p["b1"], enc_p["w2"], enc_p["b2"],
      enc_p["ln2g"], enc_p["ln2b"],
      lat_p["wm"][:C], lat_p["wm"][C:], lat_p["bm"],
      lat_p["wlv"][:C], lat_p["wlv"][C:], lat_p["blv"],
      lat_p["wout"], lat_p["bout"])

    return {"mean": packed[:, :LATENT],
            "logv": packed[:, LATENT:2 * LATENT],
            "z":    packed[:, 2 * LATENT:3 * LATENT],
            "rec":  packed[:, 3 * LATENT:3 * LATENT + C]}


# --------------------------- deterministic params ----------------------------
def init_params(key):
    ks = jax.random.split(key, 12)

    def dense(k, shape, scale=0.05):
        return (scale * jax.random.normal(k, shape)).astype(jnp.float32)

    enc = dict(
        wq=dense(ks[0], (C, C)), bq=jnp.zeros((1, C), jnp.float32),
        wk=dense(ks[1], (C, C)), bk=jnp.zeros((1, C), jnp.float32),
        wv=dense(ks[2], (C, C)), bv=jnp.zeros((1, C), jnp.float32),
        wo=dense(ks[3], (C, C)), bo=jnp.zeros((1, C), jnp.float32),
        ln1g=jnp.ones((1, C), jnp.float32), ln1b=jnp.zeros((1, C), jnp.float32),
        w1=dense(ks[4], (C, FFN)), b1=jnp.zeros((1, FFN), jnp.float32),
        w2=dense(ks[5], (FFN, C)), b2=jnp.zeros((1, C), jnp.float32),
        ln2g=jnp.ones((1, C), jnp.float32), ln2b=jnp.zeros((1, C), jnp.float32),
    )
    lat = dict(
        wm=dense(ks[6], (2 * C, LATENT)), bm=jnp.zeros((1, LATENT), jnp.float32),
        wlv=dense(ks[7], (2 * C, LATENT)), blv=jnp.zeros((1, LATENT), jnp.float32),
        wout=dense(ks[8], (LATENT, C)), bout=jnp.zeros((1, C), jnp.float32),
    )
    return enc, lat


if __name__ == "__main__":
    key = jax.random.PRNGKey(0)
    k_x, k_y, k_eps, k_p = jax.random.split(key, 4)

    x_embed = jax.random.normal(k_x, (T, B, C), jnp.float32)
    y_embed = jax.random.normal(k_y, (T, B, C), jnp.float32)

    ar = jnp.arange(T)
    x_mask = ar[None, :] < jnp.array([8, 5])[:, None]   # (B, T) bool, True = valid
    y_mask = ar[None, :] < jnp.array([6, 8])[:, None]

    eps = jax.random.normal(k_eps, (B, LATENT), jnp.float32)  # reparam noise

    enc_p, lat_p = init_params(k_p)
    out = vae_posterior_forward(enc_p, lat_p, x_embed, y_embed, x_mask, y_mask, eps)
    out = jax.tree_util.tree_map(jax.block_until_ready, out)

    assert out["mean"].shape == (B, LATENT)
    assert out["logv"].shape == (B, LATENT)
    assert out["z"].shape == (B, LATENT)
    assert out["rec"].shape == (B, C)
    print("KERNEL_OK")
</pallas_src>

<mosaic_0001>
module attributes {stable_mosaic.version = 11 : i64} {
  func.func @vae_posterior_kernel(%arg0: i32, %arg1: memref<16x32xf32, #tpu.memory_space<vmem>>, %arg2: memref<16x32xf32, #tpu.memory_space<vmem>>, %arg3: memref<2x16xf32, #tpu.memory_space<vmem>>, %arg4: memref<2x16xf32, #tpu.memory_space<vmem>>, %arg5: memref<16x16xf32, #tpu.memory_space<vmem>>, %arg6: memref<2x16xf32, #tpu.memory_space<vmem>>, %arg7: memref<32x32xf32, #tpu.memory_space<vmem>>, %arg8: memref<1x32xf32, #tpu.memory_space<vmem>>, %arg9: memref<32x32xf32, #tpu.memory_space<vmem>>, %arg10: memref<1x32xf32, #tpu.memory_space<vmem>>, %arg11: memref<32x32xf32, #tpu.memory_space<vmem>>, %arg12: memref<1x32xf32, #tpu.memory_space<vmem>>, %arg13: memref<32x32xf32, #tpu.memory_space<vmem>>, %arg14: memref<1x32xf32, #tpu.memory_space<vmem>>, %arg15: memref<1x32xf32, #tpu.memory_space<vmem>>, %arg16: memref<1x32xf32, #tpu.memory_space<vmem>>, %arg17: memref<32x64xf32, #tpu.memory_space<vmem>>, %arg18: memref<1x64xf32, #tpu.memory_space<vmem>>, %arg19: memref<64x32xf32, #tpu.memory_space<vmem>>, %arg20: memref<1x32xf32, #tpu.memory_space<vmem>>, %arg21: memref<1x32xf32, #tpu.memory_space<vmem>>, %arg22: memref<1x32xf32, #tpu.memory_space<vmem>>, %arg23: memref<32x16xf32, #tpu.memory_space<vmem>>, %arg24: memref<32x16xf32, #tpu.memory_space<vmem>>, %arg25: memref<1x16xf32, #tpu.memory_space<vmem>>, %arg26: memref<32x16xf32, #tpu.memory_space<vmem>>, %arg27: memref<32x16xf32, #tpu.memory_space<vmem>>, %arg28: memref<1x16xf32, #tpu.memory_space<vmem>>, %arg29: memref<16x32xf32, #tpu.memory_space<vmem>>, %arg30: memref<1x32xf32, #tpu.memory_space<vmem>>, %arg31: memref<2x128xf32, #tpu.memory_space<vmem>>) attributes {dimension_semantics = [#tpu.dimension_semantics<arbitrary>], iteration_bounds = array<i64: 1>, scalar_prefetch = 0 : i64, scratch_operands = 0 : i64, tpu.core_type = #tpu.core_type<tc>, window_params = [{pipeline_mode = #tpu.pipeline_mode<synchronous>, transform_indices = @transform_0, window_bounds = array<i64: 16, 32>}, {pipeline_mode = #tpu.pipeline_mode<synchronous>, transform_indices = @transform_1, window_bounds = array<i64: 16, 32>}, {pipeline_mode = #tpu.pipeline_mode<synchronous>, transform_indices = @transform_2, window_bounds = array<i64: 2, 16>}, {pipeline_mode = #tpu.pipeline_mode<synchronous>, transform_indices = @transform_3, window_bounds = array<i64: 2, 16>}, {pipeline_mode = #tpu.pipeline_mode<synchronous>, transform_indices = @transform_4, window_bounds = array<i64: 16, 16>}, {pipeline_mode = #tpu.pipeline_mode<synchronous>, transform_indices = @transform_5, window_bounds = array<i64: 2, 16>}, {pipeline_mode = #tpu.pipeline_mode<synchronous>, transform_indices = @transform_6, window_bounds = array<i64: 32, 32>}, {pipeline_mode = #tpu.pipeline_mode<synchronous>, transform_indices = @transform_7, window_bounds = array<i64: 1, 32>}, {pipeline_mode = #tpu.pipeline_mode<synchronous>, transform_indices = @transform_8, window_bounds = array<i64: 32, 32>}, {pipeline_mode = #tpu.pipeline_mode<synchronous>, transform_indices = @transform_9, window_bounds = array<i64: 1, 32>}, {pipeline_mode = #tpu.pipeline_mode<synchronous>, transform_indices = @transform_10, window_bounds = array<i64: 32, 32>}, {pipeline_mode = #tpu.pipeline_mode<synchronous>, transform_indices = @transform_11, window_bounds = array<i64: 1, 32>}, {pipeline_mode = #tpu.pipeline_mode<synchronous>, transform_indices = @transform_12, window_bounds = array<i64: 32, 32>}, {pipeline_mode = #tpu.pipeline_mode<synchronous>, transform_indices = @transform_13, window_bounds = array<i64: 1, 32>}, {pipeline_mode = #tpu.pipeline_mode<synchronous>, transform_indices = @transform_14, window_bounds = array<i64: 1, 32>}, {pipeline_mode = #tpu.pipeline_mode<synchronous>, transform_indices = @transform_15, window_bounds = array<i64: 1, 32>}, {pipeline_mode = #tpu.pipeline_mode<synchronous>, transform_indices = @transform_16, window_bounds = array<i64: 32, 64>}, {pipeline_mode = #tpu.pipeline_mode<synchronous>, transform_indices = @transform_17, window_bounds = array<i64: 1, 64>}, {pipeline_mode = #tpu.pipeline_mode<synchronous>, transform_indices = @transform_18, window_bounds = array<i64: 64, 32>}, {pipeline_mode = #tpu.pipeline_mode<synchronous>, transform_indices = @transform_19, window_bounds = array<i64: 1, 32>}, {pipeline_mode = #tpu.pipeline_mode<synchronous>, transform_indices = @transform_20, window_bounds = array<i64: 1, 32>}, {pipeline_mode = #tpu.pipeline_mode<synchronous>, transform_indices = @transform_21, window_bounds = array<i64: 1, 32>}, {pipeline_mode = #tpu.pipeline_mode<synchronous>, transform_indices = @transform_22, window_bounds = array<i64: 32, 16>}, {pipeline_mode = #tpu.pipeline_mode<synchronous>, transform_indices = @transform_23, window_bounds = array<i64: 32, 16>}, {pipeline_mode = #tpu.pipeline_mode<synchronous>, transform_indices = @transform_24, window_bounds = array<i64: 1, 16>}, {pipeline_mode = #tpu.pipeline_mode<synchronous>, transform_indices = @transform_25, window_bounds = array<i64: 32, 16>}, {pipeline_mode = #tpu.pipeline_mode<synchronous>, transform_indices = @transform_26, window_bounds = array<i64: 32, 16>}, {pipeline_mode = #tpu.pipeline_mode<synchronous>, transform_indices = @transform_27, window_bounds = array<i64: 1, 16>}, {pipeline_mode = #tpu.pipeline_mode<synchronous>, transform_indices = @transform_28, window_bounds = array<i64: 16, 32>}, {pipeline_mode = #tpu.pipeline_mode<synchronous>, transform_indices = @transform_29, window_bounds = array<i64: 1, 32>}, {pipeline_mode = #tpu.pipeline_mode<synchronous>, transform_indices = @transform_30, window_bounds = array<i64: 2, 128>}]} {
    %c0 = arith.constant 0 : index
    %c0_0 = arith.constant 0 : index
    %0 = vector.load %arg2[%c0, %c0_0] : memref<16x32xf32, #tpu.memory_space<vmem>>, vector<16x32xf32>
    %c0_1 = arith.constant 0 : index
    %c0_2 = arith.constant 0 : index
    %1 = vector.load %arg5[%c0_1, %c0_2] : memref<16x16xf32, #tpu.memory_space<vmem>>, vector<16x16xf32>
    %c0_3 = arith.constant 0 : index
    %c0_4 = arith.constant 0 : index
    %2 = vector.load %arg7[%c0_3, %c0_4] : memref<32x32xf32, #tpu.memory_space<vmem>>, vector<32x32xf32>
    %cst = arith.constant dense<0.000000e+00> : vector<16x32xf32>
    %3 = tpu.matmul %0, %2, %cst {dimension_numbers = #tpu.dot_dimension_numbers<[1], [0], [0], [1], [0, 0, 1, 1], [], []>} : vector<16x32xf32>, vector<32x32xf32>, vector<16x32xf32> -> vector<16x32xf32>
    %c0_5 = arith.constant 0 : index
    %c0_6 = arith.constant 0 : index
    %4 = vector.load %arg8[%c0_5, %c0_6] : memref<1x32xf32, #tpu.memory_space<vmem>>, vector<1x32xf32>
    %5 = vector.broadcast %4 : vector<1x32xf32> to vector<16x32xf32>
    %6 = arith.addf %3, %5 : vector<16x32xf32>
    %c0_7 = arith.constant 0 : index
    %c0_8 = arith.constant 0 : index
    %7 = vector.load %arg9[%c0_7, %c0_8] : memref<32x32xf32, #tpu.memory_space<vmem>>, vector<32x32xf32>
    %cst_9 = arith.constant dense<0.000000e+00> : vector<16x32xf32>
    %8 = tpu.matmul %0, %7, %cst_9 {dimension_numbers = #tpu.dot_dimension_numbers<[1], [0], [0], [1], [0, 0, 1, 1], [], []>} : vector<16x32xf32>, vector<32x32xf32>, vector<16x32xf32> -> vector<16x32xf32>
    %c0_10 = arith.constant 0 : index
    %c0_11 = arith.constant 0 : index
    %9 = vector.load %arg10[%c0_10, %c0_11] : memref<1x32xf32, #tpu.memory_space<vmem>>, vector<1x32xf32>
    %10 = vector.broadcast %9 : vector<1x32xf32> to vector<16x32xf32>
    %11 = arith.addf %8, %10 : vector<16x32xf32>
    %c0_12 = arith.constant 0 : index
    %c0_13 = arith.constant 0 : index
    %12 = vector.load %arg11[%c0_12, %c0_13] : memref<32x32xf32, #tpu.memory_space<vmem>>, vector<32x32xf32>
    %cst_14 = arith.constant dense<0.000000e+00> : vector<16x32xf32>
    %13 = tpu.matmul %0, %12, %cst_14 {dimension_numbers = #tpu.dot_dimension_numbers<[1], [0], [0], [1], [0, 0, 1, 1], [], []>} : vector<16x32xf32>, vector<32x32xf32>, vector<16x32xf32> -> vector<16x32xf32>
    %c0_15 = arith.constant 0 : index
    %c0_16 = arith.constant 0 : index
    %14 = vector.load %arg12[%c0_15, %c0_16] : memref<1x32xf32, #tpu.memory_space<vmem>>, vector<1x32xf32>
    %15 = vector.broadcast %14 : vector<1x32xf32> to vector<16x32xf32>
    %16 = arith.addf %13, %15 : vector<16x32xf32>
    %cst_17 = arith.constant 0.353553385 : f32
    %17 = vector.broadcast %cst_17 : f32 to vector<16x32xf32>
    %18 = arith.mulf %6, %17 : vector<16x32xf32>
    %c0_18 = arith.constant 0 : index
    %c0_19 = arith.constant 0 : index
    %19 = vector.load %arg13[%c0_18, %c0_19] : memref<32x32xf32, #tpu.memory_space<vmem>>, vector<32x32xf32>
    %cst_20 = arith.constant 0.000000e+00 : f32
    %20 = vector.broadcast %cst_20 : f32 to vector<16x32xf32>
    %21 = vector.extract_strided_slice %18 {offsets = [0, 0], sizes = [16, 8], strides = [1, 1]} : vector<16x32xf32> to vector<16x8xf32>
    %22 = vector.extract_strided_slice %11 {offsets = [0, 0], sizes = [16, 8], strides = [1, 1]} : vector<16x32xf32> to vector<16x8xf32>
    %23 = tpu.transpose %22, [1, 0] : vector<16x8xf32> -> vector<8x16xf32>
    %cst_21 = arith.constant dense<0.000000e+00> : vector<16x16xf32>
    %24 = tpu.matmul %21, %23, %cst_21 {dimension_numbers = #tpu.dot_dimension_numbers<[1], [0], [0], [1], [0, 0, 1, 1], [], []>} : vector<16x8xf32>, vector<8x16xf32>, vector<16x16xf32> -> vector<16x16xf32>
    %25 = arith.addf %24, %1 : vector<16x16xf32>
    %cst_22 = arith.constant dense<0xFF800000> : vector<16xf32>
    %26 = vector.multi_reduction <maximumf>, %25, %cst_22 [1] : vector<16x16xf32> to vector<16xf32>
    %27 = vector.shape_cast %26 : vector<16xf32> to vector<16x1xf32>
    %28 = vector.broadcast %27 : vector<16x1xf32> to vector<16x16xf32>
    %29 = arith.subf %25, %28 : vector<16x16xf32>
    %30 = math.exp %29 : vector<16x16xf32>
    %cst_23 = arith.constant dense<0.000000e+00> : vector<16xf32>
    %31 = vector.multi_reduction <add>, %30, %cst_23 [1] : vector<16x16xf32> to vector<16xf32>
    %32 = vector.shape_cast %31 : vector<16xf32> to vector<16x1xf32>
    %33 = tpu.reciprocal %32 {approx = true} : vector<16x1xf32> -> vector<16x1xf32>
    %34 = vector.broadcast %33 : vector<16x1xf32> to vector<16x16xf32>
    %35 = arith.mulf %30, %34 : vector<16x16xf32>
    %36 = vector.extract_strided_slice %16 {offsets = [0, 0], sizes = [16, 8], strides = [1, 1]} : vector<16x32xf32> to vector<16x8xf32>
    %cst_24 = arith.constant dense<0.000000e+00> : vector<16x8xf32>
    %37 = tpu.matmul %35, %36, %cst_24 {dimension_numbers = #tpu.dot_dimension_numbers<[1], [0], [0], [1], [0, 0, 1, 1], [], []>} : vector<16x16xf32>, vector<16x8xf32>, vector<16x8xf32> -> vector<16x8xf32>
    %38 = vector.extract_strided_slice %19 {offsets = [0, 0], sizes = [8, 32], strides = [1, 1]} : vector<32x32xf32> to vector<8x32xf32>
    %cst_25 = arith.constant dense<0.000000e+00> : vector<16x32xf32>
    %39 = tpu.matmul %37, %38, %cst_25 {dimension_numbers = #tpu.dot_dimension_numbers<[1], [0], [0], [1], [0, 0, 1, 1], [], []>} : vector<16x8xf32>, vector<8x32xf32>, vector<16x32xf32> -> vector<16x32xf32>
    %40 = arith.addf %20, %39 : vector<16x32xf32>
    %41 = vector.extract_strided_slice %18 {offsets = [0, 8], sizes = [16, 8], strides = [1, 1]} : vector<16x32xf32> to vector<16x8xf32>
    %42 = vector.extract_strided_slice %11 {offsets = [0, 8], sizes = [16, 8], strides = [1, 1]} : vector<16x32xf32> to vector<16x8xf32>
    %43 = tpu.transpose %42, [1, 0] : vector<16x8xf32> -> vector<8x16xf32>
    %cst_26 = arith.constant dense<0.000000e+00> : vector<16x16xf32>
    %44 = tpu.matmul %41, %43, %cst_26 {dimension_numbers = #tpu.dot_dimension_numbers<[1], [0], [0], [1], [0, 0, 1, 1], [], []>} : vector<16x8xf32>, vector<8x16xf32>, vector<16x16xf32> -> vector<16x16xf32>
    %45 = arith.addf %44, %1 : vector<16x16xf32>
    %cst_27 = arith.constant dense<0xFF800000> : vector<16xf32>
    %46 = vector.multi_reduction <maximumf>, %45, %cst_27 [1] : vector<16x16xf32> to vector<16xf32>
    %47 = vector.shape_cast %46 : vector<16xf32> to vector<16x1xf32>
    %48 = vector.broadcast %47 : vector<16x1xf32> to vector<16x16xf32>
    %49 = arith.subf %45, %48 : vector<16x16xf32>
    %50 = math.exp %49 : vector<16x16xf32>
    %cst_28 = arith.constant dense<0.000000e+00> : vector<16xf32>
    %51 = vector.multi_reduction <add>, %50, %cst_28 [1] : vector<16x16xf32> to vector<16xf32>
    %52 = vector.shape_cast %51 : vector<16xf32> to vector<16x1xf32>
    %53 = tpu.reciprocal %52 {approx = true} : vector<16x1xf32> -> vector<16x1xf32>
    %54 = vector.broadcast %53 : vector<16x1xf32> to vector<16x16xf32>
    %55 = arith.mulf %50, %54 : vector<16x16xf32>
    %56 = vector.extract_strided_slice %16 {offsets = [0, 8], sizes = [16, 8], strides = [1, 1]} : vector<16x32xf32> to vector<16x8xf32>
    %cst_29 = arith.constant dense<0.000000e+00> : vector<16x8xf32>
    %57 = tpu.matmul %55, %56, %cst_29 {dimension_numbers = #tpu.dot_dimension_numbers<[1], [0], [0], [1], [0, 0, 1, 1], [], []>} : vector<16x16xf32>, vector<16x8xf32>, vector<16x8xf32> -> vector<16x8xf32>
    %58 = vector.extract_strided_slice %19 {offsets = [8, 0], sizes = [8, 32], strides = [1, 1]} : vector<32x32xf32> to vector<8x32xf32>
    %cst_30 = arith.constant dense<0.000000e+00> : vector<16x32xf32>
    %59 = tpu.matmul %57, %58, %cst_30 {dimension_numbers = #tpu.dot_dimension_numbers<[1], [0], [0], [1], [0, 0, 1, 1], [], []>} : vector<16x8xf32>, vector<8x32xf32>, vector<16x32xf32> -> vector<16x32xf32>
    %60 = arith.addf %40, %59 : vector<16x32xf32>
    %61 = vector.extract_strided_slice %18 {offsets = [0, 16], sizes = [16, 8], strides = [1, 1]} : vector<16x32xf32> to vector<16x8xf32>
    %62 = vector.extract_strided_slice %11 {offsets = [0, 16], sizes = [16, 8], strides = [1, 1]} : vector<16x32xf32> to vector<16x8xf32>
    %63 = tpu.transpose %62, [1, 0] : vector<16x8xf32> -> vector<8x16xf32>
    %cst_31 = arith.constant dense<0.000000e+00> : vector<16x16xf32>
    %64 = tpu.matmul %61, %63, %cst_31 {dimension_numbers = #tpu.dot_dimension_numbers<[1], [0], [0], [1], [0, 0, 1, 1], [], []>} : vector<16x8xf32>, vector<8x16xf32>, vector<16x16xf32> -> vector<16x16xf32>
    %65 = arith.addf %64, %1 : vector<16x16xf32>
    %cst_32 = arith.constant dense<0xFF800000> : vector<16xf32>
    %66 = vector.multi_reduction <maximumf>, %65, %cst_32 [1] : vector<16x16xf32> to vector<16xf32>
    %67 = vector.shape_cast %66 : vector<16xf32> to vector<16x1xf32>
    %68 = vector.broadcast %67 : vector<16x1xf32> to vector<16x16xf32>
    %69 = arith.subf %65, %68 : vector<16x16xf32>
    %70 = math.exp %69 : vector<16x16xf32>
    %cst_33 = arith.constant dense<0.000000e+00> : vector<16xf32>
    %71 = vector.multi_reduction <add>, %70, %cst_33 [1] : vector<16x16xf32> to vector<16xf32>
    %72 = vector.shape_cast %71 : vector<16xf32> to vector<16x1xf32>
    %73 = tpu.reciprocal %72 {approx = true} : vector<16x1xf32> -> vector<16x1xf32>
    %74 = vector.broadcast %73 : vector<16x1xf32> to vector<16x16xf32>
    %75 = arith.mulf %70, %74 : vector<16x16xf32>
    %76 = vector.extract_strided_slice %16 {offsets = [0, 16], sizes = [16, 8], strides = [1, 1]} : vector<16x32xf32> to vector<16x8xf32>
    %cst_34 = arith.constant dense<0.000000e+00> : vector<16x8xf32>
    %77 = tpu.matmul %75, %76, %cst_34 {dimension_numbers = #tpu.dot_dimension_numbers<[1], [0], [0], [1], [0, 0, 1, 1], [], []>} : vector<16x16xf32>, vector<16x8xf32>, vector<16x8xf32> -> vector<16x8xf32>
    %78 = vector.extract_strided_slice %19 {offsets = [16, 0], sizes = [8, 32], strides = [1, 1]} : vector<32x32xf32> to vector<8x32xf32>
    %cst_35 = arith.constant dense<0.000000e+00> : vector<16x32xf32>
    %79 = tpu.matmul %77, %78, %cst_35 {dimension_numbers = #tpu.dot_dimension_numbers<[1], [0], [0], [1], [0, 0, 1, 1], [], []>} : vector<16x8xf32>, vector<8x32xf32>, vector<16x32xf32> -> vector<16x32xf32>
    %80 = arith.addf %60, %79 : vector<16x32xf32>
    %81 = vector.extract_strided_slice %18 {offsets = [0, 24], sizes = [16, 8], strides = [1, 1]} : vector<16x32xf32> to vector<16x8xf32>
    %82 = vector.extract_strided_slice %11 {offsets = [0, 24], sizes = [16, 8], strides = [1, 1]} : vector<16x32xf32> to vector<16x8xf32>
    %83 = tpu.transpose %82, [1, 0] : vector<16x8xf32> -> vector<8x16xf32>
    %cst_36 = arith.constant dense<0.000000e+00> : vector<16x16xf32>
    %84 = tpu.matmul %81, %83, %cst_36 {dimension_numbers = #tpu.dot_dimension_numbers<[1], [0], [0], [1], [0, 0, 1, 1], [], []>} : vector<16x8xf32>, vector<8x16xf32>, vector<16x16xf32> -> vector<16x16xf32>
    %85 = arith.addf %84, %1 : vector<16x16xf32>
    %cst_37 = arith.constant dense<0xFF800000> : vector<16xf32>
    %86 = vector.multi_reduction <maximumf>, %85, %cst_37 [1] : vector<16x16xf32> to vector<16xf32>
    %87 = vector.shape_cast %86 : vector<16xf32> to vector<16x1xf32>
    %88 = vector.broadcast %87 : vector<16x1xf32> to vector<16x16xf32>
    %89 = arith.subf %85, %88 : vector<16x16xf32>
    %90 = math.exp %89 : vector<16x16xf32>
    %cst_38 = arith.constant dense<0.000000e+00> : vector<16xf32>
    %91 = vector.multi_reduction <add>, %90, %cst_38 [1] : vector<16x16xf32> to vector<16xf32>
    %92 = vector.shape_cast %91 : vector<16xf32> to vector<16x1xf32>
    %93 = tpu.reciprocal %92 {approx = true} : vector<16x1xf32> -> vector<16x1xf32>
    %94 = vector.broadcast %93 : vector<16x1xf32> to vector<16x16xf32>
    %95 = arith.mulf %90, %94 : vector<16x16xf32>
    %96 = vector.extract_strided_slice %16 {offsets = [0, 24], sizes = [16, 8], strides = [1, 1]} : vector<16x32xf32> to vector<16x8xf32>
    %cst_39 = arith.constant dense<0.000000e+00> : vector<16x8xf32>
    %97 = tpu.matmul %95, %96, %cst_39 {dimension_numbers = #tpu.dot_dimension_numbers<[1], [0], [0], [1], [0, 0, 1, 1], [], []>} : vector<16x16xf32>, vector<16x8xf32>, vector<16x8xf32> -> vector<16x8xf32>
    %98 = vector.extract_strided_slice %19 {offsets = [24, 0], sizes = [8, 32], strides = [1, 1]} : vector<32x32xf32> to vector<8x32xf32>
    %cst_40 = arith.constant dense<0.000000e+00> : vector<16x32xf32>
    %99 = tpu.matmul %97, %98, %cst_40 {dimension_numbers = #tpu.dot_dimension_numbers<[1], [0], [0], [1], [0, 0, 1, 1], [], []>} : vector<16x8xf32>, vector<8x32xf32>, vector<16x32xf32> -> vector<16x32xf32>
    %100 = arith.addf %80, %99 : vector<16x32xf32>
    %c0_41 = arith.constant 0 : index
    %c0_42 = arith.constant 0 : index
    %101 = vector.load %arg14[%c0_41, %c0_42] : memref<1x32xf32, #tpu.memory_space<vmem>>, vector<1x32xf32>
    %102 = vector.broadcast %101 : vector<1x32xf32> to vector<16x32xf32>
    %103 = arith.addf %100, %102 : vector<16x32xf32>
    %104 = arith.addf %0, %103 : vector<16x32xf32>
    %c0_43 = arith.constant 0 : index
    %c0_44 = arith.constant 0 : index
    %105 = vector.load %arg15[%c0_43, %c0_44] : memref<1x32xf32, #tpu.memory_space<vmem>>, vector<1x32xf32>
    %c0_45 = arith.constant 0 : index
    %c0_46 = arith.constant 0 : index
    %106 = vector.load %arg16[%c0_45, %c0_46] : memref<1x32xf32, #tpu.memory_space<vmem>>, vector<1x32xf32>
    %cst_47 = arith.constant dense<0.000000e+00> : vector<16xf32>
    %107 = vector.multi_reduction <add>, %104, %cst_47 [1] : vector<16x32xf32> to vector<16xf32>
    %108 = vector.shape_cast %107 : vector<16xf32> to vector<16x1xf32>
    %cst_48 = arith.constant 3.200000e+01 : f32
    %109 = vector.broadcast %cst_48 : f32 to vector<16x1xf32>
    %110 = arith.divf %108, %109 : vector<16x1xf32>
    %111 = vector.broadcast %110 : vector<16x1xf32> to vector<16x32xf32>
    %112 = arith.subf %104, %111 : vector<16x32xf32>
    %113 = arith.mulf %112, %112 : vector<16x32xf32>
    %cst_49 = arith.constant dense<0.000000e+00> : vector<16xf32>
    %114 = vector.multi_reduction <add>, %113, %cst_49 [1] : vector<16x32xf32> to vector<16xf32>
    %115 = vector.shape_cast %114 : vector<16xf32> to vector<16x1xf32>
    %cst_50 = arith.constant 3.200000e+01 : f32
    %116 = vector.broadcast %cst_50 : f32 to vector<16x1xf32>
    %117 = arith.divf %115, %116 : vector<16x1xf32>
    %118 = vector.broadcast %110 : vector<16x1xf32> to vector<16x32xf32>
    %119 = arith.subf %104, %118 : vector<16x32xf32>
    %cst_51 = arith.constant 9.99999974E-6 : f32
    %120 = vector.broadcast %cst_51 : f32 to vector<16x1xf32>
    %121 = arith.addf %117, %120 : vector<16x1xf32>
    %122 = math.rsqrt %121 : vector<16x1xf32>
    %123 = vector.broadcast %122 : vector<16x1xf32> to vector<16x32xf32>
    %124 = arith.mulf %119, %123 : vector<16x32xf32>
    %125 = vector.broadcast %105 : vector<1x32xf32> to vector<16x32xf32>
    %126 = arith.mulf %124, %125 : vector<16x32xf32>
    %127 = vector.broadcast %106 : vector<1x32xf32> to vector<16x32xf32>
    %128 = arith.addf %126, %127 : vector<16x32xf32>
    %c0_52 = arith.constant 0 : index
    %c0_53 = arith.constant 0 : index
    %129 = vector.load %arg17[%c0_52, %c0_53] : memref<32x64xf32, #tpu.memory_space<vmem>>, vector<32x64xf32>
    %cst_54 = arith.constant dense<0.000000e+00> : vector<16x64xf32>
    %130 = tpu.matmul %128, %129, %cst_54 {dimension_numbers = #tpu.dot_dimension_numbers<[1], [0], [0], [1], [0, 0, 1, 1], [], []>} : vector<16x32xf32>, vector<32x64xf32>, vector<16x64xf32> -> vector<16x64xf32>
    %c0_55 = arith.constant 0 : index
    %c0_56 = arith.constant 0 : index
    %131 = vector.load %arg18[%c0_55, %c0_56] : memref<1x64xf32, #tpu.memory_space<vmem>>, vector<1x64xf32>
    %132 = vector.broadcast %131 : vector<1x64xf32> to vector<16x64xf32>
    %133 = arith.addf %130, %132 : vector<16x64xf32>
    %cst_57 = arith.constant 0.000000e+00 : f32
    %134 = vector.broadcast %cst_57 : f32 to vector<16x64xf32>
    %135 = arith.maximumf %133, %134 : vector<16x64xf32>
    %c0_58 = arith.constant 0 : index
    %c0_59 = arith.constant 0 : index
    %136 = vector.load %arg19[%c0_58, %c0_59] : memref<64x32xf32, #tpu.memory_space<vmem>>, vector<64x32xf32>
    %cst_60 = arith.constant dense<0.000000e+00> : vector<16x32xf32>
    %137 = tpu.matmul %135, %136, %cst_60 {dimension_numbers = #tpu.dot_dimension_numbers<[1], [0], [0], [1], [0, 0, 1, 1], [], []>} : vector<16x64xf32>, vector<64x32xf32>, vector<16x32xf32> -> vector<16x32xf32>
    %c0_61 = arith.constant 0 : index
    %c0_62 = arith.constant 0 : index
    %138 = vector.load %arg20[%c0_61, %c0_62] : memref<1x32xf32, #tpu.memory_space<vmem>>, vector<1x32xf32>
    %139 = vector.broadcast %138 : vector<1x32xf32> to vector<16x32xf32>
    %140 = arith.addf %137, %139 : vector<16x32xf32>
    %141 = arith.addf %128, %140 : vector<16x32xf32>
    %c0_63 = arith.constant 0 : index
    %c0_64 = arith.constant 0 : index
    %142 = vector.load %arg21[%c0_63, %c0_64] : memref<1x32xf32, #tpu.memory_space<vmem>>, vector<1x32xf32>
    %c0_65 = arith.constant 0 : index
    %c0_66 = arith.constant 0 : index
    %143 = vector.load %arg22[%c0_65, %c0_66] : memref<1x32xf32, #tpu.memory_space<vmem>>, vector<1x32xf32>
    %cst_67 = arith.constant dense<0.000000e+00> : vector<16xf32>
    %144 = vector.multi_reduction <add>, %141, %cst_67 [1] : vector<16x32xf32> to vector<16xf32>
    %145 = vector.shape_cast %144 : vector<16xf32> to vector<16x1xf32>
    %cst_68 = arith.constant 3.200000e+01 : f32
    %146 = vector.broadcast %cst_68 : f32 to vector<16x1xf32>
    %147 = arith.divf %145, %146 : vector<16x1xf32>
    %148 = vector.broadcast %147 : vector<16x1xf32> to vector<16x32xf32>
    %149 = arith.subf %141, %148 : vector<16x32xf32>
    %150 = arith.mulf %149, %149 : vector<16x32xf32>
    %cst_69 = arith.constant dense<0.000000e+00> : vector<16xf32>
    %151 = vector.multi_reduction <add>, %150, %cst_69 [1] : vector<16x32xf32> to vector<16xf32>
    %152 = vector.shape_cast %151 : vector<16xf32> to vector<16x1xf32>
    %cst_70 = arith.constant 3.200000e+01 : f32
    %153 = vector.broadcast %cst_70 : f32 to vector<16x1xf32>
    %154 = arith.divf %152, %153 : vector<16x1xf32>
    %155 = vector.broadcast %147 : vector<16x1xf32> to vector<16x32xf32>
    %156 = arith.subf %141, %155 : vector<16x32xf32>
    %cst_71 = arith.constant 9.99999974E-6 : f32
    %157 = vector.broadcast %cst_71 : f32 to vector<16x1xf32>
    %158 = arith.addf %154, %157 : vector<16x1xf32>
    %159 = math.rsqrt %158 : vector<16x1xf32>
    %160 = vector.broadcast %159 : vector<16x1xf32> to vector<16x32xf32>
    %161 = arith.mulf %156, %160 : vector<16x32xf32>
    %162 = vector.broadcast %142 : vector<1x32xf32> to vector<16x32xf32>
    %163 = arith.mulf %161, %162 : vector<16x32xf32>
    %164 = vector.broadcast %143 : vector<1x32xf32> to vector<16x32xf32>
    %165 = arith.addf %163, %164 : vector<16x32xf32>
    %c0_72 = arith.constant 0 : index
    %c0_73 = arith.constant 0 : index
    %166 = vector.load %arg3[%c0_72, %c0_73] : memref<2x16xf32, #tpu.memory_space<vmem>>, vector<2x16xf32>
    %c0_74 = arith.constant 0 : index
    %c0_75 = arith.constant 0 : index
    %167 = vector.load %arg1[%c0_74, %c0_75] : memref<16x32xf32, #tpu.memory_space<vmem>>, vector<16x32xf32>
    %cst_76 = arith.constant dense<0.000000e+00> : vector<2x32xf32>
    %168 = tpu.matmul %166, %167, %cst_76 {dimension_numbers = #tpu.dot_dimension_numbers<[1], [0], [0], [1], [0, 0, 1, 1], [], []>} : vector<2x16xf32>, vector<16x32xf32>, vector<2x32xf32> -> vector<2x32xf32>
    %c0_77 = arith.constant 0 : index
    %c0_78 = arith.constant 0 : index
    %169 = vector.load %arg4[%c0_77, %c0_78] : memref<2x16xf32, #tpu.memory_space<vmem>>, vector<2x16xf32>
    %cst_79 = arith.constant dense<0.000000e+00> : vector<2x32xf32>
    %170 = tpu.matmul %169, %165, %cst_79 {dimension_numbers = #tpu.dot_dimension_numbers<[1], [0], [0], [1], [0, 0, 1, 1], [], []>} : vector<2x16xf32>, vector<16x32xf32>, vector<2x32xf32> -> vector<2x32xf32>
    %c0_80 = arith.constant 0 : index
    %c0_81 = arith.constant 0 : index
    %171 = vector.load %arg23[%c0_80, %c0_81] : memref<32x16xf32, #tpu.memory_space<vmem>>, vector<32x16xf32>
    %cst_82 = arith.constant dense<0.000000e+00> : vector<2x16xf32>
    %172 = tpu.matmul %168, %171, %cst_82 {dimension_numbers = #tpu.dot_dimension_numbers<[1], [0], [0], [1], [0, 0, 1, 1], [], []>} : vector<2x32xf32>, vector<32x16xf32>, vector<2x16xf32> -> vector<2x16xf32>
    %c0_83 = arith.constant 0 : index
    %c0_84 = arith.constant 0 : index
    %173 = vector.load %arg24[%c0_83, %c0_84] : memref<32x16xf32, #tpu.memory_space<vmem>>, vector<32x16xf32>
    %cst_85 = arith.constant dense<0.000000e+00> : vector<2x16xf32>
    %174 = tpu.matmul %170, %173, %cst_85 {dimension_numbers = #tpu.dot_dimension_numbers<[1], [0], [0], [1], [0, 0, 1, 1], [], []>} : vector<2x32xf32>, vector<32x16xf32>, vector<2x16xf32> -> vector<2x16xf32>
    %175 = arith.addf %172, %174 : vector<2x16xf32>
    %c0_86 = arith.constant 0 : index
    %c0_87 = arith.constant 0 : index
    %176 = vector.load %arg25[%c0_86, %c0_87] : memref<1x16xf32, #tpu.memory_space<vmem>>, vector<1x16xf32>
    %177 = vector.broadcast %176 : vector<1x16xf32> to vector<2x16xf32>
    %178 = arith.addf %175, %177 : vector<2x16xf32>
    %c0_88 = arith.constant 0 : index
    %c0_89 = arith.constant 0 : index
    %179 = vector.load %arg26[%c0_88, %c0_89] : memref<32x16xf32, #tpu.memory_space<vmem>>, vector<32x16xf32>
    %cst_90 = arith.constant dense<0.000000e+00> : vector<2x16xf32>
    %180 = tpu.matmul %168, %179, %cst_90 {dimension_numbers = #tpu.dot_dimension_numbers<[1], [0], [0], [1], [0, 0, 1, 1], [], []>} : vector<2x32xf32>, vector<32x16xf32>, vector<2x16xf32> -> vector<2x16xf32>
    %c0_91 = arith.constant 0 : index
    %c0_92 = arith.constant 0 : index
    %181 = vector.load %arg27[%c0_91, %c0_92] : memref<32x16xf32, #tpu.memory_space<vmem>>, vector<32x16xf32>
    %cst_93 = arith.constant dense<0.000000e+00> : vector<2x16xf32>
    %182 = tpu.matmul %170, %181, %cst_93 {dimension_numbers = #tpu.dot_dimension_numbers<[1], [0], [0], [1], [0, 0, 1, 1], [], []>} : vector<2x32xf32>, vector<32x16xf32>, vector<2x16xf32> -> vector<2x16xf32>
    %183 = arith.addf %180, %182 : vector<2x16xf32>
    %c0_94 = arith.constant 0 : index
    %c0_95 = arith.constant 0 : index
    %184 = vector.load %arg28[%c0_94, %c0_95] : memref<1x16xf32, #tpu.memory_space<vmem>>, vector<1x16xf32>
    %185 = vector.broadcast %184 : vector<1x16xf32> to vector<2x16xf32>
    %186 = arith.addf %183, %185 : vector<2x16xf32>
    %c0_96 = arith.constant 0 : index
    %c0_97 = arith.constant 0 : index
    %187 = vector.load %arg6[%c0_96, %c0_97] : memref<2x16xf32, #tpu.memory_space<vmem>>, vector<2x16xf32>
    %cst_98 = arith.constant 5.000000e-01 : f32
    %188 = vector.broadcast %cst_98 : f32 to vector<2x16xf32>
    %189 = arith.mulf %188, %186 : vector<2x16xf32>
    %190 = math.exp %189 : vector<2x16xf32>
    %191 = arith.mulf %187, %190 : vector<2x16xf32>
    %192 = arith.addf %178, %191 : vector<2x16xf32>
    %c0_99 = arith.constant 0 : index
    %c0_100 = arith.constant 0 : index
    %193 = vector.load %arg29[%c0_99, %c0_100] : memref<16x32xf32, #tpu.memory_space<vmem>>, vector<16x32xf32>
    %cst_101 = arith.constant dense<0.000000e+00> : vector<2x32xf32>
    %194 = tpu.matmul %192, %193, %cst_101 {dimension_numbers = #tpu.dot_dimension_numbers<[1], [0], [0], [1], [0, 0, 1, 1], [], []>} : vector<2x16xf32>, vector<16x32xf32>, vector<2x32xf32> -> vector<2x32xf32>
    %c0_102 = arith.constant 0 : index
    %c0_103 = arith.constant 0 : index
    %195 = vector.load %arg30[%c0_102, %c0_103] : memref<1x32xf32, #tpu.memory_space<vmem>>, vector<1x32xf32>
    %196 = vector.broadcast %195 : vector<1x32xf32> to vector<2x32xf32>
    %197 = arith.addf %194, %196 : vector<2x32xf32>
    %cst_104 = arith.constant 0.000000e+00 : f32
    %198 = vector.broadcast %cst_104 : f32 to vector<2x48xf32>
    %199 = tpu.concatenate %178, %186, %192, %197, %198 in 1 : vector<2x16xf32>, vector<2x16xf32>, vector<2x16xf32>, vector<2x32xf32>, vector<2x48xf32> -> vector<2x128xf32>
    %c0_105 = arith.constant 0 : index
    %c0_106 = arith.constant 0 : index
    %200 = vector.load %arg31[%c0_105, %c0_106] : memref<2x128xf32, #tpu.memory_space<vmem>>, vector<2x128xf32>
    tpu.vector_store %arg31[%c0_105, %c0_106], %199 {strides = array<i32>} : memref<2x128xf32, #tpu.memory_space<vmem>>, vector<2x128xf32>,
    return
  }
  func.func @transform_0(%arg0: i32) -> (i32, i32) {
    %c0_i32 = arith.constant 0 : i32
    %c0_i32_0 = arith.constant 0 : i32
    %c0_i32_1 = arith.constant 0 : i32
    return %c0_i32, %c0_i32_0 : i32, i32
  }
  func.func @transform_1(%arg0: i32) -> (i32, i32) {
    %c0_i32 = arith.constant 0 : i32
    %c0_i32_0 = arith.constant 0 : i32
    %c0_i32_1 = arith.constant 0 : i32
    return %c0_i32, %c0_i32_0 : i32, i32
  }
  func.func @transform_2(%arg0: i32) -> (i32, i32) {
    %c0_i32 = arith.constant 0 : i32
    %c0_i32_0 = arith.constant 0 : i32
    %c0_i32_1 = arith.constant 0 : i32
    return %c0_i32, %c0_i32_0 : i32, i32
  }
  func.func @transform_3(%arg0: i32) -> (i32, i32) {
    %c0_i32 = arith.constant 0 : i32
    %c0_i32_0 = arith.constant 0 : i32
    %c0_i32_1 = arith.constant 0 : i32
    return %c0_i32, %c0_i32_0 : i32, i32
  }
  func.func @transform_4(%arg0: i32) -> (i32, i32) {
    %c0_i32 = arith.constant 0 : i32
    %c0_i32_0 = arith.constant 0 : i32
    %c0_i32_1 = arith.constant 0 : i32
    return %c0_i32, %c0_i32_0 : i32, i32
  }
  func.func @transform_5(%arg0: i32) -> (i32, i32) {
    %c0_i32 = arith.constant 0 : i32
    %c0_i32_0 = arith.constant 0 : i32
    %c0_i32_1 = arith.constant 0 : i32
    return %c0_i32, %c0_i32_0 : i32, i32
  }
  func.func @transform_6(%arg0: i32) -> (i32, i32) {
    %c0_i32 = arith.constant 0 : i32
    %c0_i32_0 = arith.constant 0 : i32
    %c0_i32_1 = arith.constant 0 : i32
    return %c0_i32, %c0_i32_0 : i32, i32
  }
  func.func @transform_7(%arg0: i32) -> (i32, i32) {
    %c0_i32 = arith.constant 0 : i32
    %c0_i32_0 = arith.constant 0 : i32
    %c0_i32_1 = arith.constant 0 : i32
    return %c0_i32, %c0_i32_0 : i32, i32
  }
  func.func @transform_8(%arg0: i32) -> (i32, i32) {
    %c0_i32 = arith.constant 0 : i32
    %c0_i32_0 = arith.constant 0 : i32
    %c0_i32_1 = arith.constant 0 : i32
    return %c0_i32, %c0_i32_0 : i32, i32
  }
  func.func @transform_9(%arg0: i32) -> (i32, i32) {
    %c0_i32 = arith.constant 0 : i32
    %c0_i32_0 = arith.constant 0 : i32
    %c0_i32_1 = arith.constant 0 : i32
    return %c0_i32, %c0_i32_0 : i32, i32
  }
  func.func @transform_10(%arg0: i32) -> (i32, i32) {
    %c0_i32 = arith.constant 0 : i32
    %c0_i32_0 = arith.constant 0 : i32
    %c0_i32_1 = arith.constant 0 : i32
    return %c0_i32, %c0_i32_0 : i32, i32
  }
  func.func @transform_11(%arg0: i32) -> (i32, i32) {
    %c0_i32 = arith.constant 0 : i32
    %c0_i32_0 = arith.constant 0 : i32
    %c0_i32_1 = arith.constant 0 : i32
    return %c0_i32, %c0_i32_0 : i32, i32
  }
  func.func @transform_12(%arg0: i32) -> (i32, i32) {
    %c0_i32 = arith.constant 0 : i32
    %c0_i32_0 = arith.constant 0 : i32
    %c0_i32_1 = arith.constant 0 : i32
    return %c0_i32, %c0_i32_0 : i32, i32
  }
  func.func @transform_13(%arg0: i32) -> (i32, i32) {
    %c0_i32 = arith.constant 0 : i32
    %c0_i32_0 = arith.constant 0 : i32
    %c0_i32_1 = arith.constant 0 : i32
    return %c0_i32, %c0_i32_0 : i32, i32
  }
  func.func @transform_14(%arg0: i32) -> (i32, i32) {
    %c0_i32 = arith.constant 0 : i32
    %c0_i32_0 = arith.constant 0 : i32
    %c0_i32_1 = arith.constant 0 : i32
    return %c0_i32, %c0_i32_0 : i32, i32
  }
  func.func @transform_15(%arg0: i32) -> (i32, i32) {
    %c0_i32 = arith.constant 0 : i32
    %c0_i32_0 = arith.constant 0 : i32
    %c0_i32_1 = arith.constant 0 : i32
    return %c0_i32, %c0_i32_0 : i32, i32
  }
  func.func @transform_16(%arg0: i32) -> (i32, i32) {
    %c0_i32 = arith.constant 0 : i32
    %c0_i32_0 = arith.constant 0 : i32
    %c0_i32_1 = arith.constant 0 : i32
    return %c0_i32, %c0_i32_0 : i32, i32
  }
  func.func @transform_17(%arg0: i32) -> (i32, i32) {
    %c0_i32 = arith.constant 0 : i32
    %c0_i32_0 = arith.constant 0 : i32
    %c0_i32_1 = arith.constant 0 : i32
    return %c0_i32, %c0_i32_0 : i32, i32
  }
  func.func @transform_18(%arg0: i32) -> (i32, i32) {
    %c0_i32 = arith.constant 0 : i32
    %c0_i32_0 = arith.constant 0 : i32
    %c0_i32_1 = arith.constant 0 : i32
    return %c0_i32, %c0_i32_0 : i32, i32
  }
  func.func @transform_19(%arg0: i32) -> (i32, i32) {
    %c0_i32 = arith.constant 0 : i32
    %c0_i32_0 = arith.constant 0 : i32
    %c0_i32_1 = arith.constant 0 : i32
    return %c0_i32, %c0_i32_0 : i32, i32
  }
  func.func @transform_20(%arg0: i32) -> (i32, i32) {
    %c0_i32 = arith.constant 0 : i32
    %c0_i32_0 = arith.constant 0 : i32
    %c0_i32_1 = arith.constant 0 : i32
    return %c0_i32, %c0_i32_0 : i32, i32
  }
  func.func @transform_21(%arg0: i32) -> (i32, i32) {
    %c0_i32 = arith.constant 0 : i32
    %c0_i32_0 = arith.constant 0 : i32
    %c0_i32_1 = arith.constant 0 : i32
    return %c0_i32, %c0_i32_0 : i32, i32
  }
  func.func @transform_22(%arg0: i32) -> (i32, i32) {
    %c0_i32 = arith.constant 0 : i32
    %c0_i32_0 = arith.constant 0 : i32
    %c0_i32_1 = arith.constant 0 : i32
    return %c0_i32, %c0_i32_0 : i32, i32
  }
  func.func @transform_23(%arg0: i32) -> (i32, i32) {
    %c0_i32 = arith.constant 0 : i32
    %c0_i32_0 = arith.constant 0 : i32
    %c0_i32_1 = arith.constant 0 : i32
    return %c0_i32, %c0_i32_0 : i32, i32
  }
  func.func @transform_24(%arg0: i32) -> (i32, i32) {
    %c0_i32 = arith.constant 0 : i32
    %c0_i32_0 = arith.constant 0 : i32
    %c0_i32_1 = arith.constant 0 : i32
    return %c0_i32, %c0_i32_0 : i32, i32
  }
  func.func @transform_25(%arg0: i32) -> (i32, i32) {
    %c0_i32 = arith.constant 0 : i32
    %c0_i32_0 = arith.constant 0 : i32
    %c0_i32_1 = arith.constant 0 : i32
    return %c0_i32, %c0_i32_0 : i32, i32
  }
  func.func @transform_26(%arg0: i32) -> (i32, i32) {
    %c0_i32 = arith.constant 0 : i32
    %c0_i32_0 = arith.constant 0 : i32
    %c0_i32_1 = arith.constant 0 : i32
    return %c0_i32, %c0_i32_0 : i32, i32
  }
  func.func @transform_27(%arg0: i32) -> (i32, i32) {
    %c0_i32 = arith.constant 0 : i32
    %c0_i32_0 = arith.constant 0 : i32
    %c0_i32_1 = arith.constant 0 : i32
    return %c0_i32, %c0_i32_0 : i32, i32
  }
  func.func @transform_28(%arg0: i32) -> (i32, i32) {
    %c0_i32 = arith.constant 0 : i32
    %c0_i32_0 = arith.constant 0 : i32
    %c0_i32_1 = arith.constant 0 : i32
    return %c0_i32, %c0_i32_0 : i32, i32
  }
  func.func @transform_29(%arg0: i32) -> (i32, i32) {
    %c0_i32 = arith.constant 0 : i32
    %c0_i32_0 = arith.constant 0 : i32
    %c0_i32_1 = arith.constant 0 : i32
    return %c0_i32, %c0_i32_0 : i32, i32
  }
  func.func @transform_30(%arg0: i32) -> (i32, i32) {
    %c0_i32 = arith.constant 0 : i32
    %c0_i32_0 = arith.constant 0 : i32
    %c0_i32_1 = arith.constant 0 : i32
    return %c0_i32, %c0_i32_0 : i32, i32
  }
}

</mosaic_0001>

<llo_original>
// kernel: tpu_custom_call.1
$region0: #{tpu_custom_call.1}
  #allocation0 [shape = 'u32[]', space=smem, size = 0x4, offset = 0x4, fixed_abs, tag = 'smem constant byte address 0x4 - core index']
  #allocation1 [shape = 'u32[144,128]{1,0:T(1,128)}', space=vmem, size = 0x12000, scoped, tag = 'internal scratch']
  %s0 = inlined_call_operand.smem [shape: u32[31], index: -1, kind: input, shape index: {}]
  %s1 = sld [smem:[%s0]]
  %s2 = scalar_lea.smem %s0, 1
  %s3 = sld [smem:[%s2]]
  %s4 = scalar_lea.smem %s0, 2
  %s5 = sld [smem:[%s4]]
  %s6 = scalar_lea.smem %s0, 3
  %s7 = sld [smem:[%s6]]
  %s8 = scalar_lea.smem %s0, 4
  %s9 = sld [smem:[%s8]]
  %s10 = scalar_lea.smem %s0, 5
  %s11 = sld [smem:[%s10]]
  %s12 = scalar_lea.smem %s0, 6
  %s13 = sld [smem:[%s12]]
  %s14 = scalar_lea.smem %s0, 7
  %s15 = sld [smem:[%s14]]
  %s16 = scalar_lea.smem %s0, 8
  %s17 = sld [smem:[%s16]]
  %s18 = scalar_lea.smem %s0, 9
  %s19 = sld [smem:[%s18]]
  %s20 = scalar_lea.smem %s0, 10
  %s21 = sld [smem:[%s20]]
  %s22 = scalar_lea.smem %s0, 11
  %s23 = sld [smem:[%s22]]
  %s24 = scalar_lea.smem %s0, 12
  %s25 = sld [smem:[%s24]]
  %s26 = scalar_lea.smem %s0, 13
  %s27 = sld [smem:[%s26]]
  %s28 = scalar_lea.smem %s0, 14
  %s29 = sld [smem:[%s28]]
  %s30 = scalar_lea.smem %s0, 15
  %s31 = sld [smem:[%s30]]
  %s32 = scalar_lea.smem %s0, 16
  %s33 = sld [smem:[%s32]]
  %s34 = scalar_lea.smem %s0, 17
  %s35 = sld [smem:[%s34]]
  %s36 = scalar_lea.smem %s0, 18
  %s37 = sld [smem:[%s36]]
  %s38 = scalar_lea.smem %s0, 19
  %s39 = sld [smem:[%s38]]
  %s40 = scalar_lea.smem %s0, 20
  %s41 = sld [smem:[%s40]]
  %s42 = scalar_lea.smem %s0, 21
  %s43 = sld [smem:[%s42]]
  %s44 = scalar_lea.smem %s0, 22
  %s45 = sld [smem:[%s44]]
  %s46 = scalar_lea.smem %s0, 23
  %s47 = sld [smem:[%s46]]
  %s48 = scalar_lea.smem %s0, 24
  %s49 = sld [smem:[%s48]]
  %s50 = scalar_lea.smem %s0, 25
  %s51 = sld [smem:[%s50]]
  %s52 = scalar_lea.smem %s0, 26
  %s53 = sld [smem:[%s52]]
  %s54 = scalar_lea.smem %s0, 27
  %s55 = sld [smem:[%s54]]
  %s56 = scalar_lea.smem %s0, 28
  %s57 = sld [smem:[%s56]]
  %s58 = scalar_lea.smem %s0, 29
  %s59 = sld [smem:[%s58]]
  %s60 = scalar_lea.smem %s0, 30
  %s61 = sld [smem:[%s60]]
  %s62 = sld [smem:[#allocation0]]
  $region174: #{tpu_custom_call.1} parent=0
    _
  %s64 = ssub.s32 1, %s62
  %s65 = scalar_select 0, %s64, %s62
  $region1: #{tpu_custom_call.1} parent=0
    #allocation2 [shape = 'u8[1024]{0}', space=vmem, size = 0x400, scoped, tag = 'input window, operand 2, single buffered']
    #allocation3 [shape = 's32[1]{0}', space=sflag, size = 0x4, scoped, tag = 'scoped memory for tpu_custom_call.1']
    #allocation4 [shape = 's32[1]{0}', space=sflag, size = 0x4, scoped, tag = 'scoped memory for tpu_custom_call.1']
    #allocation5 [shape = 'u8[1024]{0}', space=vmem, size = 0x400, scoped, tag = 'input window, operand 3, single buffered']
    #allocation6 [shape = 's32[1]{0}', space=sflag, size = 0x4, scoped, tag = 'scoped memory for tpu_custom_call.1']
    #allocation7 [shape = 'u8[1024]{0}', space=vmem, size = 0x400, scoped, tag = 'input window, operand 5, single buffered']
    #allocation8 [shape = 'u8[512]{0}', space=vmem, size = 0x400, scoped, tag = 'input window, operand 7, single buffered']
    #allocation9 [shape = 's32[1]{0}', space=sflag, size = 0x4, scoped, tag = 'scoped memory for tpu_custom_call.1']
    #allocation10 [shape = 'u8[512]{0}', space=vmem, size = 0x400, scoped, tag = 'input window, operand 9, single buffered']
    #allocation11 [shape = 'u8[512]{0}', space=vmem, size = 0x400, scoped, tag = 'input window, operand 11, single buffered']
    #allocation12 [shape = 's32[1]{0}', space=sflag, size = 0x4, scoped, tag = 'scoped memory for tpu_custom_call.1']
    #allocation13 [shape = 'u8[512]{0}', space=vmem, size = 0x400, scoped, tag = 'input window, operand 13, single buffered']
    #allocation14 [shape = 'u8[512]{0}', space=vmem, size = 0x400, scoped, tag = 'input window, operand 14, single buffered']
    #allocation15 [shape = 's32[1]{0}', space=sflag, size = 0x4, scoped, tag = 'scoped memory for tpu_custom_call.1']
    #allocation16 [shape = 'u8[512]{0}', space=vmem, size = 0x400, scoped, tag = 'input window, operand 15, single buffered']
    #allocation17 [shape = 'u8[512]{0}', space=vmem, size = 0x400, scoped, tag = 'input window, operand 17, single buffered']
    #allocation18 [shape = 's32[1]{0}', space=sflag, size = 0x4, scoped, tag = 'scoped memory for tpu_custom_call.1']
    #allocation19 [shape = 'u8[512]{0}', space=vmem, size = 0x400, scoped, tag = 'input window, operand 19, single buffered']
    #allocation20 [shape = 'u8[1024]{0}', space=vmem, size = 0x400, scoped, tag = 'output window, operand 0, single buffered']
    %66 = vsyncpa [#allocation3], 0
    %67 = vsyncpa [#allocation6], 0
    %68 = vsyncpa [#allocation9], 0
    %69 = vsyncpa [#allocation12], 0
    %70 = vsyncpa [#allocation15], 0
    %71 = vsyncpa [#allocation18], 0
    %72 = vsyncpa [#allocation4], 0
    // Predicated region
    $region2: #{tpu_custom_call.1} parent=1 // pred_check
      _
    $region3: #{tpu_custom_call.1} parent=1 // pred_check_branch
      %74 = sbr.rel (0) target = $region5
    $region4: #{tpu_custom_call.1} parent=1 // pred_region
      _
    $region5: #{tpu_custom_call.1} parent=1 // pred_fallthru
      _
    // Predicated region
    $region6: #{tpu_custom_call.1} parent=1 // pred_check
      _
    $region7: #{tpu_custom_call.1} parent=1 // pred_check_branch
      %76 = sbr.rel (0) target = $region9
    $region8: #{tpu_custom_call.1} parent=1 // pred_region
      _
    $region9: #{tpu_custom_call.1} parent=1 // pred_fallthru
      _
    // Predicated region
    $region10: #{tpu_custom_call.1} parent=1 // pred_check
      _
    $region11: #{tpu_custom_call.1} parent=1 // pred_check_branch
      %78 = sbr.rel (0) target = $region13
    $region12: #{tpu_custom_call.1} parent=1 // pred_region
      %s80 = ssub.s32 32, 32
      %81 = vsyncadd [#allocation3], %s80
      %s83 = sshll.u32 [#allocation2], 4
      %s84 = int_to_ptr.vmem [resolvable:$true] %s83
      %86 = dma.hbm_to_vmem [thread:$0]  %s5, 32, %s84, [#allocation3]
    $region13: #{tpu_custom_call.1} parent=1 // pred_fallthru
      _
    // Predicated region
    $region14: #{tpu_custom_call.1} parent=1 // pred_check
      _
    $region15: #{tpu_custom_call.1} parent=1 // pred_check_branch
      %88 = sbr.rel (0) target = $region17
    $region16: #{tpu_custom_call.1} parent=1 // pred_region
      %s90 = ssub.s32 32, 32
      %91 = vsyncadd [#allocation6], %s90
      %s93 = sshll.u32 [#allocation5], 4
      %s94 = int_to_ptr.vmem [resolvable:$true] %s93
      %96 = dma.hbm_to_vmem [thread:$0]  %s7, 32, %s94, [#allocation6]
    $region17: #{tpu_custom_call.1} parent=1 // pred_fallthru
      _
    // Predicated region
    $region18: #{tpu_custom_call.1} parent=1 // pred_check
      _
    $region19: #{tpu_custom_call.1} parent=1 // pred_check_branch
      %98 = sbr.rel (0) target = $region21
    $region20: #{tpu_custom_call.1} parent=1 // pred_region
      _
    $region21: #{tpu_custom_call.1} parent=1 // pred_fallthru
      _
    // Predicated region
    $region22: #{tpu_custom_call.1} parent=1 // pred_check
      _
    $region23: #{tpu_custom_call.1} parent=1 // pred_check_branch
      %100 = sbr.rel (0) target = $region25
    $region24: #{tpu_custom_call.1} parent=1 // pred_region
      %s102 = ssub.s32 32, 32
      %103 = vsyncadd [#allocation6], %s102
      %s105 = sshll.u32 [#allocation7], 4
      %s106 = int_to_ptr.vmem [resolvable:$true] %s105
      %108 = dma.hbm_to_vmem [thread:$0]  %s11, 32, %s106, [#allocation6]
    $region25: #{tpu_custom_call.1} parent=1 // pred_fallthru
      _
    // Predicated region
    $region26: #{tpu_custom_call.1} parent=1 // pred_check
      _
    $region27: #{tpu_custom_call.1} parent=1 // pred_check_branch
      %110 = sbr.rel (0) target = $region29
    $region28: #{tpu_custom_call.1} parent=1 // pred_region
      _
    $region29: #{tpu_custom_call.1} parent=1 // pred_fallthru
      _
    // Predicated region
    $region30: #{tpu_custom_call.1} parent=1 // pred_check
      _
    $region31: #{tpu_custom_call.1} parent=1 // pred_check_branch
      %112 = sbr.rel (0) target = $region33
    $region32: #{tpu_custom_call.1} parent=1 // pred_region
      %s114 = ssub.s32 16, 16
      %115 = vsyncadd [#allocation9], %s114
      %s117 = sshll.u32 [#allocation8], 4
      %s118 = int_to_ptr.vmem [resolvable:$true] %s117
      %120 = dma.hbm_to_vmem [thread:$0]  %s15, 16, %s118, [#allocation9]
    $region33: #{tpu_custom_call.1} parent=1 // pred_fallthru
      _
    // Predicated region
    $region34: #{tpu_custom_call.1} parent=1 // pred_check
      _
    $region35: #{tpu_custom_call.1} parent=1 // pred_check_branch
      %122 = sbr.rel (0) target = $region37
    $region36: #{tpu_custom_call.1} parent=1 // pred_region
      _
    $region37: #{tpu_custom_call.1} parent=1 // pred_fallthru
      _
    // Predicated region
    $region38: #{tpu_custom_call.1} parent=1 // pred_check
      _
    $region39: #{tpu_custom_call.1} parent=1 // pred_check_branch
      %124 = sbr.rel (0) target = $region41
    $region40: #{tpu_custom_call.1} parent=1 // pred_region
      %s126 = ssub.s32 16, 16
      %127 = vsyncadd [#allocation9], %s126
      %s129 = sshll.u32 [#allocation10], 4
      %s130 = int_to_ptr.vmem [resolvable:$true] %s129
      %132 = dma.hbm_to_vmem [thread:$0]  %s19, 16, %s130, [#allocation9]
    $region41: #{tpu_custom_call.1} parent=1 // pred_fallthru
      _
    // Predicated region
    $region42: #{tpu_custom_call.1} parent=1 // pred_check
      _
    $region43: #{tpu_custom_call.1} parent=1 // pred_check_branch
      %134 = sbr.rel (0) target = $region45
    $region44: #{tpu_custom_call.1} parent=1 // pred_region
      _
    $region45: #{tpu_custom_call.1} parent=1 // pred_fallthru
      _
    // Predicated region
    $region46: #{tpu_custom_call.1} parent=1 // pred_check
      _
    $region47: #{tpu_custom_call.1} parent=1 // pred_check_branch
      %136 = sbr.rel (0) target = $region49
    $region48: #{tpu_custom_call.1} parent=1 // pred_region
      %s138 = ssub.s32 16, 16
      %139 = vsyncadd [#allocation12], %s138
      %s141 = sshll.u32 [#allocation11], 4
      %s142 = int_to_ptr.vmem [resolvable:$true] %s141
      %144 = dma.hbm_to_vmem [thread:$0]  %s23, 16, %s142, [#allocation12]
    $region49: #{tpu_custom_call.1} parent=1 // pred_fallthru
      _
    // Predicated region
    $region50: #{tpu_custom_call.1} parent=1 // pred_check
      _
    $region51: #{tpu_custom_call.1} parent=1 // pred_check_branch
      %146 = sbr.rel (0) target = $region53
    $region52: #{tpu_custom_call.1} parent=1 // pred_region
      _
    $region53: #{tpu_custom_call.1} parent=1 // pred_fallthru
      _
    // Predicated region
    $region54: #{tpu_custom_call.1} parent=1 // pred_check
      _
    $region55: #{tpu_custom_call.1} parent=1 // pred_check_branch
      %148 = sbr.rel (0) target = $region57
    $region56: #{tpu_custom_call.1} parent=1 // pred_region
      %s150 = ssub.s32 16, 16
      %151 = vsyncadd [#allocation12], %s150
      %s153 = sshll.u32 [#allocation13], 4
      %s154 = int_to_ptr.vmem [resolvable:$true] %s153
      %156 = dma.hbm_to_vmem [thread:$0]  %s27, 16, %s154, [#allocation12]
    $region57: #{tpu_custom_call.1} parent=1 // pred_fallthru
      _
    // Predicated region
    $region58: #{tpu_custom_call.1} parent=1 // pred_check
      _
    $region59: #{tpu_custom_call.1} parent=1 // pred_check_branch
      %158 = sbr.rel (0) target = $region61
    $region60: #{tpu_custom_call.1} parent=1 // pred_region
      %s160 = ssub.s32 16, 16
      %161 = vsyncadd [#allocation15], %s160
      %s163 = sshll.u32 [#allocation14], 4
      %s164 = int_to_ptr.vmem [resolvable:$true] %s163
      %166 = dma.hbm_to_vmem [thread:$0]  %s29, 16, %s164, [#allocation15]
    $region61: #{tpu_custom_call.1} parent=1 // pred_fallthru
      _
    // Predicated region
    $region62: #{tpu_custom_call.1} parent=1 // pred_check
      _
    $region63: #{tpu_custom_call.1} parent=1 // pred_check_branch
      %168 = sbr.rel (0) target = $region65
    $region64: #{tpu_custom_call.1} parent=1 // pred_region
      %s170 = ssub.s32 16, 16
      %171 = vsyncadd [#allocation15], %s170
      %s173 = sshll.u32 [#allocation16], 4
      %s174 = int_to_ptr.vmem [resolvable:$true] %s173
      %176 = dma.hbm_to_vmem [thread:$0]  %s31, 16, %s174, [#allocation15]
    $region65: #{tpu_custom_call.1} parent=1 // pred_fallthru
      _
    // Predicated region
    $region66: #{tpu_custom_call.1} parent=1 // pred_check
      _
    $region67: #{tpu_custom_call.1} parent=1 // pred_check_branch
      %178 = sbr.rel (0) target = $region69
    $region68: #{tpu_custom_call.1} parent=1 // pred_region
      _
    $region69: #{tpu_custom_call.1} parent=1 // pred_fallthru
      _
    // Predicated region
    $region70: #{tpu_custom_call.1} parent=1 // pred_check
      _
    $region71: #{tpu_custom_call.1} parent=1 // pred_check_branch
      %180 = sbr.rel (0) target = $region73
    $region72: #{tpu_custom_call.1} parent=1 // pred_region
      %s182 = ssub.s32 16, 16
      %183 = vsyncadd [#allocation18], %s182
      %s185 = sshll.u32 [#allocation17], 4
      %s186 = int_to_ptr.vmem [resolvable:$true] %s185
      %188 = dma.hbm_to_vmem [thread:$0]  %s35, 16, %s186, [#allocation18]
    $region73: #{tpu_custom_call.1} parent=1 // pred_fallthru
      _
    // Predicated region
    $region74: #{tpu_custom_call.1} parent=1 // pred_check
      _
    $region75: #{tpu_custom_call.1} parent=1 // pred_check_branch
      %190 = sbr.rel (0) target = $region77
    $region76: #{tpu_custom_call.1} parent=1 // pred_region
      _
    $region77: #{tpu_custom_call.1} parent=1 // pred_fallthru
      _
    // Predicated region
    $region78: #{tpu_custom_call.1} parent=1 // pred_check
      _
    $region79: #{tpu_custom_call.1} parent=1 // pred_check_branch
      %192 = sbr.rel (0) target = $region81
    $region80: #{tpu_custom_call.1} parent=1 // pred_region
      %s194 = ssub.s32 16, 16
      %195 = vsyncadd [#allocation18], %s194
      %s197 = sshll.u32 [#allocation19], 4
      %s198 = int_to_ptr.vmem [resolvable:$true] %s197
      %200 = dma.hbm_to_vmem [thread:$0]  %s39, 16, %s198, [#allocation18]
    $region81: #{tpu_custom_call.1} parent=1 // pred_fallthru
      _
    // Predicated region
    $region82: #{tpu_custom_call.1} parent=1 // pred_check
      _
    $region83: #{tpu_custom_call.1} parent=1 // pred_check_branch
      %202 = sbr.rel (0) target = $region85
    $region84: #{tpu_custom_call.1} parent=1 // pred_region
      _
    $region85: #{tpu_custom_call.1} parent=1 // pred_fallthru
      _
    // Predicated region
    $region86: #{tpu_custom_call.1} parent=1 // pred_check
      _
    $region87: #{tpu_custom_call.1} parent=1 // pred_check_branch
      %204 = sbr.rel (0) target = $region89
    $region88: #{tpu_custom_call.1} parent=1 // pred_region
      _
    $region89: #{tpu_custom_call.1} parent=1 // pred_fallthru
      _
    // Predicated region
    $region90: #{tpu_custom_call.1} parent=1 // pred_check
      _
    $region91: #{tpu_custom_call.1} parent=1 // pred_check_branch
      %206 = sbr.rel (0) target = $region93
    $region92: #{tpu_custom_call.1} parent=1 // pred_region
      _
    $region93: #{tpu_custom_call.1} parent=1 // pred_fallthru
      _
    // Predicated region
    $region94: #{tpu_custom_call.1} parent=1 // pred_check
      _
    $region95: #{tpu_custom_call.1} parent=1 // pred_check_branch
      %208 = sbr.rel (0) target = $region97
    $region96: #{tpu_custom_call.1} parent=1 // pred_region
      _
    $region97: #{tpu_custom_call.1} parent=1 // pred_fallthru
      _
    // Predicated region
    $region98: #{tpu_custom_call.1} parent=1 // pred_check
      _
    $region99: #{tpu_custom_call.1} parent=1 // pred_check_branch
      %210 = sbr.rel (0) target = $region101
    $region100: #{tpu_custom_call.1} parent=1 // pred_region
      _
    $region101: #{tpu_custom_call.1} parent=1 // pred_fallthru
      _
    // Predicated region
    $region102: #{tpu_custom_call.1} parent=1 // pred_check
      _
    $region103: #{tpu_custom_call.1} parent=1 // pred_check_branch
      %212 = sbr.rel (0) target = $region105
    $region104: #{tpu_custom_call.1} parent=1 // pred_region
      _
    $region105: #{tpu_custom_call.1} parent=1 // pred_fallthru
      _
    // Predicated region
    $region106: #{tpu_custom_call.1} parent=1 // pred_check
      _
    $region107: #{tpu_custom_call.1} parent=1 // pred_check_branch
      %214 = sbr.rel (0) target = $region109
    $region108: #{tpu_custom_call.1} parent=1 // pred_region
      _
    $region109: #{tpu_custom_call.1} parent=1 // pred_fallthru
      _
    // Predicated region
    $region110: #{tpu_custom_call.1} parent=1 // pred_check
      _
    $region111: #{tpu_custom_call.1} parent=1 // pred_check_branch
      %216 = sbr.rel (0) target = $region113
    $region112: #{tpu_custom_call.1} parent=1 // pred_region
      _
    $region113: #{tpu_custom_call.1} parent=1 // pred_fallthru
      _
    // Predicated region
    $region114: #{tpu_custom_call.1} parent=1 // pred_check
      _
    $region115: #{tpu_custom_call.1} parent=1 // pred_check_branch
      %218 = sbr.rel (0) target = $region117
    $region116: #{tpu_custom_call.1} parent=1 // pred_region
      _
    $region117: #{tpu_custom_call.1} parent=1 // pred_fallthru
      _
    // Predicated region
    $region118: #{tpu_custom_call.1} parent=1 // pred_check
      _
    $region119: #{tpu_custom_call.1} parent=1 // pred_check_branch
      %220 = sbr.rel (0) target = $region121
    $region120: #{tpu_custom_call.1} parent=1 // pred_region
      _
    $region121: #{tpu_custom_call.1} parent=1 // pred_fallthru
      _
    // Predicated region
    $region122: #{tpu_custom_call.1} parent=1 // pred_check
      _
    $region123: #{tpu_custom_call.1} parent=1 // pred_check_branch
      %222 = sbr.rel (0) target = $region125
    $region124: #{tpu_custom_call.1} parent=1 // pred_region
      %223 = dma.done [#allocation3], 32
    $region125: #{tpu_custom_call.1} parent=1 // pred_fallthru
      _
    // Predicated region
    $region126: #{tpu_custom_call.1} parent=1 // pred_check
      _
    $region127: #{tpu_custom_call.1} parent=1 // pred_check_branch
      %225 = sbr.rel (0) target = $region129
    $region128: #{tpu_custom_call.1} parent=1 // pred_region
      %226 = dma.done [#allocation6], 32
    $region129: #{tpu_custom_call.1} parent=1 // pred_fallthru
      _
    // Predicated region
    $region130: #{tpu_custom_call.1} parent=1 // pred_check
      _
    $region131: #{tpu_custom_call.1} parent=1 // pred_check_branch
      %228 = sbr.rel (0) target = $region133
    $region132: #{tpu_custom_call.1} parent=1 // pred_region
      %229 = dma.done [#allocation6], 32
    $region133: #{tpu_custom_call.1} parent=1 // pred_fallthru
      _
    // Predicated region
    $region134: #{tpu_custom_call.1} parent=1 // pred_check
      _
    $region135: #{tpu_custom_call.1} parent=1 // pred_check_branch
      %231 = sbr.rel (0) target = $region137
    $region136: #{tpu_custom_call.1} parent=1 // pred_region
      %232 = dma.done [#allocation9], 16
    $region137: #{tpu_custom_call.1} parent=1 // pred_fallthru
      _
    // Predicated region
    $region138: #{tpu_custom_call.1} parent=1 // pred_check
      _
    $region139: #{tpu_custom_call.1} parent=1 // pred_check_branch
      %234 = sbr.rel (0) target = $region141
    $region140: #{tpu_custom_call.1} parent=1 // pred_region
      %235 = dma.done [#allocation9], 16
    $region141: #{tpu_custom_call.1} parent=1 // pred_fallthru
      _
    // Predicated region
    $region142: #{tpu_custom_call.1} parent=1 // pred_check
      _
    $region143: #{tpu_custom_call.1} parent=1 // pred_check_branch
      %237 = sbr.rel (0) target = $region145
    $region144: #{tpu_custom_call.1} parent=1 // pred_region
      %238 = dma.done [#allocation12], 16
    $region145: #{tpu_custom_call.1} parent=1 // pred_fallthru
      _
    // Predicated region
    $region146: #{tpu_custom_call.1} parent=1 // pred_check
      _
    $region147: #{tpu_custom_call.1} parent=1 // pred_check_branch
      %240 = sbr.rel (0) target = $region149
    $region148: #{tpu_custom_call.1} parent=1 // pred_region
      %241 = dma.done [#allocation12], 16
    $region149: #{tpu_custom_call.1} parent=1 // pred_fallthru
      _
    // Predicated region
    $region150: #{tpu_custom_call.1} parent=1 // pred_check
      _
    $region151: #{tpu_custom_call.1} parent=1 // pred_check_branch
      %243 = sbr.rel (0) target = $region153
    $region152: #{tpu_custom_call.1} parent=1 // pred_region
      %244 = dma.done [#allocation15], 16
    $region153: #{tpu_custom_call.1} parent=1 // pred_fallthru
      _
    // Predicated region
    $region154: #{tpu_custom_call.1} parent=1 // pred_check
      _
    $region155: #{tpu_custom_call.1} parent=1 // pred_check_branch
      %246 = sbr.rel (0) target = $region157
    $region156: #{tpu_custom_call.1} parent=1 // pred_region
      %247 = dma.done [#allocation15], 16
    $region157: #{tpu_custom_call.1} parent=1 // pred_fallthru
      _
    // Predicated region
    $region158: #{tpu_custom_call.1} parent=1 // pred_check
      _
    $region159: #{tpu_custom_call.1} parent=1 // pred_check_branch
      %249 = sbr.rel (0) target = $region161
    $region160: #{tpu_custom_call.1} parent=1 // pred_region
      %250 = dma.done [#allocation18], 16
    $region161: #{tpu_custom_call.1} parent=1 // pred_fallthru
      _
    // Predicated region
    $region162: #{tpu_custom_call.1} parent=1 // pred_check
      _
    $region163: #{tpu_custom_call.1} parent=1 // pred_check_branch
      %252 = sbr.rel (0) target = $region165
    $region164: #{tpu_custom_call.1} parent=1 // pred_region
      %253 = dma.done [#allocation18], 16
    $region165: #{tpu_custom_call.1} parent=1 // pred_fallthru
      _
    %v254 = vld [vmem:[%s3] sm:$0xff]
    %v255 = vld [vmem:[%s3 + $0x8] sm:$0xff]
    %v256 = vld [vmem:[%s9] sm:$0xff]
    %v257 = vld [vmem:[%s9 + $0x8] sm:$0xff]
    %v258 = vld [vmem:[%s13] sm:$0xff]
    %v259 = vld [vmem:[%s13 + $0x8] sm:$0xff]
    %v260 = vld [vmem:[%s13 + $0x10] sm:$0xff]
    %v261 = vld [vmem:[%s13 + $0x18] sm:$0xff]
    %v262 = vld [vmem:[#allocation8] sm:$0x1]
    %v264 = vlaneseq
    %v265 = vshrl.u32 %v264, 7
    %v266 = vsub.s32 0, %v265
    %v267 = vrot.slane %v262, %v266
    %vm269 = vcmask 261120
    %v271 = vsel %vm269, %v254, 0
    %v274 = vsel %vm269, %v255, 0
    %276 = vmatprep.subr.mxu0 0.0
    %277 = vmatpush1.msra.mxu0 0.0
    %278 = vmatprep.subr.mxu0 0.0
    %279 = vmatpush1.msra.mxu0 0.0
    %280 = vmatprep.subr.mxu0 0.0
    %281 = vmatpush1.msra.mxu0 0.0
    %282 = vmatprep.subr.mxu0 0.0
    %283 = vmatpush1.msra.mxu0 0.0
    %284 = vmatprep.subr.mxu0 0.0
    %285 = vmatpush1.msra.mxu0 0.0
    %286 = vmatprep.subr.mxu0 0.0
    %287 = vmatpush1.msra.mxu0 0.0
    %288 = vmatprep.subr.mxu0 0.0
    %289 = vmatpush1.msra.mxu0 0.0
    %290 = vmatprep.subr.mxu0 0.0
    %291 = vmatpush1.msra.mxu0 0.0
    %292 = vmatprep.subr.mxu0 0.0
    %293 = vmatpush1.msra.mxu0 0.0
    %294 = vmatprep.subr.mxu0 0.0
    %295 = vmatpush1.msra.mxu0 0.0
    %296 = vmatprep.subr.mxu0 0.0
    %297 = vmatpush1.msra.mxu0 0.0
    %298 = vmatprep.subr.mxu0 0.0
    %299 = vmatpush1.msra.mxu0 0.0
    %300 = vmatprep.subr.mxu0 0.0
    %301 = vmatpush1.msra.mxu0 %v261
    %302 = vmatprep.subr.mxu0 0.0
    %303 = vmatpush1.msra.mxu0 %v260
    %304 = vmatprep.subr.mxu0 0.0
    %305 = vmatpush1.msra.mxu0 %v259
    %306 = vmatprep.subr.mxu0 0.0
    %307 = vmatpush1.msra.mxu0 %v258
    %308 = vmatprep.subr.mxu0 0.0
    %309 = vmatpush2.msra.mxu0 0.0
    %310 = vmatprep.subr.mxu0 0.0
    %311 = vmatpush2.msra.mxu0 0.0
    %312 = vmatprep.subr.mxu0 0.0
    %313 = vmatpush2.msra.mxu0 0.0
    %314 = vmatprep.subr.mxu0 0.0
    %315 = vmatpush2.msra.mxu0 0.0
    %316 = vmatprep.subr.mxu0 0.0
    %317 = vmatpush2.msra.mxu0 0.0
    %318 = vmatprep.subr.mxu0 0.0
    %319 = vmatpush2.msra.mxu0 0.0
    %320 = vmatprep.subr.mxu0 0.0
    %321 = vmatpush2.msra.mxu0 0.0
    %322 = vmatprep.subr.mxu0 0.0
    %323 = vmatpush2.msra.mxu0 0.0
    %324 = vmatprep.subr.mxu0 0.0
    %325 = vmatpush2.msra.mxu0 0.0
    %326 = vmatprep.subr.mxu0 0.0
    %327 = vmatpush2.msra.mxu0 0.0
    %328 = vmatprep.subr.mxu0 0.0
    %329 = vmatpush2.msra.mxu0 0.0
    %330 = vmatprep.subr.mxu0 0.0
    %331 = vmatpush2.msra.mxu0 0.0
    %332 = vmatprep.subr.mxu0 0.0
    %333 = vmatpush2.msra.mxu0 0.0
    %334 = vmatprep.subr.mxu0 0.0
    %335 = vmatpush2.msra.mxu0 0.0
    %336 = vmatprep.subr.mxu0 0.0
    %337 = vmatpush2.msra.mxu0 0.0
    %338 = vmatprep.subr.mxu0 0.0
    %339 = vmatpush2.msra.mxu0 0.0
    %340 = vmatprep.mubr.f32.mxu0 0.0
    %341 = vmatmul.mubr.f32.gmra.mxu0 %v271
    %v342 = vpop.f32.mrf.mxu0
    %v343 = vadd.f32 %v267, %v342
    %v344 = vpop.f32.mrf.mxu0
    %345 = vmatprep.mubr.f32.mxu0 0.0
    %346 = vmatmul.mubr.f32.gmra.mxu0 %v274
    %v347 = vpop.f32.mrf.mxu0
    %v348 = vadd.f32 %v267, %v347
    %v349 = vpop.f32.mrf.mxu0
    %350 = vdwg.mxu0
    %v351 = vld [vmem:[%s17] sm:$0xff]
    %v352 = vld [vmem:[%s17 + $0x8] sm:$0xff]
    %v353 = vld [vmem:[%s17 + $0x10] sm:$0xff]
    %v354 = vld [vmem:[%s17 + $0x18] sm:$0xff]
    %v355 = vld [vmem:[#allocation10] sm:$0x1]
    %v357 = vlaneseq
    %v358 = vshrl.u32 %v357, 7
    %v359 = vsub.s32 0, %v358
    %v360 = vrot.slane %v355, %v359
    %362 = vmatprep.subr.mxu0 0.0
    %363 = vmatpush1.msra.mxu0 0.0
    %364 = vmatprep.subr.mxu0 0.0
    %365 = vmatpush1.msra.mxu0 0.0
    %366 = vmatprep.subr.mxu0 0.0
    %367 = vmatpush1.msra.mxu0 0.0
    %368 = vmatprep.subr.mxu0 0.0
    %369 = vmatpush1.msra.mxu0 0.0
    %370 = vmatprep.subr.mxu0 0.0
    %371 = vmatpush1.msra.mxu0 0.0
    %372 = vmatprep.subr.mxu0 0.0
    %373 = vmatpush1.msra.mxu0 0.0
    %374 = vmatprep.subr.mxu0 0.0
    %375 = vmatpush1.msra.mxu0 0.0
    %376 = vmatprep.subr.mxu0 0.0
    %377 = vmatpush1.msra.mxu0 0.0
    %378 = vmatprep.subr.mxu0 0.0
    %379 = vmatpush1.msra.mxu0 0.0
    %380 = vmatprep.subr.mxu0 0.0
    %381 = vmatpush1.msra.mxu0 0.0
    %382 = vmatprep.subr.mxu0 0.0
    %383 = vmatpush1.msra.mxu0 0.0
    %384 = vmatprep.subr.mxu0 0.0
    %385 = vmatpush1.msra.mxu0 0.0
    %386 = vmatprep.subr.mxu0 0.0
    %387 = vmatpush1.msra.mxu0 %v354
    %388 = vmatprep.subr.mxu0 0.0
    %389 = vmatpush1.msra.mxu0 %v353
    %390 = vmatprep.subr.mxu0 0.0
    %391 = vmatpush1.msra.mxu0 %v352
    %392 = vmatprep.subr.mxu0 0.0
    %393 = vmatpush1.msra.mxu0 %v351
    %394 = vmatprep.subr.mxu0 0.0
    %395 = vmatpush2.msra.mxu0 0.0
    %396 = vmatprep.subr.mxu0 0.0
    %397 = vmatpush2.msra.mxu0 0.0
    %398 = vmatprep.subr.mxu0 0.0
    %399 = vmatpush2.msra.mxu0 0.0
    %400 = vmatprep.subr.mxu0 0.0
    %401 = vmatpush2.msra.mxu0 0.0
    %402 = vmatprep.subr.mxu0 0.0
    %403 = vmatpush2.msra.mxu0 0.0
    %404 = vmatprep.subr.mxu0 0.0
    %405 = vmatpush2.msra.mxu0 0.0
    %406 = vmatprep.subr.mxu0 0.0
    %407 = vmatpush2.msra.mxu0 0.0
    %408 = vmatprep.subr.mxu0 0.0
    %409 = vmatpush2.msra.mxu0 0.0
    %410 = vmatprep.subr.mxu0 0.0
    %411 = vmatpush2.msra.mxu0 0.0
    %412 = vmatprep.subr.mxu0 0.0
    %413 = vmatpush2.msra.mxu0 0.0
    %414 = vmatprep.subr.mxu0 0.0
    %415 = vmatpush2.msra.mxu0 0.0
    %416 = vmatprep.subr.mxu0 0.0
    %417 = vmatpush2.msra.mxu0 0.0
    %418 = vmatprep.subr.mxu0 0.0
    %419 = vmatpush2.msra.mxu0 0.0
    %420 = vmatprep.subr.mxu0 0.0
    %421 = vmatpush2.msra.mxu0 0.0
    %422 = vmatprep.subr.mxu0 0.0
    %423 = vmatpush2.msra.mxu0 0.0
    %424 = vmatprep.subr.mxu0 0.0
    %425 = vmatpush2.msra.mxu0 0.0
    %426 = vmatprep.mubr.f32.mxu0 0.0
    %427 = vmatmul.mubr.f32.gmra.mxu0 %v271
    %v428 = vpop.f32.mrf.mxu0
    %v429 = vadd.f32 %v360, %v428
    %v430 = vpop.f32.mrf.mxu0
    %431 = vmatprep.mubr.f32.mxu0 0.0
    %432 = vmatmul.mubr.f32.gmra.mxu0 %v274
    %v433 = vpop.f32.mrf.mxu0
    %v434 = vadd.f32 %v360, %v433
    %v435 = vpop.f32.mrf.mxu0
    %436 = vdwg.mxu0
    %v437 = vld [vmem:[%s21] sm:$0xff]
    %v438 = vld [vmem:[%s21 + $0x8] sm:$0xff]
    %v439 = vld [vmem:[%s21 + $0x10] sm:$0xff]
    %v440 = vld [vmem:[%s21 + $0x18] sm:$0xff]
    %v441 = vld [vmem:[#allocation11] sm:$0x1]
    %v443 = vlaneseq
    %v444 = vshrl.u32 %v443, 7
    %v445 = vsub.s32 0, %v444
    %v446 = vrot.slane %v441, %v445
    %448 = vmatprep.subr.mxu0 0.0
    %449 = vmatpush1.msra.mxu0 0.0
    %450 = vmatprep.subr.mxu0 0.0
    %451 = vmatpush1.msra.mxu0 0.0
    %452 = vmatprep.subr.mxu0 0.0
    %453 = vmatpush1.msra.mxu0 0.0
    %454 = vmatprep.subr.mxu0 0.0
    %455 = vmatpush1.msra.mxu0 0.0
    %456 = vmatprep.subr.mxu0 0.0
    %457 = vmatpush1.msra.mxu0 0.0
    %458 = vmatprep.subr.mxu0 0.0
    %459 = vmatpush1.msra.mxu0 0.0
    %460 = vmatprep.subr.mxu0 0.0
    %461 = vmatpush1.msra.mxu0 0.0
    %462 = vmatprep.subr.mxu0 0.0
    %463 = vmatpush1.msra.mxu0 0.0
    %464 = vmatprep.subr.mxu0 0.0
    %465 = vmatpush1.msra.mxu0 0.0
    %466 = vmatprep.subr.mxu0 0.0
    %467 = vmatpush1.msra.mxu0 0.0
    %468 = vmatprep.subr.mxu0 0.0
    %469 = vmatpush1.msra.mxu0 0.0
    %470 = vmatprep.subr.mxu0 0.0
    %471 = vmatpush1.msra.mxu0 0.0
    %472 = vmatprep.subr.mxu0 0.0
    %473 = vmatpush1.msra.mxu0 %v440
    %474 = vmatprep.subr.mxu0 0.0
    %475 = vmatpush1.msra.mxu0 %v439
    %476 = vmatprep.subr.mxu0 0.0
    %477 = vmatpush1.msra.mxu0 %v438
    %478 = vmatprep.subr.mxu0 0.0
    %479 = vmatpush1.msra.mxu0 %v437
    %480 = vmatprep.subr.mxu0 0.0
    %481 = vmatpush2.msra.mxu0 0.0
    %482 = vmatprep.subr.mxu0 0.0
    %483 = vmatpush2.msra.mxu0 0.0
    %484 = vmatprep.subr.mxu0 0.0
    %485 = vmatpush2.msra.mxu0 0.0
    %486 = vmatprep.subr.mxu0 0.0
    %487 = vmatpush2.msra.mxu0 0.0
    %488 = vmatprep.subr.mxu0 0.0
    %489 = vmatpush2.msra.mxu0 0.0
    %490 = vmatprep.subr.mxu0 0.0
    %491 = vmatpush2.msra.mxu0 0.0
    %492 = vmatprep.subr.mxu0 0.0
    %493 = vmatpush2.msra.mxu0 0.0
    %494 = vmatprep.subr.mxu0 0.0
    %495 = vmatpush2.msra.mxu0 0.0
    %496 = vmatprep.subr.mxu0 0.0
    %497 = vmatpush2.msra.mxu0 0.0
    %498 = vmatprep.subr.mxu0 0.0
    %499 = vmatpush2.msra.mxu0 0.0
    %500 = vmatprep.subr.mxu0 0.0
    %501 = vmatpush2.msra.mxu0 0.0
    %502 = vmatprep.subr.mxu0 0.0
    %503 = vmatpush2.msra.mxu0 0.0
    %504 = vmatprep.subr.mxu0 0.0
    %505 = vmatpush2.msra.mxu0 0.0
    %506 = vmatprep.subr.mxu0 0.0
    %507 = vmatpush2.msra.mxu0 0.0
    %508 = vmatprep.subr.mxu0 0.0
    %509 = vmatpush2.msra.mxu0 0.0
    %510 = vmatprep.subr.mxu0 0.0
    %511 = vmatpush2.msra.mxu0 0.0
    %512 = vmatprep.mubr.f32.mxu0 0.0
    %513 = vmatmul.mubr.f32.gmra.mxu0 %v271
    %v514 = vpop.f32.mrf.mxu0
    %v515 = vadd.f32 %v446, %v514
    %v516 = vpop.f32.mrf.mxu0
    %517 = vmatprep.mubr.f32.mxu0 0.0
    %518 = vmatmul.mubr.f32.gmra.mxu0 %v274
    %v519 = vpop.f32.mrf.mxu0
    %v520 = vadd.f32 %v446, %v519
    %v521 = vpop.f32.mrf.mxu0
    %522 = vdwg.mxu0
    %v523 = vmul.f32 %v343, 0.35355338
    %v524 = vmul.f32 %v348, 0.35355338
    %v525 = vld [vmem:[%s25] sm:$0xff]
    %v526 = vld [vmem:[%s25 + $0x8] sm:$0xff]
    %v527 = vld [vmem:[%s25 + $0x10] sm:$0xff]
    %v528 = vld [vmem:[%s25 + $0x18] sm:$0xff]
    %vm529 = vcmask 64512
    %v531 = vsel %vm529, %v523, 0
    %v534 = vsel %vm529, %v524, 0
    %v537 = vsel %vm529, %v429, 0
    %v540 = vsel %vm529, %v434, 0
    %542 = vmatprep.subr.mxu0 0.0
    %543 = vmatpush1.xpose.msra.mxu0 0.0
    %544 = vmatprep.subr.mxu0 0.0
    %545 = vmatpush1.xpose.msra.mxu0 0.0
    %546 = vmatprep.subr.mxu0 0.0
    %547 = vmatpush1.xpose.msra.mxu0 0.0
    %548 = vmatprep.subr.mxu0 0.0
    %549 = vmatpush1.xpose.msra.mxu0 0.0
    %550 = vmatprep.subr.mxu0 0.0
    %551 = vmatpush1.xpose.msra.mxu0 0.0
    %552 = vmatprep.subr.mxu0 0.0
    %553 = vmatpush1.xpose.msra.mxu0 0.0
    %554 = vmatprep.subr.mxu0 0.0
    %555 = vmatpush1.xpose.msra.mxu0 0.0
    %556 = vmatprep.subr.mxu0 0.0
    %557 = vmatpush1.xpose.msra.mxu0 0.0
    %558 = vmatprep.subr.mxu0 0.0
    %559 = vmatpush1.xpose.msra.mxu0 0.0
    %560 = vmatprep.subr.mxu0 0.0
    %561 = vmatpush1.xpose.msra.mxu0 0.0
    %562 = vmatprep.subr.mxu0 0.0
    %563 = vmatpush1.xpose.msra.mxu0 0.0
    %564 = vmatprep.subr.mxu0 0.0
    %565 = vmatpush1.xpose.msra.mxu0 0.0
    %566 = vmatprep.subr.mxu0 0.0
    %567 = vmatpush1.xpose.msra.mxu0 0.0
    %568 = vmatprep.subr.mxu0 0.0
    %569 = vmatpush1.xpose.msra.mxu0 0.0
    %570 = vmatprep.subr.mxu0 0.0
    %571 = vmatpush1.xpose.msra.mxu0 %v540
    %572 = vmatprep.subr.mxu0 0.0
    %573 = vmatpush1.xpose.msra.mxu0 %v537
    %574 = vmatprep.subr.mxu0 0.0
    %575 = vmatpush2.xpose.msra.mxu0 0.0
    %576 = vmatprep.subr.mxu0 0.0
    %577 = vmatpush2.xpose.msra.mxu0 0.0
    %578 = vmatprep.subr.mxu0 0.0
    %579 = vmatpush2.xpose.msra.mxu0 0.0
    %580 = vmatprep.subr.mxu0 0.0
    %581 = vmatpush2.xpose.msra.mxu0 0.0
    %582 = vmatprep.subr.mxu0 0.0
    %583 = vmatpush2.xpose.msra.mxu0 0.0
    %584 = vmatprep.subr.mxu0 0.0
    %585 = vmatpush2.xpose.msra.mxu0 0.0
    %586 = vmatprep.subr.mxu0 0.0
    %587 = vmatpush2.xpose.msra.mxu0 0.0
    %588 = vmatprep.subr.mxu0 0.0
    %589 = vmatpush2.xpose.msra.mxu0 0.0
    %590 = vmatprep.subr.mxu0 0.0
    %591 = vmatpush2.xpose.msra.mxu0 0.0
    %592 = vmatprep.subr.mxu0 0.0
    %593 = vmatpush2.xpose.msra.mxu0 0.0
    %594 = vmatprep.subr.mxu0 0.0
    %595 = vmatpush2.xpose.msra.mxu0 0.0
    %596 = vmatprep.subr.mxu0 0.0
    %597 = vmatpush2.xpose.msra.mxu0 0.0
    %598 = vmatprep.subr.mxu0 0.0
    %599 = vmatpush2.xpose.msra.mxu0 0.0
    %600 = vmatprep.subr.mxu0 0.0
    %601 = vmatpush2.xpose.msra.mxu0 0.0
    %602 = vmatprep.subr.mxu0 0.0
    %603 = vmatpush2.xpose.msra.mxu0 0.0
    %604 = vmatprep.subr.mxu0 0.0
    %605 = vmatpush2.xpose.msra.mxu0 0.0
    %606 = vmatprep.mubr.f32.mxu0 0.0
    %607 = vmatmul.mubr.f32.gmra.mxu0 %v531
    %v608 = vpop.f32.mrf.mxu0
    %v609 = vadd.f32 %v256, %v608
    %v610 = vpop.f32.mrf.mxu0
    %611 = vmatprep.mubr.f32.mxu0 0.0
    %612 = vmatmul.mubr.f32.gmra.mxu0 %v534
    %v613 = vpop.f32.mrf.mxu0
    %v614 = vadd.f32 %v257, %v613
    %v615 = vpop.f32.mrf.mxu0
    %616 = vdwg.mxu0
    %vm617 = vcmask 130048
    %v618 = vsel %vm617, %v609, -inf
    %619 = vmax.xlane.f32.xlu0 %v618
    %v620 = vpop.xlane.xlu0 %619
    %v621 = vsel %vm617, %v614, -inf
    %622 = vmax.xlane.f32.xlu0 %v621
    %v623 = vpop.xlane.xlu0 %622
    %v624 = vsub.f32 %v609, %v620
    %v625 = vsub.f32 %v614, %v623
    %v626 = vmul.f32 %v624, 1.442695
    %v627 = vpow.pop %v626
    %v628 = vmul.f32 %v625, 1.442695
    %v629 = vpow.pop %v628
    %v630 = vsel %vm617, %v627, 0.0
    %631 = vadd.xlane.f32.xlu0 %v630
    %v632 = vpop.xlane.xlu0 %631
    %v633 = vsel %vm617, %v629, 0.0
    %634 = vadd.xlane.f32.xlu0 %v633
    %v635 = vpop.xlane.xlu0 %634
    %v636 = vrcp.pop %v632
    %v637 = vrcp.pop %v635
    %v638 = vmul.f32 %v627, %v636
    %v639 = vmul.f32 %v629, %v637
    %v641 = vsel %vm617, %v638, 0
    %v644 = vsel %vm617, %v639, 0
    %646 = vmatprep.subr.mxu0 0.0
    %647 = vmatpush1.msra.mxu0 0.0
    %648 = vmatprep.subr.mxu0 0.0
    %649 = vmatpush1.msra.mxu0 0.0
    %650 = vmatprep.subr.mxu0 0.0
    %651 = vmatpush1.msra.mxu0 0.0
    %652 = vmatprep.subr.mxu0 0.0
    %653 = vmatpush1.msra.mxu0 0.0
    %654 = vmatprep.subr.mxu0 0.0
    %655 = vmatpush1.msra.mxu0 0.0
    %656 = vmatprep.subr.mxu0 0.0
    %657 = vmatpush1.msra.mxu0 0.0
    %658 = vmatprep.subr.mxu0 0.0
    %659 = vmatpush1.msra.mxu0 0.0
    %660 = vmatprep.subr.mxu0 0.0
    %661 = vmatpush1.msra.mxu0 0.0
    %662 = vmatprep.subr.mxu0 0.0
    %663 = vmatpush1.msra.mxu0 0.0
    %664 = vmatprep.subr.mxu0 0.0
    %665 = vmatpush1.msra.mxu0 0.0
    %666 = vmatprep.subr.mxu0 0.0
    %667 = vmatpush1.msra.mxu0 0.0
    %668 = vmatprep.subr.mxu0 0.0
    %669 = vmatpush1.msra.mxu0 0.0
    %670 = vmatprep.subr.mxu0 0.0
    %671 = vmatpush1.msra.mxu0 0.0
    %672 = vmatprep.subr.mxu0 0.0
    %673 = vmatpush1.msra.mxu0 0.0
    %674 = vmatprep.subr.mxu0 0.0
    %675 = vmatpush1.msra.mxu0 %v520
    %676 = vmatprep.subr.mxu0 0.0
    %677 = vmatpush1.msra.mxu0 %v515
    %678 = vmatprep.subr.mxu0 0.0
    %679 = vmatpush2.msra.mxu0 0.0
    %680 = vmatprep.subr.mxu0 0.0
    %681 = vmatpush2.msra.mxu0 0.0
    %682 = vmatprep.subr.mxu0 0.0
    %683 = vmatpush2.msra.mxu0 0.0
    %684 = vmatprep.subr.mxu0 0.0
    %685 = vmatpush2.msra.mxu0 0.0
    %686 = vmatprep.subr.mxu0 0.0
    %687 = vmatpush2.msra.mxu0 0.0
    %688 = vmatprep.subr.mxu0 0.0
    %689 = vmatpush2.msra.mxu0 0.0
    %690 = vmatprep.subr.mxu0 0.0
    %691 = vmatpush2.msra.mxu0 0.0
    %692 = vmatprep.subr.mxu0 0.0
    %693 = vmatpush2.msra.mxu0 0.0
    %694 = vmatprep.subr.mxu0 0.0
    %695 = vmatpush2.msra.mxu0 0.0
    %696 = vmatprep.subr.mxu0 0.0
    %697 = vmatpush2.msra.mxu0 0.0
    %698 = vmatprep.subr.mxu0 0.0
    %699 = vmatpush2.msra.mxu0 0.0
    %700 = vmatprep.subr.mxu0 0.0
    %701 = vmatpush2.msra.mxu0 0.0
    %702 = vmatprep.subr.mxu0 0.0
    %703 = vmatpush2.msra.mxu0 0.0
    %704 = vmatprep.subr.mxu0 0.0
    %705 = vmatpush2.msra.mxu0 0.0
    %706 = vmatprep.subr.mxu0 0.0
    %707 = vmatpush2.msra.mxu0 0.0
    %708 = vmatprep.subr.mxu0 0.0
    %709 = vmatpush2.msra.mxu0 0.0
    %710 = vmatprep.mubr.f32.mxu0 0.0
    %711 = vmatmul.mubr.f32.gmra.mxu0 %v641
    %v712 = vpop.f32.mrf.mxu0
    %v713 = vadd.f32 0.0, %v712
    %v714 = vpop.f32.mrf.mxu0
    %715 = vmatprep.mubr.f32.mxu0 0.0
    %716 = vmatmul.mubr.f32.gmra.mxu0 %v644
    %v717 = vpop.f32.mrf.mxu0
    %v718 = vadd.f32 0.0, %v717
    %v719 = vpop.f32.mrf.mxu0
    %720 = vdwg.mxu0
    %721 = vrot.lane.b32.xlu0 %v523, 120
    %v722 = vpop.permute.xlu0 %721
    %723 = vrot.lane.b32.xlu0 %v524, 120
    %v724 = vpop.permute.xlu0 %723
    %725 = vrot.lane.b32.xlu0 %v429, 120
    %v726 = vpop.permute.xlu0 %725
    %727 = vrot.lane.b32.xlu0 %v434, 120
    %v728 = vpop.permute.xlu0 %727
    %v729 = vsel %vm529, %v722, 0
    %v731 = vsel %vm529, %v724, 0
    %v733 = vsel %vm529, %v726, 0
    %v735 = vsel %vm529, %v728, 0
    %737 = vmatprep.subr.mxu0 0.0
    %738 = vmatpush1.xpose.msra.mxu0 0.0
    %739 = vmatprep.subr.mxu0 0.0
    %740 = vmatpush1.xpose.msra.mxu0 0.0
    %741 = vmatprep.subr.mxu0 0.0
    %742 = vmatpush1.xpose.msra.mxu0 0.0
    %743 = vmatprep.subr.mxu0 0.0
    %744 = vmatpush1.xpose.msra.mxu0 0.0
    %745 = vmatprep.subr.mxu0 0.0
    %746 = vmatpush1.xpose.msra.mxu0 0.0
    %747 = vmatprep.subr.mxu0 0.0
    %748 = vmatpush1.xpose.msra.mxu0 0.0
    %749 = vmatprep.subr.mxu0 0.0
    %750 = vmatpush1.xpose.msra.mxu0 0.0
    %751 = vmatprep.subr.mxu0 0.0
    %752 = vmatpush1.xpose.msra.mxu0 0.0
    %753 = vmatprep.subr.mxu0 0.0
    %754 = vmatpush1.xpose.msra.mxu0 0.0
    %755 = vmatprep.subr.mxu0 0.0
    %756 = vmatpush1.xpose.msra.mxu0 0.0
    %757 = vmatprep.subr.mxu0 0.0
    %758 = vmatpush1.xpose.msra.mxu0 0.0
    %759 = vmatprep.subr.mxu0 0.0
    %760 = vmatpush1.xpose.msra.mxu0 0.0
    %761 = vmatprep.subr.mxu0 0.0
    %762 = vmatpush1.xpose.msra.mxu0 0.0
    %763 = vmatprep.subr.mxu0 0.0
    %764 = vmatpush1.xpose.msra.mxu0 0.0
    %765 = vmatprep.subr.mxu0 0.0
    %766 = vmatpush1.xpose.msra.mxu0 %v735
    %767 = vmatprep.subr.mxu0 0.0
    %768 = vmatpush1.xpose.msra.mxu0 %v733
    %769 = vmatprep.subr.mxu0 0.0
    %770 = vmatpush2.xpose.msra.mxu0 0.0
    %771 = vmatprep.subr.mxu0 0.0
    %772 = vmatpush2.xpose.msra.mxu0 0.0
    %773 = vmatprep.subr.mxu0 0.0
    %774 = vmatpush2.xpose.msra.mxu0 0.0
    %775 = vmatprep.subr.mxu0 0.0
    %776 = vmatpush2.xpose.msra.mxu0 0.0
    %777 = vmatprep.subr.mxu0 0.0
    %778 = vmatpush2.xpose.msra.mxu0 0.0
    %779 = vmatprep.subr.mxu0 0.0
    %780 = vmatpush2.xpose.msra.mxu0 0.0
    %781 = vmatprep.subr.mxu0 0.0
    %782 = vmatpush2.xpose.msra.mxu0 0.0
    %783 = vmatprep.subr.mxu0 0.0
    %784 = vmatpush2.xpose.msra.mxu0 0.0
    %785 = vmatprep.subr.mxu0 0.0
    %786 = vmatpush2.xpose.msra.mxu0 0.0
    %787 = vmatprep.subr.mxu0 0.0
    %788 = vmatpush2.xpose.msra.mxu0 0.0
    %789 = vmatprep.subr.mxu0 0.0
    %790 = vmatpush2.xpose.msra.mxu0 0.0
    %791 = vmatprep.subr.mxu0 0.0
    %792 = vmatpush2.xpose.msra.mxu0 0.0
    %793 = vmatprep.subr.mxu0 0.0
    %794 = vmatpush2.xpose.msra.mxu0 0.0
    %795 = vmatprep.subr.mxu0 0.0
    %796 = vmatpush2.xpose.msra.mxu0 0.0
    %797 = vmatprep.subr.mxu0 0.0
    %798 = vmatpush2.xpose.msra.mxu0 0.0
    %799 = vmatprep.subr.mxu0 0.0
    %800 = vmatpush2.xpose.msra.mxu0 0.0
    %801 = vmatprep.mubr.f32.mxu0 0.0
    %802 = vmatmul.mubr.f32.gmra.mxu0 %v729
    %v803 = vpop.f32.mrf.mxu0
    %v804 = vadd.f32 %v256, %v803
    %v805 = vpop.f32.mrf.mxu0
    %806 = vmatprep.mubr.f32.mxu0 0.0
    %807 = vmatmul.mubr.f32.gmra.mxu0 %v731
    %v808 = vpop.f32.mrf.mxu0
    %v809 = vadd.f32 %v257, %v808
    %v810 = vpop.f32.mrf.mxu0
    %811 = vdwg.mxu0
    %v812 = vsel %vm617, %v804, -inf
    %813 = vmax.xlane.f32.xlu0 %v812
    %v814 = vpop.xlane.xlu0 %813
    %v815 = vsel %vm617, %v809, -inf
    %816 = vmax.xlane.f32.xlu0 %v815
    %v817 = vpop.xlane.xlu0 %816
    %v818 = vsub.f32 %v804, %v814
    %v819 = vsub.f32 %v809, %v817
    %v820 = vmul.f32 %v818, 1.442695
    %v821 = vpow.pop %v820
    %v822 = vmul.f32 %v819, 1.442695
    %v823 = vpow.pop %v822
    %v824 = vsel %vm617, %v821, 0.0
    %825 = vadd.xlane.f32.xlu0 %v824
    %v826 = vpop.xlane.xlu0 %825
    %v827 = vsel %vm617, %v823, 0.0
    %828 = vadd.xlane.f32.xlu0 %v827
    %v829 = vpop.xlane.xlu0 %828
    %v830 = vrcp.pop %v826
    %v831 = vrcp.pop %v829
    %v832 = vmul.f32 %v821, %v830
    %v833 = vmul.f32 %v823, %v831
    %836 = vrot.lane.b32.xlu0 %v515, 120
    %v837 = vpop.permute.xlu0 %836
    %838 = vrot.lane.b32.xlu0 %v520, 120
    %v839 = vpop.permute.xlu0 %838
    %v843 = vsel %vm617, %v832, 0
    %v846 = vsel %vm617, %v833, 0
    %848 = vmatprep.subr.mxu0 0.0
    %849 = vmatpush1.msra.mxu0 0.0
    %850 = vmatprep.subr.mxu0 0.0
    %851 = vmatpush1.msra.mxu0 0.0
    %852 = vmatprep.subr.mxu0 0.0
    %853 = vmatpush1.msra.mxu0 0.0
    %854 = vmatprep.subr.mxu0 0.0
    %855 = vmatpush1.msra.mxu0 0.0
    %856 = vmatprep.subr.mxu0 0.0
    %857 = vmatpush1.msra.mxu0 0.0
    %858 = vmatprep.subr.mxu0 0.0
    %859 = vmatpush1.msra.mxu0 0.0
    %860 = vmatprep.subr.mxu0 0.0
    %861 = vmatpush1.msra.mxu0 0.0
    %862 = vmatprep.subr.mxu0 0.0
    %863 = vmatpush1.msra.mxu0 0.0
    %864 = vmatprep.subr.mxu0 0.0
    %865 = vmatpush1.msra.mxu0 0.0
    %866 = vmatprep.subr.mxu0 0.0
    %867 = vmatpush1.msra.mxu0 0.0
    %868 = vmatprep.subr.mxu0 0.0
    %869 = vmatpush1.msra.mxu0 0.0
    %870 = vmatprep.subr.mxu0 0.0
    %871 = vmatpush1.msra.mxu0 0.0
    %872 = vmatprep.subr.mxu0 0.0
    %873 = vmatpush1.msra.mxu0 0.0
    %874 = vmatprep.subr.mxu0 0.0
    %875 = vmatpush1.msra.mxu0 0.0
    %876 = vmatprep.subr.mxu0 0.0
    %877 = vmatpush1.msra.mxu0 %v839
    %878 = vmatprep.subr.mxu0 0.0
    %879 = vmatpush1.msra.mxu0 %v837
    %880 = vmatprep.subr.mxu0 0.0
    %881 = vmatpush2.msra.mxu0 0.0
    %882 = vmatprep.subr.mxu0 0.0
    %883 = vmatpush2.msra.mxu0 0.0
    %884 = vmatprep.subr.mxu0 0.0
    %885 = vmatpush2.msra.mxu0 0.0
    %886 = vmatprep.subr.mxu0 0.0
    %887 = vmatpush2.msra.mxu0 0.0
    %888 = vmatprep.subr.mxu0 0.0
    %889 = vmatpush2.msra.mxu0 0.0
    %890 = vmatprep.subr.mxu0 0.0
    %891 = vmatpush2.msra.mxu0 0.0
    %892 = vmatprep.subr.mxu0 0.0
    %893 = vmatpush2.msra.mxu0 0.0
    %894 = vmatprep.subr.mxu0 0.0
    %895 = vmatpush2.msra.mxu0 0.0
    %896 = vmatprep.subr.mxu0 0.0
    %897 = vmatpush2.msra.mxu0 0.0
    %898 = vmatprep.subr.mxu0 0.0
    %899 = vmatpush2.msra.mxu0 0.0
    %900 = vmatprep.subr.mxu0 0.0
    %901 = vmatpush2.msra.mxu0 0.0
    %902 = vmatprep.subr.mxu0 0.0
    %903 = vmatpush2.msra.mxu0 0.0
    %904 = vmatprep.subr.mxu0 0.0
    %905 = vmatpush2.msra.mxu0 0.0
    %906 = vmatprep.subr.mxu0 0.0
    %907 = vmatpush2.msra.mxu0 0.0
    %908 = vmatprep.subr.mxu0 0.0
    %909 = vmatpush2.msra.mxu0 0.0
    %910 = vmatprep.subr.mxu0 0.0
    %911 = vmatpush2.msra.mxu0 0.0
    %912 = vmatprep.mubr.f32.mxu0 0.0
    %913 = vmatmul.mubr.f32.gmra.mxu0 %v843
    %v914 = vpop.f32.mrf.mxu0
    %v915 = vadd.f32 0.0, %v914
    %v916 = vpop.f32.mrf.mxu0
    %917 = vmatprep.mubr.f32.mxu0 0.0
    %918 = vmatmul.mubr.f32.gmra.mxu0 %v846
    %v919 = vpop.f32.mrf.mxu0
    %v920 = vadd.f32 0.0, %v919
    %v921 = vpop.f32.mrf.mxu0
    %922 = vdwg.mxu0
    %v924 = vsel %vm529, %v915, 0
    %v927 = vsel %vm529, %v920, 0
    %929 = vmatprep.subr.mxu0 0.0
    %930 = vmatpush1.msra.mxu0 0.0
    %931 = vmatprep.subr.mxu0 0.0
    %932 = vmatpush1.msra.mxu0 0.0
    %933 = vmatprep.subr.mxu0 0.0
    %934 = vmatpush1.msra.mxu0 0.0
    %935 = vmatprep.subr.mxu0 0.0
    %936 = vmatpush1.msra.mxu0 0.0
    %937 = vmatprep.subr.mxu0 0.0
    %938 = vmatpush1.msra.mxu0 0.0
    %939 = vmatprep.subr.mxu0 0.0
    %940 = vmatpush1.msra.mxu0 0.0
    %941 = vmatprep.subr.mxu0 0.0
    %942 = vmatpush1.msra.mxu0 0.0
    %943 = vmatprep.subr.mxu0 0.0
    %944 = vmatpush1.msra.mxu0 0.0
    %945 = vmatprep.subr.mxu0 0.0
    %946 = vmatpush1.msra.mxu0 0.0
    %947 = vmatprep.subr.mxu0 0.0
    %948 = vmatpush1.msra.mxu0 0.0
    %949 = vmatprep.subr.mxu0 0.0
    %950 = vmatpush1.msra.mxu0 0.0
    %951 = vmatprep.subr.mxu0 0.0
    %952 = vmatpush1.msra.mxu0 0.0
    %953 = vmatprep.subr.mxu0 0.0
    %954 = vmatpush1.msra.mxu0 0.0
    %955 = vmatprep.subr.mxu0 0.0
    %956 = vmatpush1.msra.mxu0 0.0
    %957 = vmatprep.subr.mxu0 0.0
    %958 = vmatpush1.msra.mxu0 0.0
    %959 = vmatprep.subr.mxu0 0.0
    %960 = vmatpush1.msra.mxu0 %v526
    %961 = vmatprep.subr.mxu0 0.0
    %962 = vmatpush2.msra.mxu0 0.0
    %963 = vmatprep.subr.mxu0 0.0
    %964 = vmatpush2.msra.mxu0 0.0
    %965 = vmatprep.subr.mxu0 0.0
    %966 = vmatpush2.msra.mxu0 0.0
    %967 = vmatprep.subr.mxu0 0.0
    %968 = vmatpush2.msra.mxu0 0.0
    %969 = vmatprep.subr.mxu0 0.0
    %970 = vmatpush2.msra.mxu0 0.0
    %971 = vmatprep.subr.mxu0 0.0
    %972 = vmatpush2.msra.mxu0 0.0
    %973 = vmatprep.subr.mxu0 0.0
    %974 = vmatpush2.msra.mxu0 0.0
    %975 = vmatprep.subr.mxu0 0.0
    %976 = vmatpush2.msra.mxu0 0.0
    %977 = vmatprep.subr.mxu0 0.0
    %978 = vmatpush2.msra.mxu0 0.0
    %979 = vmatprep.subr.mxu0 0.0
    %980 = vmatpush2.msra.mxu0 0.0
    %981 = vmatprep.subr.mxu0 0.0
    %982 = vmatpush2.msra.mxu0 0.0
    %983 = vmatprep.subr.mxu0 0.0
    %984 = vmatpush2.msra.mxu0 0.0
    %985 = vmatprep.subr.mxu0 0.0
    %986 = vmatpush2.msra.mxu0 0.0
    %987 = vmatprep.subr.mxu0 0.0
    %988 = vmatpush2.msra.mxu0 0.0
    %989 = vmatprep.subr.mxu0 0.0
    %990 = vmatpush2.msra.mxu0 0.0
    %991 = vmatprep.subr.mxu0 0.0
    %992 = vmatpush2.msra.mxu0 0.0
    %993 = vmatprep.mubr.f32.mxu0 0.0
    %994 = vmatmul.mubr.f32.gmra.mxu0 %v924
    %v995 = vpop.f32.mrf.mxu0
    %v996 = vadd.f32 0.0, %v995
    %v997 = vpop.f32.mrf.mxu0
    %998 = vmatprep.mubr.f32.mxu0 0.0
    %999 = vmatmul.mubr.f32.gmra.mxu0 %v927
    %v1000 = vpop.f32.mrf.mxu0
    %v1001 = vadd.f32 0.0, %v1000
    %v1002 = vpop.f32.mrf.mxu0
    %1003 = vdwg.mxu0
    %v1005 = vsel %vm529, %v713, 0
    %v1008 = vsel %vm529, %v718, 0
    %1010 = vmatprep.subr.mxu0 0.0
    %1011 = vmatpush1.msra.mxu0 0.0
    %1012 = vmatprep.subr.mxu0 0.0
    %1013 = vmatpush1.msra.mxu0 0.0
    %1014 = vmatprep.subr.mxu0 0.0
    %1015 = vmatpush1.msra.mxu0 0.0
    %1016 = vmatprep.subr.mxu0 0.0
    %1017 = vmatpush1.msra.mxu0 0.0
    %1018 = vmatprep.subr.mxu0 0.0
    %1019 = vmatpush1.msra.mxu0 0.0
    %1020 = vmatprep.subr.mxu0 0.0
    %1021 = vmatpush1.msra.mxu0 0.0
    %1022 = vmatprep.subr.mxu0 0.0
    %1023 = vmatpush1.msra.mxu0 0.0
    %1024 = vmatprep.subr.mxu0 0.0
    %1025 = vmatpush1.msra.mxu0 0.0
    %1026 = vmatprep.subr.mxu0 0.0
    %1027 = vmatpush1.msra.mxu0 0.0
    %1028 = vmatprep.subr.mxu0 0.0
    %1029 = vmatpush1.msra.mxu0 0.0
    %1030 = vmatprep.subr.mxu0 0.0
    %1031 = vmatpush1.msra.mxu0 0.0
    %1032 = vmatprep.subr.mxu0 0.0
    %1033 = vmatpush1.msra.mxu0 0.0
    %1034 = vmatprep.subr.mxu0 0.0
    %1035 = vmatpush1.msra.mxu0 0.0
    %1036 = vmatprep.subr.mxu0 0.0
    %1037 = vmatpush1.msra.mxu0 0.0
    %1038 = vmatprep.subr.mxu0 0.0
    %1039 = vmatpush1.msra.mxu0 0.0
    %1040 = vmatprep.subr.mxu0 0.0
    %1041 = vmatpush1.msra.mxu0 %v525
    %1042 = vmatprep.subr.mxu0 0.0
    %1043 = vmatpush2.msra.mxu0 0.0
    %1044 = vmatprep.subr.mxu0 0.0
    %1045 = vmatpush2.msra.mxu0 0.0
    %1046 = vmatprep.subr.mxu0 0.0
    %1047 = vmatpush2.msra.mxu0 0.0
    %1048 = vmatprep.subr.mxu0 0.0
    %1049 = vmatpush2.msra.mxu0 0.0
    %1050 = vmatprep.subr.mxu0 0.0
    %1051 = vmatpush2.msra.mxu0 0.0
    %1052 = vmatprep.subr.mxu0 0.0
    %1053 = vmatpush2.msra.mxu0 0.0
    %1054 = vmatprep.subr.mxu0 0.0
    %1055 = vmatpush2.msra.mxu0 0.0
    %1056 = vmatprep.subr.mxu0 0.0
    %1057 = vmatpush2.msra.mxu0 0.0
    %1058 = vmatprep.subr.mxu0 0.0
    %1059 = vmatpush2.msra.mxu0 0.0
    %1060 = vmatprep.subr.mxu0 0.0
    %1061 = vmatpush2.msra.mxu0 0.0
    %1062 = vmatprep.subr.mxu0 0.0
    %1063 = vmatpush2.msra.mxu0 0.0
    %1064 = vmatprep.subr.mxu0 0.0
    %1065 = vmatpush2.msra.mxu0 0.0
    %1066 = vmatprep.subr.mxu0 0.0
    %1067 = vmatpush2.msra.mxu0 0.0
    %1068 = vmatprep.subr.mxu0 0.0
    %1069 = vmatpush2.msra.mxu0 0.0
    %1070 = vmatprep.subr.mxu0 0.0
    %1071 = vmatpush2.msra.mxu0 0.0
    %1072 = vmatprep.subr.mxu0 0.0
    %1073 = vmatpush2.msra.mxu0 0.0
    %1074 = vmatprep.mubr.f32.mxu0 0.0
    %1075 = vmatmul.mubr.f32.gmra.mxu0 %v1005
    %v1076 = vpop.f32.mrf.mxu0
    %v1077 = vadd.f32 %v996, %v1076
    %v1078 = vpop.f32.mrf.mxu0
    %1079 = vmatprep.mubr.f32.mxu0 0.0
    %1080 = vmatmul.mubr.f32.gmra.mxu0 %v1008
    %v1081 = vpop.f32.mrf.mxu0
    %v1082 = vadd.f32 %v1001, %v1081
    %v1083 = vpop.f32.mrf.mxu0
    %1084 = vdwg.mxu0
    %1085 = vrot.lane.b32.xlu0 %v523, 112
    %v1086 = vpop.permute.xlu0 %1085
    %1087 = vrot.lane.b32.xlu0 %v524, 112
    %v1088 = vpop.permute.xlu0 %1087
    %1089 = vrot.lane.b32.xlu0 %v429, 112
    %v1090 = vpop.permute.xlu0 %1089
    %1091 = vrot.lane.b32.xlu0 %v434, 112
    %v1092 = vpop.permute.xlu0 %1091
    %v1093 = vsel %vm529, %v1086, 0
    %v1095 = vsel %vm529, %v1088, 0
    %v1097 = vsel %vm529, %v1090, 0
    %v1099 = vsel %vm529, %v1092, 0
    %1101 = vmatprep.subr.mxu0 0.0
    %1102 = vmatpush1.xpose.msra.mxu0 0.0
    %1103 = vmatprep.subr.mxu0 0.0
    %1104 = vmatpush1.xpose.msra.mxu0 0.0
    %1105 = vmatprep.subr.mxu0 0.0
    %1106 = vmatpush1.xpose.msra.mxu0 0.0
    %1107 = vmatprep.subr.mxu0 0.0
    %1108 = vmatpush1.xpose.msra.mxu0 0.0
    %1109 = vmatprep.subr.mxu0 0.0
    %1110 = vmatpush1.xpose.msra.mxu0 0.0
    %1111 = vmatprep.subr.mxu0 0.0
    %1112 = vmatpush1.xpose.msra.mxu0 0.0
    %1113 = vmatprep.subr.mxu0 0.0
    %1114 = vmatpush1.xpose.msra.mxu0 0.0
    %1115 = vmatprep.subr.mxu0 0.0
    %1116 = vmatpush1.xpose.msra.mxu0 0.0
    %1117 = vmatprep.subr.mxu0 0.0
    %1118 = vmatpush1.xpose.msra.mxu0 0.0
    %1119 = vmatprep.subr.mxu0 0.0
    %1120 = vmatpush1.xpose.msra.mxu0 0.0
    %1121 = vmatprep.subr.mxu0 0.0
    %1122 = vmatpush1.xpose.msra.mxu0 0.0
    %1123 = vmatprep.subr.mxu0 0.0
    %1124 = vmatpush1.xpose.msra.mxu0 0.0
    %1125 = vmatprep.subr.mxu0 0.0
    %1126 = vmatpush1.xpose.msra.mxu0 0.0
    %1127 = vmatprep.subr.mxu0 0.0
    %1128 = vmatpush1.xpose.msra.mxu0 0.0
    %1129 = vmatprep.subr.mxu0 0.0
    %1130 = vmatpush1.xpose.msra.mxu0 %v1099
    %1131 = vmatprep.subr.mxu0 0.0
    %1132 = vmatpush1.xpose.msra.mxu0 %v1097
    %1133 = vmatprep.subr.mxu0 0.0
    %1134 = vmatpush2.xpose.msra.mxu0 0.0
    %1135 = vmatprep.subr.mxu0 0.0
    %1136 = vmatpush2.xpose.msra.mxu0 0.0
    %1137 = vmatprep.subr.mxu0 0.0
    %1138 = vmatpush2.xpose.msra.mxu0 0.0
    %1139 = vmatprep.subr.mxu0 0.0
    %1140 = vmatpush2.xpose.msra.mxu0 0.0
    %1141 = vmatprep.subr.mxu0 0.0
    %1142 = vmatpush2.xpose.msra.mxu0 0.0
    %1143 = vmatprep.subr.mxu0 0.0
    %1144 = vmatpush2.xpose.msra.mxu0 0.0
    %1145 = vmatprep.subr.mxu0 0.0
    %1146 = vmatpush2.xpose.msra.mxu0 0.0
    %1147 = vmatprep.subr.mxu0 0.0
    %1148 = vmatpush2.xpose.msra.mxu0 0.0
    %1149 = vmatprep.subr.mxu0 0.0
    %1150 = vmatpush2.xpose.msra.mxu0 0.0
    %1151 = vmatprep.subr.mxu0 0.0
    %1152 = vmatpush2.xpose.msra.mxu0 0.0
    %1153 = vmatprep.subr.mxu0 0.0
    %1154 = vmatpush2.xpose.msra.mxu0 0.0
    %1155 = vmatprep.subr.mxu0 0.0
    %1156 = vmatpush2.xpose.msra.mxu0 0.0
    %1157 = vmatprep.subr.mxu0 0.0
    %1158 = vmatpush2.xpose.msra.mxu0 0.0
    %1159 = vmatprep.subr.mxu0 0.0
    %1160 = vmatpush2.xpose.msra.mxu0 0.0
    %1161 = vmatprep.subr.mxu0 0.0
    %1162 = vmatpush2.xpose.msra.mxu0 0.0
    %1163 = vmatprep.subr.mxu0 0.0
    %1164 = vmatpush2.xpose.msra.mxu0 0.0
    %1165 = vmatprep.mubr.f32.mxu0 0.0
    %1166 = vmatmul.mubr.f32.gmra.mxu0 %v1093
    %v1167 = vpop.f32.mrf.mxu0
    %v1168 = vadd.f32 %v256, %v1167
    %v1169 = vpop.f32.mrf.mxu0
    %1170 = vmatprep.mubr.f32.mxu0 0.0
    %1171 = vmatmul.mubr.f32.gmra.mxu0 %v1095
    %v1172 = vpop.f32.mrf.mxu0
    %v1173 = vadd.f32 %v257, %v1172
    %v1174 = vpop.f32.mrf.mxu0
    %1175 = vdwg.mxu0
    %v1176 = vsel %vm617, %v1168, -inf
    %1177 = vmax.xlane.f32.xlu0 %v1176
    %v1178 = vpop.xlane.xlu0 %1177
    %v1179 = vsel %vm617, %v1173, -inf
    %1180 = vmax.xlane.f32.xlu0 %v1179
    %v1181 = vpop.xlane.xlu0 %1180
    %v1182 = vsub.f32 %v1168, %v1178
    %v1183 = vsub.f32 %v1173, %v1181
    %v1184 = vmul.f32 %v1182, 1.442695
    %v1185 = vpow.pop %v1184
    %v1186 = vmul.f32 %v1183, 1.442695
    %v1187 = vpow.pop %v1186
    %v1188 = vsel %vm617, %v1185, 0.0
    %1189 = vadd.xlane.f32.xlu0 %v1188
    %v1190 = vpop.xlane.xlu0 %1189
    %v1191 = vsel %vm617, %v1187, 0.0
    %1192 = vadd.xlane.f32.xlu0 %v1191
    %v1193 = vpop.xlane.xlu0 %1192
    %v1194 = vrcp.pop %v1190
    %v1195 = vrcp.pop %v1193
    %v1196 = vmul.f32 %v1185, %v1194
    %v1197 = vmul.f32 %v1187, %v1195
    %1198 = vrot.lane.b32.xlu0 %v515, 112
    %v1199 = vpop.permute.xlu0 %1198
    %1200 = vrot.lane.b32.xlu0 %v520, 112
    %v1201 = vpop.permute.xlu0 %1200
    %v1205 = vsel %vm617, %v1196, 0
    %v1208 = vsel %vm617, %v1197, 0
    %1210 = vmatprep.subr.mxu0 0.0
    %1211 = vmatpush1.msra.mxu0 0.0
    %1212 = vmatprep.subr.mxu0 0.0
    %1213 = vmatpush1.msra.mxu0 0.0
    %1214 = vmatprep.subr.mxu0 0.0
    %1215 = vmatpush1.msra.mxu0 0.0
    %1216 = vmatprep.subr.mxu0 0.0
    %1217 = vmatpush1.msra.mxu0 0.0
    %1218 = vmatprep.subr.mxu0 0.0
    %1219 = vmatpush1.msra.mxu0 0.0
    %1220 = vmatprep.subr.mxu0 0.0
    %1221 = vmatpush1.msra.mxu0 0.0
    %1222 = vmatprep.subr.mxu0 0.0
    %1223 = vmatpush1.msra.mxu0 0.0
    %1224 = vmatprep.subr.mxu0 0.0
    %1225 = vmatpush1.msra.mxu0 0.0
    %1226 = vmatprep.subr.mxu0 0.0
    %1227 = vmatpush1.msra.mxu0 0.0
    %1228 = vmatprep.subr.mxu0 0.0
    %1229 = vmatpush1.msra.mxu0 0.0
    %1230 = vmatprep.subr.mxu0 0.0
    %1231 = vmatpush1.msra.mxu0 0.0
    %1232 = vmatprep.subr.mxu0 0.0
    %1233 = vmatpush1.msra.mxu0 0.0
    %1234 = vmatprep.subr.mxu0 0.0
    %1235 = vmatpush1.msra.mxu0 0.0
    %1236 = vmatprep.subr.mxu0 0.0
    %1237 = vmatpush1.msra.mxu0 0.0
    %1238 = vmatprep.subr.mxu0 0.0
    %1239 = vmatpush1.msra.mxu0 %v1201
    %1240 = vmatprep.subr.mxu0 0.0
    %1241 = vmatpush1.msra.mxu0 %v1199
    %1242 = vmatprep.subr.mxu0 0.0
    %1243 = vmatpush2.msra.mxu0 0.0
    %1244 = vmatprep.subr.mxu0 0.0
    %1245 = vmatpush2.msra.mxu0 0.0
    %1246 = vmatprep.subr.mxu0 0.0
    %1247 = vmatpush2.msra.mxu0 0.0
    %1248 = vmatprep.subr.mxu0 0.0
    %1249 = vmatpush2.msra.mxu0 0.0
    %1250 = vmatprep.subr.mxu0 0.0
    %1251 = vmatpush2.msra.mxu0 0.0
    %1252 = vmatprep.subr.mxu0 0.0
    %1253 = vmatpush2.msra.mxu0 0.0
    %1254 = vmatprep.subr.mxu0 0.0
    %1255 = vmatpush2.msra.mxu0 0.0
    %1256 = vmatprep.subr.mxu0 0.0
    %1257 = vmatpush2.msra.mxu0 0.0
    %1258 = vmatprep.subr.mxu0 0.0
    %1259 = vmatpush2.msra.mxu0 0.0
    %1260 = vmatprep.subr.mxu0 0.0
    %1261 = vmatpush2.msra.mxu0 0.0
    %1262 = vmatprep.subr.mxu0 0.0
    %1263 = vmatpush2.msra.mxu0 0.0
    %1264 = vmatprep.subr.mxu0 0.0
    %1265 = vmatpush2.msra.mxu0 0.0
    %1266 = vmatprep.subr.mxu0 0.0
    %1267 = vmatpush2.msra.mxu0 0.0
    %1268 = vmatprep.subr.mxu0 0.0
    %1269 = vmatpush2.msra.mxu0 0.0
    %1270 = vmatprep.subr.mxu0 0.0
    %1271 = vmatpush2.msra.mxu0 0.0
    %1272 = vmatprep.subr.mxu0 0.0
    %1273 = vmatpush2.msra.mxu0 0.0
    %1274 = vmatprep.mubr.f32.mxu0 0.0
    %1275 = vmatmul.mubr.f32.gmra.mxu0 %v1205
    %v1276 = vpop.f32.mrf.mxu0
    %v1277 = vadd.f32 0.0, %v1276
    %v1278 = vpop.f32.mrf.mxu0
    %1279 = vmatprep.mubr.f32.mxu0 0.0
    %1280 = vmatmul.mubr.f32.gmra.mxu0 %v1208
    %v1281 = vpop.f32.mrf.mxu0
    %v1282 = vadd.f32 0.0, %v1281
    %v1283 = vpop.f32.mrf.mxu0
    %1284 = vdwg.mxu0
    %v1286 = vsel %vm529, %v1277, 0
    %v1289 = vsel %vm529, %v1282, 0
    %1291 = vmatprep.subr.mxu0 0.0
    %1292 = vmatpush1.msra.mxu0 0.0
    %1293 = vmatprep.subr.mxu0 0.0
    %1294 = vmatpush1.msra.mxu0 0.0
    %1295 = vmatprep.subr.mxu0 0.0
    %1296 = vmatpush1.msra.mxu0 0.0
    %1297 = vmatprep.subr.mxu0 0.0
    %1298 = vmatpush1.msra.mxu0 0.0
    %1299 = vmatprep.subr.mxu0 0.0
    %1300 = vmatpush1.msra.mxu0 0.0
    %1301 = vmatprep.subr.mxu0 0.0
    %1302 = vmatpush1.msra.mxu0 0.0
    %1303 = vmatprep.subr.mxu0 0.0
    %1304 = vmatpush1.msra.mxu0 0.0
    %1305 = vmatprep.subr.mxu0 0.0
    %1306 = vmatpush1.msra.mxu0 0.0
    %1307 = vmatprep.subr.mxu0 0.0
    %1308 = vmatpush1.msra.mxu0 0.0
    %1309 = vmatprep.subr.mxu0 0.0
    %1310 = vmatpush1.msra.mxu0 0.0
    %1311 = vmatprep.subr.mxu0 0.0
    %1312 = vmatpush1.msra.mxu0 0.0
    %1313 = vmatprep.subr.mxu0 0.0
    %1314 = vmatpush1.msra.mxu0 0.0
    %1315 = vmatprep.subr.mxu0 0.0
    %1316 = vmatpush1.msra.mxu0 0.0
    %1317 = vmatprep.subr.mxu0 0.0
    %1318 = vmatpush1.msra.mxu0 0.0
    %1319 = vmatprep.subr.mxu0 0.0
    %1320 = vmatpush1.msra.mxu0 0.0
    %1321 = vmatprep.subr.mxu0 0.0
    %1322 = vmatpush1.msra.mxu0 %v527
    %1323 = vmatprep.subr.mxu0 0.0
    %1324 = vmatpush2.msra.mxu0 0.0
    %1325 = vmatprep.subr.mxu0 0.0
    %1326 = vmatpush2.msra.mxu0 0.0
    %1327 = vmatprep.subr.mxu0 0.0
    %1328 = vmatpush2.msra.mxu0 0.0
    %1329 = vmatprep.subr.mxu0 0.0
    %1330 = vmatpush2.msra.mxu0 0.0
    %1331 = vmatprep.subr.mxu0 0.0
    %1332 = vmatpush2.msra.mxu0 0.0
    %1333 = vmatprep.subr.mxu0 0.0
    %1334 = vmatpush2.msra.mxu0 0.0
    %1335 = vmatprep.subr.mxu0 0.0
    %1336 = vmatpush2.msra.mxu0 0.0
    %1337 = vmatprep.subr.mxu0 0.0
    %1338 = vmatpush2.msra.mxu0 0.0
    %1339 = vmatprep.subr.mxu0 0.0
    %1340 = vmatpush2.msra.mxu0 0.0
    %1341 = vmatprep.subr.mxu0 0.0
    %1342 = vmatpush2.msra.mxu0 0.0
    %1343 = vmatprep.subr.mxu0 0.0
    %1344 = vmatpush2.msra.mxu0 0.0
    %1345 = vmatprep.subr.mxu0 0.0
    %1346 = vmatpush2.msra.mxu0 0.0
    %1347 = vmatprep.subr.mxu0 0.0
    %1348 = vmatpush2.msra.mxu0 0.0
    %1349 = vmatprep.subr.mxu0 0.0
    %1350 = vmatpush2.msra.mxu0 0.0
    %1351 = vmatprep.subr.mxu0 0.0
    %1352 = vmatpush2.msra.mxu0 0.0
    %1353 = vmatprep.subr.mxu0 0.0
    %1354 = vmatpush2.msra.mxu0 0.0
    %1355 = vmatprep.mubr.f32.mxu0 0.0
    %1356 = vmatmul.mubr.f32.gmra.mxu0 %v1286
    %v1357 = vpop.f32.mrf.mxu0
    %v1358 = vadd.f32 0.0, %v1357
    %v1359 = vpop.f32.mrf.mxu0
    %1360 = vmatprep.mubr.f32.mxu0 0.0
    %1361 = vmatmul.mubr.f32.gmra.mxu0 %v1289
    %v1362 = vpop.f32.mrf.mxu0
    %v1363 = vadd.f32 0.0, %v1362
    %v1364 = vpop.f32.mrf.mxu0
    %1365 = vdwg.mxu0
    %v1366 = vadd.f32 %v1077, %v1358
    %v1367 = vadd.f32 %v1082, %v1363
    %1368 = vrot.lane.b32.xlu0 %v523, 104
    %v1369 = vpop.permute.xlu0 %1368
    %1370 = vrot.lane.b32.xlu0 %v524, 104
    %v1371 = vpop.permute.xlu0 %1370
    %1372 = vrot.lane.b32.xlu0 %v429, 104
    %v1373 = vpop.permute.xlu0 %1372
    %1374 = vrot.lane.b32.xlu0 %v434, 104
    %v1375 = vpop.permute.xlu0 %1374
    %v1376 = vsel %vm529, %v1369, 0
    %v1378 = vsel %vm529, %v1371, 0
    %v1380 = vsel %vm529, %v1373, 0
    %v1382 = vsel %vm529, %v1375, 0
    %1384 = vmatprep.subr.mxu0 0.0
    %1385 = vmatpush1.xpose.msra.mxu0 0.0
    %1386 = vmatprep.subr.mxu0 0.0
    %1387 = vmatpush1.xpose.msra.mxu0 0.0
    %1388 = vmatprep.subr.mxu0 0.0
    %1389 = vmatpush1.xpose.msra.mxu0 0.0
    %1390 = vmatprep.subr.mxu0 0.0
    %1391 = vmatpush1.xpose.msra.mxu0 0.0
    %1392 = vmatprep.subr.mxu0 0.0
    %1393 = vmatpush1.xpose.msra.mxu0 0.0
    %1394 = vmatprep.subr.mxu0 0.0
    %1395 = vmatpush1.xpose.msra.mxu0 0.0
    %1396 = vmatprep.subr.mxu0 0.0
    %1397 = vmatpush1.xpose.msra.mxu0 0.0
    %1398 = vmatprep.subr.mxu0 0.0
    %1399 = vmatpush1.xpose.msra.mxu0 0.0
    %1400 = vmatprep.subr.mxu0 0.0
    %1401 = vmatpush1.xpose.msra.mxu0 0.0
    %1402 = vmatprep.subr.mxu0 0.0
    %1403 = vmatpush1.xpose.msra.mxu0 0.0
    %1404 = vmatprep.subr.mxu0 0.0
    %1405 = vmatpush1.xpose.msra.mxu0 0.0
    %1406 = vmatprep.subr.mxu0 0.0
    %1407 = vmatpush1.xpose.msra.mxu0 0.0
    %1408 = vmatprep.subr.mxu0 0.0
    %1409 = vmatpush1.xpose.msra.mxu0 0.0
    %1410 = vmatprep.subr.mxu0 0.0
    %1411 = vmatpush1.xpose.msra.mxu0 0.0
    %1412 = vmatprep.subr.mxu0 0.0
    %1413 = vmatpush1.xpose.msra.mxu0 %v1382
    %1414 = vmatprep.subr.mxu0 0.0
    %1415 = vmatpush1.xpose.msra.mxu0 %v1380
    %1416 = vmatprep.subr.mxu0 0.0
    %1417 = vmatpush2.xpose.msra.mxu0 0.0
    %1418 = vmatprep.subr.mxu0 0.0
    %1419 = vmatpush2.xpose.msra.mxu0 0.0
    %1420 = vmatprep.subr.mxu0 0.0
    %1421 = vmatpush2.xpose.msra.mxu0 0.0
    %1422 = vmatprep.subr.mxu0 0.0
    %1423 = vmatpush2.xpose.msra.mxu0 0.0
    %1424 = vmatprep.subr.mxu0 0.0
    %1425 = vmatpush2.xpose.msra.mxu0 0.0
    %1426 = vmatprep.subr.mxu0 0.0
    %1427 = vmatpush2.xpose.msra.mxu0 0.0
    %1428 = vmatprep.subr.mxu0 0.0
    %1429 = vmatpush2.xpose.msra.mxu0 0.0
    %1430 = vmatprep.subr.mxu0 0.0
    %1431 = vmatpush2.xpose.msra.mxu0 0.0
    %1432 = vmatprep.subr.mxu0 0.0
    %1433 = vmatpush2.xpose.msra.mxu0 0.0
    %1434 = vmatprep.subr.mxu0 0.0
    %1435 = vmatpush2.xpose.msra.mxu0 0.0
    %1436 = vmatprep.subr.mxu0 0.0
    %1437 = vmatpush2.xpose.msra.mxu0 0.0
    %1438 = vmatprep.subr.mxu0 0.0
    %1439 = vmatpush2.xpose.msra.mxu0 0.0
    %1440 = vmatprep.subr.mxu0 0.0
    %1441 = vmatpush2.xpose.msra.mxu0 0.0
    %1442 = vmatprep.subr.mxu0 0.0
    %1443 = vmatpush2.xpose.msra.mxu0 0.0
    %1444 = vmatprep.subr.mxu0 0.0
    %1445 = vmatpush2.xpose.msra.mxu0 0.0
    %1446 = vmatprep.subr.mxu0 0.0
    %1447 = vmatpush2.xpose.msra.mxu0 0.0
    %1448 = vmatprep.mubr.f32.mxu0 0.0
    %1449 = vmatmul.mubr.f32.gmra.mxu0 %v1376
    %v1450 = vpop.f32.mrf.mxu0
    %v1451 = vadd.f32 %v256, %v1450
    %v1452 = vpop.f32.mrf.mxu0
    %1453 = vmatprep.mubr.f32.mxu0 0.0
    %1454 = vmatmul.mubr.f32.gmra.mxu0 %v1378
    %v1455 = vpop.f32.mrf.mxu0
    %v1456 = vadd.f32 %v257, %v1455
    %v1457 = vpop.f32.mrf.mxu0
    %1458 = vdwg.mxu0
    %v1459 = vsel %vm617, %v1451, -inf
    %1460 = vmax.xlane.f32.xlu0 %v1459
    %v1461 = vpop.xlane.xlu0 %1460
    %v1462 = vsel %vm617, %v1456, -inf
    %1463 = vmax.xlane.f32.xlu0 %v1462
    %v1464 = vpop.xlane.xlu0 %1463
    %v1465 = vsub.f32 %v1451, %v1461
    %v1466 = vsub.f32 %v1456, %v1464
    %v1467 = vmul.f32 %v1465, 1.442695
    %v1468 = vpow.pop %v1467
    %v1469 = vmul.f32 %v1466, 1.442695
    %v1470 = vpow.pop %v1469
    %v1471 = vsel %vm617, %v1468, 0.0
    %1472 = vadd.xlane.f32.xlu0 %v1471
    %v1473 = vpop.xlane.xlu0 %1472
    %v1474 = vsel %vm617, %v1470, 0.0
    %1475 = vadd.xlane.f32.xlu0 %v1474
    %v1476 = vpop.xlane.xlu0 %1475
    %v1477 = vrcp.pop %v1473
    %v1478 = vrcp.pop %v1476
    %v1479 = vmul.f32 %v1468, %v1477
    %v1480 = vmul.f32 %v1470, %v1478
    %1481 = vrot.lane.b32.xlu0 %v515, 104
    %v1482 = vpop.permute.xlu0 %1481
    %1483 = vrot.lane.b32.xlu0 %v520, 104
    %v1484 = vpop.permute.xlu0 %1483
    %v1488 = vsel %vm617, %v1479, 0
    %v1491 = vsel %vm617, %v1480, 0
    %1493 = vmatprep.subr.mxu0 0.0
    %1494 = vmatpush1.msra.mxu0 0.0
    %1495 = vmatprep.subr.mxu0 0.0
    %1496 = vmatpush1.msra.mxu0 0.0
    %1497 = vmatprep.subr.mxu0 0.0
    %1498 = vmatpush1.msra.mxu0 0.0
    %1499 = vmatprep.subr.mxu0 0.0
    %1500 = vmatpush1.msra.mxu0 0.0
    %1501 = vmatprep.subr.mxu0 0.0
    %1502 = vmatpush1.msra.mxu0 0.0
    %1503 = vmatprep.subr.mxu0 0.0
    %1504 = vmatpush1.msra.mxu0 0.0
    %1505 = vmatprep.subr.mxu0 0.0
    %1506 = vmatpush1.msra.mxu0 0.0
    %1507 = vmatprep.subr.mxu0 0.0
    %1508 = vmatpush1.msra.mxu0 0.0
    %1509 = vmatprep.subr.mxu0 0.0
    %1510 = vmatpush1.msra.mxu0 0.0
    %1511 = vmatprep.subr.mxu0 0.0
    %1512 = vmatpush1.msra.mxu0 0.0
    %1513 = vmatprep.subr.mxu0 0.0
    %1514 = vmatpush1.msra.mxu0 0.0
    %1515 = vmatprep.subr.mxu0 0.0
    %1516 = vmatpush1.msra.mxu0 0.0
    %1517 = vmatprep.subr.mxu0 0.0
    %1518 = vmatpush1.msra.mxu0 0.0
    %1519 = vmatprep.subr.mxu0 0.0
    %1520 = vmatpush1.msra.mxu0 0.0
    %1521 = vmatprep.subr.mxu0 0.0
    %1522 = vmatpush1.msra.mxu0 %v1484
    %1523 = vmatprep.subr.mxu0 0.0
    %1524 = vmatpush1.msra.mxu0 %v1482
    %1525 = vmatprep.subr.mxu0 0.0
    %1526 = vmatpush2.msra.mxu0 0.0
    %1527 = vmatprep.subr.mxu0 0.0
    %1528 = vmatpush2.msra.mxu0 0.0
    %1529 = vmatprep.subr.mxu0 0.0
    %1530 = vmatpush2.msra.mxu0 0.0
    %1531 = vmatprep.subr.mxu0 0.0
    %1532 = vmatpush2.msra.mxu0 0.0
    %1533 = vmatprep.subr.mxu0 0.0
    %1534 = vmatpush2.msra.mxu0 0.0
    %1535 = vmatprep.subr.mxu0 0.0
    %1536 = vmatpush2.msra.mxu0 0.0
    %1537 = vmatprep.subr.mxu0 0.0
    %1538 = vmatpush2.msra.mxu0 0.0
    %1539 = vmatprep.subr.mxu0 0.0
    %1540 = vmatpush2.msra.mxu0 0.0
    %1541 = vmatprep.subr.mxu0 0.0
    %1542 = vmatpush2.msra.mxu0 0.0
    %1543 = vmatprep.subr.mxu0 0.0
    %1544 = vmatpush2.msra.mxu0 0.0
    %1545 = vmatprep.subr.mxu0 0.0
    %1546 = vmatpush2.msra.mxu0 0.0
    %1547 = vmatprep.subr.mxu0 0.0
    %1548 = vmatpush2.msra.mxu0 0.0
    %1549 = vmatprep.subr.mxu0 0.0
    %1550 = vmatpush2.msra.mxu0 0.0
    %1551 = vmatprep.subr.mxu0 0.0
    %1552 = vmatpush2.msra.mxu0 0.0
    %1553 = vmatprep.subr.mxu0 0.0
    %1554 = vmatpush2.msra.mxu0 0.0
    %1555 = vmatprep.subr.mxu0 0.0
    %1556 = vmatpush2.msra.mxu0 0.0
    %1557 = vmatprep.mubr.f32.mxu0 0.0
    %1558 = vmatmul.mubr.f32.gmra.mxu0 %v1488
    %v1559 = vpop.f32.mrf.mxu0
    %v1560 = vadd.f32 0.0, %v1559
    %v1561 = vpop.f32.mrf.mxu0
    %1562 = vmatprep.mubr.f32.mxu0 0.0
    %1563 = vmatmul.mubr.f32.gmra.mxu0 %v1491
    %v1564 = vpop.f32.mrf.mxu0
    %v1565 = vadd.f32 0.0, %v1564
    %v1566 = vpop.f32.mrf.mxu0
    %1567 = vdwg.mxu0
    %v1569 = vsel %vm529, %v1560, 0
    %v1572 = vsel %vm529, %v1565, 0
    %1574 = vmatprep.subr.mxu0 0.0
    %1575 = vmatpush1.msra.mxu0 0.0
    %1576 = vmatprep.subr.mxu0 0.0
    %1577 = vmatpush1.msra.mxu0 0.0
    %1578 = vmatprep.subr.mxu0 0.0
    %1579 = vmatpush1.msra.mxu0 0.0
    %1580 = vmatprep.subr.mxu0 0.0
    %1581 = vmatpush1.msra.mxu0 0.0
    %1582 = vmatprep.subr.mxu0 0.0
    %1583 = vmatpush1.msra.mxu0 0.0
    %1584 = vmatprep.subr.mxu0 0.0
    %1585 = vmatpush1.msra.mxu0 0.0
    %1586 = vmatprep.subr.mxu0 0.0
    %1587 = vmatpush1.msra.mxu0 0.0
    %1588 = vmatprep.subr.mxu0 0.0
    %1589 = vmatpush1.msra.mxu0 0.0
    %1590 = vmatprep.subr.mxu0 0.0
    %1591 = vmatpush1.msra.mxu0 0.0
    %1592 = vmatprep.subr.mxu0 0.0
    %1593 = vmatpush1.msra.mxu0 0.0
    %1594 = vmatprep.subr.mxu0 0.0
    %1595 = vmatpush1.msra.mxu0 0.0
    %1596 = vmatprep.subr.mxu0 0.0
    %1597 = vmatpush1.msra.mxu0 0.0
    %1598 = vmatprep.subr.mxu0 0.0
    %1599 = vmatpush1.msra.mxu0 0.0
    %1600 = vmatprep.subr.mxu0 0.0
    %1601 = vmatpush1.msra.mxu0 0.0
    %1602 = vmatprep.subr.mxu0 0.0
    %1603 = vmatpush1.msra.mxu0 0.0
    %1604 = vmatprep.subr.mxu0 0.0
    %1605 = vmatpush1.msra.mxu0 %v528
    %1606 = vmatprep.subr.mxu0 0.0
    %1607 = vmatpush2.msra.mxu0 0.0
    %1608 = vmatprep.subr.mxu0 0.0
    %1609 = vmatpush2.msra.mxu0 0.0
    %1610 = vmatprep.subr.mxu0 0.0
    %1611 = vmatpush2.msra.mxu0 0.0
    %1612 = vmatprep.subr.mxu0 0.0
    %1613 = vmatpush2.msra.mxu0 0.0
    %1614 = vmatprep.subr.mxu0 0.0
    %1615 = vmatpush2.msra.mxu0 0.0
    %1616 = vmatprep.subr.mxu0 0.0
    %1617 = vmatpush2.msra.mxu0 0.0
    %1618 = vmatprep.subr.mxu0 0.0
    %1619 = vmatpush2.msra.mxu0 0.0
    %1620 = vmatprep.subr.mxu0 0.0
    %1621 = vmatpush2.msra.mxu0 0.0
    %1622 = vmatprep.subr.mxu0 0.0
    %1623 = vmatpush2.msra.mxu0 0.0
    %1624 = vmatprep.subr.mxu0 0.0
    %1625 = vmatpush2.msra.mxu0 0.0
    %1626 = vmatprep.subr.mxu0 0.0
    %1627 = vmatpush2.msra.mxu0 0.0
    %1628 = vmatprep.subr.mxu0 0.0
    %1629 = vmatpush2.msra.mxu0 0.0
    %1630 = vmatprep.subr.mxu0 0.0
    %1631 = vmatpush2.msra.mxu0 0.0
    %1632 = vmatprep.subr.mxu0 0.0
    %1633 = vmatpush2.msra.mxu0 0.0
    %1634 = vmatprep.subr.mxu0 0.0
    %1635 = vmatpush2.msra.mxu0 0.0
    %1636 = vmatprep.subr.mxu0 0.0
    %1637 = vmatpush2.msra.mxu0 0.0
    %1638 = vmatprep.mubr.f32.mxu0 0.0
    %1639 = vmatmul.mubr.f32.gmra.mxu0 %v1569
    %v1640 = vpop.f32.mrf.mxu0
    %v1641 = vadd.f32 0.0, %v1640
    %v1642 = vpop.f32.mrf.mxu0
    %1643 = vmatprep.mubr.f32.mxu0 0.0
    %1644 = vmatmul.mubr.f32.gmra.mxu0 %v1572
    %v1645 = vpop.f32.mrf.mxu0
    %v1646 = vadd.f32 0.0, %v1645
    %v1647 = vpop.f32.mrf.mxu0
    %1648 = vdwg.mxu0
    %v1649 = vadd.f32 %v1366, %v1641
    %v1650 = vadd.f32 %v1367, %v1646
    %v1651 = vld [vmem:[#allocation13] sm:$0x1]
    %v1653 = vlaneseq
    %v1654 = vshrl.u32 %v1653, 7
    %v1655 = vsub.s32 0, %v1654
    %v1656 = vrot.slane %v1651, %v1655
    %v1658 = vadd.f32 %v1649, %v1656
    %v1659 = vadd.f32 %v1650, %v1656
    %v1660 = vadd.f32 %v254, %v1658
    %v1661 = vadd.f32 %v255, %v1659
    %v1662 = vld [vmem:[#allocation14] sm:$0x1]
    %v1663 = vld [vmem:[#allocation16] sm:$0x1]
    %v1664 = vsel %vm269, %v1660, 0.0
    %1665 = vadd.xlane.f32.xlu0 %v1664
    %v1666 = vpop.xlane.xlu0 %1665
    %v1667 = vsel %vm269, %v1661, 0.0
    %1668 = vadd.xlane.f32.xlu0 %v1667
    %v1669 = vpop.xlane.xlu0 %1668
    %v1670 = vrcp.pop 32.0
    %v1671 = vmul.f32 %v1666, %v1670
    %v1672 = vmul.f32 %v1669, %v1670
    %v1673 = vsub.f32 %v1660, %v1671
    %v1674 = vsub.f32 %v1661, %v1672
    %v1675 = vmul.f32 %v1673, %v1673
    %v1676 = vmul.f32 %v1674, %v1674
    %v1677 = vsel %vm269, %v1675, 0.0
    %1678 = vadd.xlane.f32.xlu0 %v1677
    %v1679 = vpop.xlane.xlu0 %1678
    %v1680 = vsel %vm269, %v1676, 0.0
    %1681 = vadd.xlane.f32.xlu0 %v1680
    %v1682 = vpop.xlane.xlu0 %1681
    %v1683 = vmul.f32 %v1679, %v1670
    %v1684 = vmul.f32 %v1682, %v1670
    %v1685 = vadd.f32 %v1683, 1e-05
    %v1686 = vadd.f32 %v1684, 1e-05
    %v1687 = vrsqrt.pop %v1685
    %v1688 = vrsqrt.pop %v1686
    %v1689 = vmul.f32 %v1673, %v1687
    %v1690 = vmul.f32 %v1674, %v1688
    %v1692 = vlaneseq
    %v1693 = vshrl.u32 %v1692, 7
    %v1694 = vsub.s32 0, %v1693
    %v1695 = vrot.slane %v1662, %v1694
    %v1697 = vmul.f32 %v1689, %v1695
    %v1698 = vmul.f32 %v1690, %v1695
    %v1700 = vlaneseq
    %v1701 = vshrl.u32 %v1700, 7
    %v1702 = vsub.s32 0, %v1701
    %v1703 = vrot.slane %v1663, %v1702
    %v1705 = vadd.f32 %v1697, %v1703
    %v1706 = vadd.f32 %v1698, %v1703
    %v1707 = vld [vmem:[%s33] sm:$0xff]
    %v1708 = vld [vmem:[%s33 + $0x8] sm:$0xff]
    %v1709 = vld [vmem:[%s33 + $0x10] sm:$0xff]
    %v1710 = vld [vmem:[%s33 + $0x18] sm:$0xff]
    %v1711 = vld [vmem:[#allocation17] sm:$0x1]
    %v1713 = vlaneseq
    %v1714 = vshrl.u32 %v1713, 7
    %v1715 = vsub.s32 0, %v1714
    %v1716 = vrot.slane %v1711, %v1715
    %v1719 = vsel %vm269, %v1705, 0
    %v1722 = vsel %vm269, %v1706, 0
    %1724 = vmatprep.subr.mxu0 0.0
    %1725 = vmatpush1.msra.mxu0 0.0
    %1726 = vmatprep.subr.mxu0 0.0
    %1727 = vmatpush1.msra.mxu0 0.0
    %1728 = vmatprep.subr.mxu0 0.0
    %1729 = vmatpush1.msra.mxu0 0.0
    %1730 = vmatprep.subr.mxu0 0.0
    %1731 = vmatpush1.msra.mxu0 0.0
    %1732 = vmatprep.subr.mxu0 0.0
    %1733 = vmatpush1.msra.mxu0 0.0
    %1734 = vmatprep.subr.mxu0 0.0
    %1735 = vmatpush1.msra.mxu0 0.0
    %1736 = vmatprep.subr.mxu0 0.0
    %1737 = vmatpush1.msra.mxu0 0.0
    %1738 = vmatprep.subr.mxu0 0.0
    %1739 = vmatpush1.msra.mxu0 0.0
    %1740 = vmatprep.subr.mxu0 0.0
    %1741 = vmatpush1.msra.mxu0 0.0
    %1742 = vmatprep.subr.mxu0 0.0
    %1743 = vmatpush1.msra.mxu0 0.0
    %1744 = vmatprep.subr.mxu0 0.0
    %1745 = vmatpush1.msra.mxu0 0.0
    %1746 = vmatprep.subr.mxu0 0.0
    %1747 = vmatpush1.msra.mxu0 0.0
    %1748 = vmatprep.subr.mxu0 0.0
    %1749 = vmatpush1.msra.mxu0 %v1710
    %1750 = vmatprep.subr.mxu0 0.0
    %1751 = vmatpush1.msra.mxu0 %v1709
    %1752 = vmatprep.subr.mxu0 0.0
    %1753 = vmatpush1.msra.mxu0 %v1708
    %1754 = vmatprep.subr.mxu0 0.0
    %1755 = vmatpush1.msra.mxu0 %v1707
    %1756 = vmatprep.subr.mxu0 0.0
    %1757 = vmatpush2.msra.mxu0 0.0
    %1758 = vmatprep.subr.mxu0 0.0
    %1759 = vmatpush2.msra.mxu0 0.0
    %1760 = vmatprep.subr.mxu0 0.0
    %1761 = vmatpush2.msra.mxu0 0.0
    %1762 = vmatprep.subr.mxu0 0.0
    %1763 = vmatpush2.msra.mxu0 0.0
    %1764 = vmatprep.subr.mxu0 0.0
    %1765 = vmatpush2.msra.mxu0 0.0
    %1766 = vmatprep.subr.mxu0 0.0
    %1767 = vmatpush2.msra.mxu0 0.0
    %1768 = vmatprep.subr.mxu0 0.0
    %1769 = vmatpush2.msra.mxu0 0.0
    %1770 = vmatprep.subr.mxu0 0.0
    %1771 = vmatpush2.msra.mxu0 0.0
    %1772 = vmatprep.subr.mxu0 0.0
    %1773 = vmatpush2.msra.mxu0 0.0
    %1774 = vmatprep.subr.mxu0 0.0
    %1775 = vmatpush2.msra.mxu0 0.0
    %1776 = vmatprep.subr.mxu0 0.0
    %1777 = vmatpush2.msra.mxu0 0.0
    %1778 = vmatprep.subr.mxu0 0.0
    %1779 = vmatpush2.msra.mxu0 0.0
    %1780 = vmatprep.subr.mxu0 0.0
    %1781 = vmatpush2.msra.mxu0 0.0
    %1782 = vmatprep.subr.mxu0 0.0
    %1783 = vmatpush2.msra.mxu0 0.0
    %1784 = vmatprep.subr.mxu0 0.0
    %1785 = vmatpush2.msra.mxu0 0.0
    %1786 = vmatprep.subr.mxu0 0.0
    %1787 = vmatpush2.msra.mxu0 0.0
    %1788 = vmatprep.mubr.f32.mxu0 0.0
    %1789 = vmatmul.mubr.f32.gmra.mxu0 %v1719
    %v1790 = vpop.f32.mrf.mxu0
    %v1791 = vadd.f32 %v1716, %v1790
    %v1792 = vpop.f32.mrf.mxu0
    %1793 = vmatprep.mubr.f32.mxu0 0.0
    %1794 = vmatmul.mubr.f32.gmra.mxu0 %v1722
    %v1795 = vpop.f32.mrf.mxu0
    %v1796 = vadd.f32 %v1716, %v1795
    %v1797 = vpop.f32.mrf.mxu0
    %1798 = vdwg.mxu0
    %v1799 = vmax.f32 %v1791, 0.0
    %v1800 = vmax.f32 %v1796, 0.0
    %v1801 = vld [vmem:[%s37] sm:$0xff]
    %v1802 = vld [vmem:[%s37 + $0x8] sm:$0xff]
    %v1803 = vld [vmem:[%s37 + $0x10] sm:$0xff]
    %v1804 = vld [vmem:[%s37 + $0x18] sm:$0xff]
    %v1805 = vld [vmem:[%s37 + $0x20] sm:$0xff]
    %v1806 = vld [vmem:[%s37 + $0x28] sm:$0xff]
    %v1807 = vld [vmem:[%s37 + $0x30] sm:$0xff]
    %v1808 = vld [vmem:[%s37 + $0x38] sm:$0xff]
    %v1809 = vld [vmem:[#allocation19] sm:$0x1]
    %v1811 = vlaneseq
    %v1812 = vshrl.u32 %v1811, 7
    %v1813 = vsub.s32 0, %v1812
    %v1814 = vrot.slane %v1809, %v1813
    %vm1816 = vcmask 523264
    %v1818 = vsel %vm1816, %v1799, 0
    %v1821 = vsel %vm1816, %v1800, 0
    %1823 = vmatprep.subr.mxu0 0.0
    %1824 = vmatpush1.msra.mxu0 0.0
    %1825 = vmatprep.subr.mxu0 0.0
    %1826 = vmatpush1.msra.mxu0 0.0
    %1827 = vmatprep.subr.mxu0 0.0
    %1828 = vmatpush1.msra.mxu0 0.0
    %1829 = vmatprep.subr.mxu0 0.0
    %1830 = vmatpush1.msra.mxu0 0.0
    %1831 = vmatprep.subr.mxu0 0.0
    %1832 = vmatpush1.msra.mxu0 0.0
    %1833 = vmatprep.subr.mxu0 0.0
    %1834 = vmatpush1.msra.mxu0 0.0
    %1835 = vmatprep.subr.mxu0 0.0
    %1836 = vmatpush1.msra.mxu0 0.0
    %1837 = vmatprep.subr.mxu0 0.0
    %1838 = vmatpush1.msra.mxu0 0.0
    %1839 = vmatprep.subr.mxu0 0.0
    %1840 = vmatpush1.msra.mxu0 %v1808
    %1841 = vmatprep.subr.mxu0 0.0
    %1842 = vmatpush1.msra.mxu0 %v1807
    %1843 = vmatprep.subr.mxu0 0.0
    %1844 = vmatpush1.msra.mxu0 %v1806
    %1845 = vmatprep.subr.mxu0 0.0
    %1846 = vmatpush1.msra.mxu0 %v1805
    %1847 = vmatprep.subr.mxu0 0.0
    %1848 = vmatpush1.msra.mxu0 %v1804
    %1849 = vmatprep.subr.mxu0 0.0
    %1850 = vmatpush1.msra.mxu0 %v1803
    %1851 = vmatprep.subr.mxu0 0.0
    %1852 = vmatpush1.msra.mxu0 %v1802
    %1853 = vmatprep.subr.mxu0 0.0
    %1854 = vmatpush1.msra.mxu0 %v1801
    %1855 = vmatprep.subr.mxu0 0.0
    %1856 = vmatpush2.msra.mxu0 0.0
    %1857 = vmatprep.subr.mxu0 0.0
    %1858 = vmatpush2.msra.mxu0 0.0
    %1859 = vmatprep.subr.mxu0 0.0
    %1860 = vmatpush2.msra.mxu0 0.0
    %1861 = vmatprep.subr.mxu0 0.0
    %1862 = vmatpush2.msra.mxu0 0.0
    %1863 = vmatprep.subr.mxu0 0.0
    %1864 = vmatpush2.msra.mxu0 0.0
    %1865 = vmatprep.subr.mxu0 0.0
    %1866 = vmatpush2.msra.mxu0 0.0
    %1867 = vmatprep.subr.mxu0 0.0
    %1868 = vmatpush2.msra.mxu0 0.0
    %1869 = vmatprep.subr.mxu0 0.0
    %1870 = vmatpush2.msra.mxu0 0.0
    %1871 = vmatprep.subr.mxu0 0.0
    %1872 = vmatpush2.msra.mxu0 0.0
    %1873 = vmatprep.subr.mxu0 0.0
    %1874 = vmatpush2.msra.mxu0 0.0
    %1875 = vmatprep.subr.mxu0 0.0
    %1876 = vmatpush2.msra.mxu0 0.0
    %1877 = vmatprep.subr.mxu0 0.0
    %1878 = vmatpush2.msra.mxu0 0.0
    %1879 = vmatprep.subr.mxu0 0.0
    %1880 = vmatpush2.msra.mxu0 0.0
    %1881 = vmatprep.subr.mxu0 0.0
    %1882 = vmatpush2.msra.mxu0 0.0
    %1883 = vmatprep.subr.mxu0 0.0
    %1884 = vmatpush2.msra.mxu0 0.0
    %1885 = vmatprep.subr.mxu0 0.0
    %1886 = vmatpush2.msra.mxu0 0.0
    %1887 = vmatprep.mubr.f32.mxu0 0.0
    %1888 = vmatmul.mubr.f32.gmra.mxu0 %v1818
    %v1889 = vpop.f32.mrf.mxu0
    %v1890 = vadd.f32 %v1814, %v1889
    %v1891 = vpop.f32.mrf.mxu0
    %1892 = vmatprep.mubr.f32.mxu0 0.0
    %1893 = vmatmul.mubr.f32.gmra.mxu0 %v1821
    %v1894 = vpop.f32.mrf.mxu0
    %v1895 = vadd.f32 %v1814, %v1894
    %v1896 = vpop.f32.mrf.mxu0
    %1897 = vdwg.mxu0
    %v1898 = vadd.f32 %v1705, %v1890
    %v1899 = vadd.f32 %v1706, %v1895
    %v1900 = vld [vmem:[%s41] sm:$0x1]
    %v1901 = vld [vmem:[%s43] sm:$0x1]
    %v1902 = vsel %vm269, %v1898, 0.0
    %1903 = vadd.xlane.f32.xlu0 %v1902
    %v1904 = vpop.xlane.xlu0 %1903
    %v1905 = vsel %vm269, %v1899, 0.0
    %1906 = vadd.xlane.f32.xlu0 %v1905
    %v1907 = vpop.xlane.xlu0 %1906
    %v1908 = vmul.f32 %v1904, %v1670
    %v1909 = vmul.f32 %v1907, %v1670
    %v1910 = vsub.f32 %v1898, %v1908
    %v1911 = vsub.f32 %v1899, %v1909
    %v1912 = vmul.f32 %v1910, %v1910
    %v1913 = vmul.f32 %v1911, %v1911
    %v1914 = vsel %vm269, %v1912, 0.0
    %1915 = vadd.xlane.f32.xlu0 %v1914
    %v1916 = vpop.xlane.xlu0 %1915
    %v1917 = vsel %vm269, %v1913, 0.0
    %1918 = vadd.xlane.f32.xlu0 %v1917
    %v1919 = vpop.xlane.xlu0 %1918
    %v1920 = vmul.f32 %v1916, %v1670
    %v1921 = vmul.f32 %v1919, %v1670
    %v1922 = vadd.f32 %v1920, 1e-05
    %v1923 = vadd.f32 %v1921, 1e-05
    %v1924 = vrsqrt.pop %v1922
    %v1925 = vrsqrt.pop %v1923
    %v1926 = vmul.f32 %v1910, %v1924
    %v1927 = vmul.f32 %v1911, %v1925
    %v1929 = vlaneseq
    %v1930 = vshrl.u32 %v1929, 7
    %v1931 = vsub.s32 0, %v1930
    %v1932 = vrot.slane %v1900, %v1931
    %v1934 = vmul.f32 %v1926, %v1932
    %v1935 = vmul.f32 %v1927, %v1932
    %v1937 = vlaneseq
    %v1938 = vshrl.u32 %v1937, 7
    %v1939 = vsub.s32 0, %v1938
    %v1940 = vrot.slane %v1901, %v1939
    %v1942 = vadd.f32 %v1934, %v1940
    %v1943 = vadd.f32 %v1935, %v1940
    %v1944 = vld [vmem:[#allocation2] sm:$0x3]
    %v1945 = vld [vmem:[%s1] sm:$0xff]
    %v1946 = vld [vmem:[%s1 + $0x8] sm:$0xff]
    %v1948 = vsel %vm617, %v1944, 0
    %1950 = vmatprep.subr.mxu0 0.0
    %1951 = vmatpush1.msra.mxu0 0.0
    %1952 = vmatprep.subr.mxu0 0.0
    %1953 = vmatpush1.msra.mxu0 0.0
    %1954 = vmatprep.subr.mxu0 0.0
    %1955 = vmatpush1.msra.mxu0 0.0
    %1956 = vmatprep.subr.mxu0 0.0
    %1957 = vmatpush1.msra.mxu0 0.0
    %1958 = vmatprep.subr.mxu0 0.0
    %1959 = vmatpush1.msra.mxu0 0.0
    %1960 = vmatprep.subr.mxu0 0.0
    %1961 = vmatpush1.msra.mxu0 0.0
    %1962 = vmatprep.subr.mxu0 0.0
    %1963 = vmatpush1.msra.mxu0 0.0
    %1964 = vmatprep.subr.mxu0 0.0
    %1965 = vmatpush1.msra.mxu0 0.0
    %1966 = vmatprep.subr.mxu0 0.0
    %1967 = vmatpush1.msra.mxu0 0.0
    %1968 = vmatprep.subr.mxu0 0.0
    %1969 = vmatpush1.msra.mxu0 0.0
    %1970 = vmatprep.subr.mxu0 0.0
    %1971 = vmatpush1.msra.mxu0 0.0
    %1972 = vmatprep.subr.mxu0 0.0
    %1973 = vmatpush1.msra.mxu0 0.0
    %1974 = vmatprep.subr.mxu0 0.0
    %1975 = vmatpush1.msra.mxu0 0.0
    %1976 = vmatprep.subr.mxu0 0.0
    %1977 = vmatpush1.msra.mxu0 0.0
    %1978 = vmatprep.subr.mxu0 0.0
    %1979 = vmatpush1.msra.mxu0 %v1946
    %1980 = vmatprep.subr.mxu0 0.0
    %1981 = vmatpush1.msra.mxu0 %v1945
    %1982 = vmatprep.subr.mxu0 0.0
    %1983 = vmatpush2.msra.mxu0 0.0
    %1984 = vmatprep.subr.mxu0 0.0
    %1985 = vmatpush2.msra.mxu0 0.0
    %1986 = vmatprep.subr.mxu0 0.0
    %1987 = vmatpush2.msra.mxu0 0.0
    %1988 = vmatprep.subr.mxu0 0.0
    %1989 = vmatpush2.msra.mxu0 0.0
    %1990 = vmatprep.subr.mxu0 0.0
    %1991 = vmatpush2.msra.mxu0 0.0
    %1992 = vmatprep.subr.mxu0 0.0
    %1993 = vmatpush2.msra.mxu0 0.0
    %1994 = vmatprep.subr.mxu0 0.0
    %1995 = vmatpush2.msra.mxu0 0.0
    %1996 = vmatprep.subr.mxu0 0.0
    %1997 = vmatpush2.msra.mxu0 0.0
    %1998 = vmatprep.subr.mxu0 0.0
    %1999 = vmatpush2.msra.mxu0 0.0
    %2000 = vmatprep.subr.mxu0 0.0
    %2001 = vmatpush2.msra.mxu0 0.0
    %2002 = vmatprep.subr.mxu0 0.0
    %2003 = vmatpush2.msra.mxu0 0.0
    %2004 = vmatprep.subr.mxu0 0.0
    %2005 = vmatpush2.msra.mxu0 0.0
    %2006 = vmatprep.subr.mxu0 0.0
    %2007 = vmatpush2.msra.mxu0 0.0
    %2008 = vmatprep.subr.mxu0 0.0
    %2009 = vmatpush2.msra.mxu0 0.0
    %2010 = vmatprep.subr.mxu0 0.0
    %2011 = vmatpush2.msra.mxu0 0.0
    %2012 = vmatprep.subr.mxu0 0.0
    %2013 = vmatpush2.msra.mxu0 0.0
    %2014 = vmatprep.mubr.f32.mxu0 0.0
    %2015 = vmatmul.mubr.f32.gmra.mxu0 %v1948
    %v2016 = vpop.f32.mrf.mxu0
    %v2017 = vadd.f32 0.0, %v2016
    %v2018 = vpop.f32.mrf.mxu0
    %2019 = vdwg.mxu0
    %v2020 = vld [vmem:[#allocation5] sm:$0x3]
    %v2022 = vsel %vm617, %v2020, 0
    %2024 = vmatprep.subr.mxu0 0.0
    %2025 = vmatpush1.msra.mxu0 0.0
    %2026 = vmatprep.subr.mxu0 0.0
    %2027 = vmatpush1.msra.mxu0 0.0
    %2028 = vmatprep.subr.mxu0 0.0
    %2029 = vmatpush1.msra.mxu0 0.0
    %2030 = vmatprep.subr.mxu0 0.0
    %2031 = vmatpush1.msra.mxu0 0.0
    %2032 = vmatprep.subr.mxu0 0.0
    %2033 = vmatpush1.msra.mxu0 0.0
    %2034 = vmatprep.subr.mxu0 0.0
    %2035 = vmatpush1.msra.mxu0 0.0
    %2036 = vmatprep.subr.mxu0 0.0
    %2037 = vmatpush1.msra.mxu0 0.0
    %2038 = vmatprep.subr.mxu0 0.0
    %2039 = vmatpush1.msra.mxu0 0.0
    %2040 = vmatprep.subr.mxu0 0.0
    %2041 = vmatpush1.msra.mxu0 0.0
    %2042 = vmatprep.subr.mxu0 0.0
    %2043 = vmatpush1.msra.mxu0 0.0
    %2044 = vmatprep.subr.mxu0 0.0
    %2045 = vmatpush1.msra.mxu0 0.0
    %2046 = vmatprep.subr.mxu0 0.0
    %2047 = vmatpush1.msra.mxu0 0.0
    %2048 = vmatprep.subr.mxu0 0.0
    %2049 = vmatpush1.msra.mxu0 0.0
    %2050 = vmatprep.subr.mxu0 0.0
    %2051 = vmatpush1.msra.mxu0 0.0
    %2052 = vmatprep.subr.mxu0 0.0
    %2053 = vmatpush1.msra.mxu0 %v1943
    %2054 = vmatprep.subr.mxu0 0.0
    %2055 = vmatpush1.msra.mxu0 %v1942
    %2056 = vmatprep.subr.mxu0 0.0
    %2057 = vmatpush2.msra.mxu0 0.0
    %2058 = vmatprep.subr.mxu0 0.0
    %2059 = vmatpush2.msra.mxu0 0.0
    %2060 = vmatprep.subr.mxu0 0.0
    %2061 = vmatpush2.msra.mxu0 0.0
    %2062 = vmatprep.subr.mxu0 0.0
    %2063 = vmatpush2.msra.mxu0 0.0
    %2064 = vmatprep.subr.mxu0 0.0
    %2065 = vmatpush2.msra.mxu0 0.0
    %2066 = vmatprep.subr.mxu0 0.0
    %2067 = vmatpush2.msra.mxu0 0.0
    %2068 = vmatprep.subr.mxu0 0.0
    %2069 = vmatpush2.msra.mxu0 0.0
    %2070 = vmatprep.subr.mxu0 0.0
    %2071 = vmatpush2.msra.mxu0 0.0
    %2072 = vmatprep.subr.mxu0 0.0
    %2073 = vmatpush2.msra.mxu0 0.0
    %2074 = vmatprep.subr.mxu0 0.0
    %2075 = vmatpush2.msra.mxu0 0.0
    %2076 = vmatprep.subr.mxu0 0.0
    %2077 = vmatpush2.msra.mxu0 0.0
    %2078 = vmatprep.subr.mxu0 0.0
    %2079 = vmatpush2.msra.mxu0 0.0
    %2080 = vmatprep.subr.mxu0 0.0
    %2081 = vmatpush2.msra.mxu0 0.0
    %2082 = vmatprep.subr.mxu0 0.0
    %2083 = vmatpush2.msra.mxu0 0.0
    %2084 = vmatprep.subr.mxu0 0.0
    %2085 = vmatpush2.msra.mxu0 0.0
    %2086 = vmatprep.subr.mxu0 0.0
    %2087 = vmatpush2.msra.mxu0 0.0
    %2088 = vmatprep.mubr.f32.mxu0 0.0
    %2089 = vmatmul.mubr.f32.gmra.mxu0 %v2022
    %v2090 = vpop.f32.mrf.mxu0
    %v2091 = vadd.f32 0.0, %v2090
    %v2092 = vpop.f32.mrf.mxu0
    %2093 = vdwg.mxu0
    %v2094 = vld [vmem:[%s45] sm:$0xff]
    %v2095 = vld [vmem:[%s45 + $0x8] sm:$0xff]
    %v2096 = vld [vmem:[%s45 + $0x10] sm:$0xff]
    %v2097 = vld [vmem:[%s45 + $0x18] sm:$0xff]
    %v2098 = vld [vmem:[%s47] sm:$0xff]
    %v2099 = vld [vmem:[%s47 + $0x8] sm:$0xff]
    %v2100 = vld [vmem:[%s47 + $0x10] sm:$0xff]
    %v2101 = vld [vmem:[%s47 + $0x18] sm:$0xff]
    %v2103 = vsel %vm269, %v2091, 0
    %2105 = vmatprep.subr.mxu0 0.0
    %2106 = vmatpush1.msra.mxu0 0.0
    %2107 = vmatprep.subr.mxu0 0.0
    %2108 = vmatpush1.msra.mxu0 0.0
    %2109 = vmatprep.subr.mxu0 0.0
    %2110 = vmatpush1.msra.mxu0 0.0
    %2111 = vmatprep.subr.mxu0 0.0
    %2112 = vmatpush1.msra.mxu0 0.0
    %2113 = vmatprep.subr.mxu0 0.0
    %2114 = vmatpush1.msra.mxu0 0.0
    %2115 = vmatprep.subr.mxu0 0.0
    %2116 = vmatpush1.msra.mxu0 0.0
    %2117 = vmatprep.subr.mxu0 0.0
    %2118 = vmatpush1.msra.mxu0 0.0
    %2119 = vmatprep.subr.mxu0 0.0
    %2120 = vmatpush1.msra.mxu0 0.0
    %2121 = vmatprep.subr.mxu0 0.0
    %2122 = vmatpush1.msra.mxu0 0.0
    %2123 = vmatprep.subr.mxu0 0.0
    %2124 = vmatpush1.msra.mxu0 0.0
    %2125 = vmatprep.subr.mxu0 0.0
    %2126 = vmatpush1.msra.mxu0 0.0
    %2127 = vmatprep.subr.mxu0 0.0
    %2128 = vmatpush1.msra.mxu0 0.0
    %2129 = vmatprep.subr.mxu0 0.0
    %2130 = vmatpush1.msra.mxu0 %v2101
    %2131 = vmatprep.subr.mxu0 0.0
    %2132 = vmatpush1.msra.mxu0 %v2100
    %2133 = vmatprep.subr.mxu0 0.0
    %2134 = vmatpush1.msra.mxu0 %v2099
    %2135 = vmatprep.subr.mxu0 0.0
    %2136 = vmatpush1.msra.mxu0 %v2098
    %2137 = vmatprep.subr.mxu0 0.0
    %2138 = vmatpush2.msra.mxu0 0.0
    %2139 = vmatprep.subr.mxu0 0.0
    %2140 = vmatpush2.msra.mxu0 0.0
    %2141 = vmatprep.subr.mxu0 0.0
    %2142 = vmatpush2.msra.mxu0 0.0
    %2143 = vmatprep.subr.mxu0 0.0
    %2144 = vmatpush2.msra.mxu0 0.0
    %2145 = vmatprep.subr.mxu0 0.0
    %2146 = vmatpush2.msra.mxu0 0.0
    %2147 = vmatprep.subr.mxu0 0.0
    %2148 = vmatpush2.msra.mxu0 0.0
    %2149 = vmatprep.subr.mxu0 0.0
    %2150 = vmatpush2.msra.mxu0 0.0
    %2151 = vmatprep.subr.mxu0 0.0
    %2152 = vmatpush2.msra.mxu0 0.0
    %2153 = vmatprep.subr.mxu0 0.0
    %2154 = vmatpush2.msra.mxu0 0.0
    %2155 = vmatprep.subr.mxu0 0.0
    %2156 = vmatpush2.msra.mxu0 0.0
    %2157 = vmatprep.subr.mxu0 0.0
    %2158 = vmatpush2.msra.mxu0 0.0
    %2159 = vmatprep.subr.mxu0 0.0
    %2160 = vmatpush2.msra.mxu0 0.0
    %2161 = vmatprep.subr.mxu0 0.0
    %2162 = vmatpush2.msra.mxu0 0.0
    %2163 = vmatprep.subr.mxu0 0.0
    %2164 = vmatpush2.msra.mxu0 0.0
    %2165 = vmatprep.subr.mxu0 0.0
    %2166 = vmatpush2.msra.mxu0 0.0
    %2167 = vmatprep.subr.mxu0 0.0
    %2168 = vmatpush2.msra.mxu0 0.0
    %2169 = vmatprep.mubr.f32.mxu0 0.0
    %2170 = vmatmul.mubr.f32.gmra.mxu0 %v2103
    %v2171 = vpop.f32.mrf.mxu0
    %v2172 = vadd.f32 0.0, %v2171
    %v2173 = vpop.f32.mrf.mxu0
    %2174 = vdwg.mxu0
    %v2176 = vsel %vm269, %v2017, 0
    %2178 = vmatprep.subr.mxu0 0.0
    %2179 = vmatpush1.msra.mxu0 0.0
    %2180 = vmatprep.subr.mxu0 0.0
    %2181 = vmatpush1.msra.mxu0 0.0
    %2182 = vmatprep.subr.mxu0 0.0
    %2183 = vmatpush1.msra.mxu0 0.0
    %2184 = vmatprep.subr.mxu0 0.0
    %2185 = vmatpush1.msra.mxu0 0.0
    %2186 = vmatprep.subr.mxu0 0.0
    %2187 = vmatpush1.msra.mxu0 0.0
    %2188 = vmatprep.subr.mxu0 0.0
    %2189 = vmatpush1.msra.mxu0 0.0
    %2190 = vmatprep.subr.mxu0 0.0
    %2191 = vmatpush1.msra.mxu0 0.0
    %2192 = vmatprep.subr.mxu0 0.0
    %2193 = vmatpush1.msra.mxu0 0.0
    %2194 = vmatprep.subr.mxu0 0.0
    %2195 = vmatpush1.msra.mxu0 0.0
    %2196 = vmatprep.subr.mxu0 0.0
    %2197 = vmatpush1.msra.mxu0 0.0
    %2198 = vmatprep.subr.mxu0 0.0
    %2199 = vmatpush1.msra.mxu0 0.0
    %2200 = vmatprep.subr.mxu0 0.0
    %2201 = vmatpush1.msra.mxu0 0.0
    %2202 = vmatprep.subr.mxu0 0.0
    %2203 = vmatpush1.msra.mxu0 %v2097
    %2204 = vmatprep.subr.mxu0 0.0
    %2205 = vmatpush1.msra.mxu0 %v2096
    %2206 = vmatprep.subr.mxu0 0.0
    %2207 = vmatpush1.msra.mxu0 %v2095
    %2208 = vmatprep.subr.mxu0 0.0
    %2209 = vmatpush1.msra.mxu0 %v2094
    %2210 = vmatprep.subr.mxu0 0.0
    %2211 = vmatpush2.msra.mxu0 0.0
    %2212 = vmatprep.subr.mxu0 0.0
    %2213 = vmatpush2.msra.mxu0 0.0
    %2214 = vmatprep.subr.mxu0 0.0
    %2215 = vmatpush2.msra.mxu0 0.0
    %2216 = vmatprep.subr.mxu0 0.0
    %2217 = vmatpush2.msra.mxu0 0.0
    %2218 = vmatprep.subr.mxu0 0.0
    %2219 = vmatpush2.msra.mxu0 0.0
    %2220 = vmatprep.subr.mxu0 0.0
    %2221 = vmatpush2.msra.mxu0 0.0
    %2222 = vmatprep.subr.mxu0 0.0
    %2223 = vmatpush2.msra.mxu0 0.0
    %2224 = vmatprep.subr.mxu0 0.0
    %2225 = vmatpush2.msra.mxu0 0.0
    %2226 = vmatprep.subr.mxu0 0.0
    %2227 = vmatpush2.msra.mxu0 0.0
    %2228 = vmatprep.subr.mxu0 0.0
    %2229 = vmatpush2.msra.mxu0 0.0
    %2230 = vmatprep.subr.mxu0 0.0
    %2231 = vmatpush2.msra.mxu0 0.0
    %2232 = vmatprep.subr.mxu0 0.0
    %2233 = vmatpush2.msra.mxu0 0.0
    %2234 = vmatprep.subr.mxu0 0.0
    %2235 = vmatpush2.msra.mxu0 0.0
    %2236 = vmatprep.subr.mxu0 0.0
    %2237 = vmatpush2.msra.mxu0 0.0
    %2238 = vmatprep.subr.mxu0 0.0
    %2239 = vmatpush2.msra.mxu0 0.0
    %2240 = vmatprep.subr.mxu0 0.0
    %2241 = vmatpush2.msra.mxu0 0.0
    %2242 = vmatprep.mubr.f32.mxu0 0.0
    %2243 = vmatmul.mubr.f32.gmra.mxu0 %v2176
    %v2244 = vpop.f32.mrf.mxu0
    %v2245 = vadd.f32 %v2172, %v2244
    %v2246 = vpop.f32.mrf.mxu0
    %2247 = vdwg.mxu0
    %v2248 = vld [vmem:[%s49] sm:$0x1]
    %v2250 = vlaneseq
    %v2251 = vshrl.u32 %v2250, 7
    %v2252 = vsub.s32 0, %v2251
    %v2253 = vrot.slane %v2248, %v2252
    %v2255 = vadd.f32 %v2245, %v2253
    %v2256 = vld [vmem:[%s51] sm:$0xff]
    %v2257 = vld [vmem:[%s51 + $0x8] sm:$0xff]
    %v2258 = vld [vmem:[%s51 + $0x10] sm:$0xff]
    %v2259 = vld [vmem:[%s51 + $0x18] sm:$0xff]
    %v2260 = vld [vmem:[%s53] sm:$0xff]
    %v2261 = vld [vmem:[%s53 + $0x8] sm:$0xff]
    %v2262 = vld [vmem:[%s53 + $0x10] sm:$0xff]
    %v2263 = vld [vmem:[%s53 + $0x18] sm:$0xff]
    %2264 = vmatprep.subr.mxu0 0.0
    %2265 = vmatpush1.msra.mxu0 0.0
    %2266 = vmatprep.subr.mxu0 0.0
    %2267 = vmatpush1.msra.mxu0 0.0
    %2268 = vmatprep.subr.mxu0 0.0
    %2269 = vmatpush1.msra.mxu0 0.0
    %2270 = vmatprep.subr.mxu0 0.0
    %2271 = vmatpush1.msra.mxu0 0.0
    %2272 = vmatprep.subr.mxu0 0.0
    %2273 = vmatpush1.msra.mxu0 0.0
    %2274 = vmatprep.subr.mxu0 0.0
    %2275 = vmatpush1.msra.mxu0 0.0
    %2276 = vmatprep.subr.mxu0 0.0
    %2277 = vmatpush1.msra.mxu0 0.0
    %2278 = vmatprep.subr.mxu0 0.0
    %2279 = vmatpush1.msra.mxu0 0.0
    %2280 = vmatprep.subr.mxu0 0.0
    %2281 = vmatpush1.msra.mxu0 0.0
    %2282 = vmatprep.subr.mxu0 0.0
    %2283 = vmatpush1.msra.mxu0 0.0
    %2284 = vmatprep.subr.mxu0 0.0
    %2285 = vmatpush1.msra.mxu0 0.0
    %2286 = vmatprep.subr.mxu0 0.0
    %2287 = vmatpush1.msra.mxu0 0.0
    %2288 = vmatprep.subr.mxu0 0.0
    %2289 = vmatpush1.msra.mxu0 %v2263
    %2290 = vmatprep.subr.mxu0 0.0
    %2291 = vmatpush1.msra.mxu0 %v2262
    %2292 = vmatprep.subr.mxu0 0.0
    %2293 = vmatpush1.msra.mxu0 %v2261
    %2294 = vmatprep.subr.mxu0 0.0
    %2295 = vmatpush1.msra.mxu0 %v2260
    %2296 = vmatprep.subr.mxu0 0.0
    %2297 = vmatpush2.msra.mxu0 0.0
    %2298 = vmatprep.subr.mxu0 0.0
    %2299 = vmatpush2.msra.mxu0 0.0
    %2300 = vmatprep.subr.mxu0 0.0
    %2301 = vmatpush2.msra.mxu0 0.0
    %2302 = vmatprep.subr.mxu0 0.0
    %2303 = vmatpush2.msra.mxu0 0.0
    %2304 = vmatprep.subr.mxu0 0.0
    %2305 = vmatpush2.msra.mxu0 0.0
    %2306 = vmatprep.subr.mxu0 0.0
    %2307 = vmatpush2.msra.mxu0 0.0
    %2308 = vmatprep.subr.mxu0 0.0
    %2309 = vmatpush2.msra.mxu0 0.0
    %2310 = vmatprep.subr.mxu0 0.0
    %2311 = vmatpush2.msra.mxu0 0.0
    %2312 = vmatprep.subr.mxu0 0.0
    %2313 = vmatpush2.msra.mxu0 0.0
    %2314 = vmatprep.subr.mxu0 0.0
    %2315 = vmatpush2.msra.mxu0 0.0
    %2316 = vmatprep.subr.mxu0 0.0
    %2317 = vmatpush2.msra.mxu0 0.0
    %2318 = vmatprep.subr.mxu0 0.0
    %2319 = vmatpush2.msra.mxu0 0.0
    %2320 = vmatprep.subr.mxu0 0.0
    %2321 = vmatpush2.msra.mxu0 0.0
    %2322 = vmatprep.subr.mxu0 0.0
    %2323 = vmatpush2.msra.mxu0 0.0
    %2324 = vmatprep.subr.mxu0 0.0
    %2325 = vmatpush2.msra.mxu0 0.0
    %2326 = vmatprep.subr.mxu0 0.0
    %2327 = vmatpush2.msra.mxu0 0.0
    %2328 = vmatprep.mubr.f32.mxu0 0.0
    %2329 = vmatmul.mubr.f32.gmra.mxu0 %v2103
    %v2330 = vpop.f32.mrf.mxu0
    %v2331 = vadd.f32 0.0, %v2330
    %v2332 = vpop.f32.mrf.mxu0
    %2333 = vdwg.mxu0
    %2334 = vmatprep.subr.mxu0 0.0
    %2335 = vmatpush1.msra.mxu0 0.0
    %2336 = vmatprep.subr.mxu0 0.0
    %2337 = vmatpush1.msra.mxu0 0.0
    %2338 = vmatprep.subr.mxu0 0.0
    %2339 = vmatpush1.msra.mxu0 0.0
    %2340 = vmatprep.subr.mxu0 0.0
    %2341 = vmatpush1.msra.mxu0 0.0
    %2342 = vmatprep.subr.mxu0 0.0
    %2343 = vmatpush1.msra.mxu0 0.0
    %2344 = vmatprep.subr.mxu0 0.0
    %2345 = vmatpush1.msra.mxu0 0.0
    %2346 = vmatprep.subr.mxu0 0.0
    %2347 = vmatpush1.msra.mxu0 0.0
    %2348 = vmatprep.subr.mxu0 0.0
    %2349 = vmatpush1.msra.mxu0 0.0
    %2350 = vmatprep.subr.mxu0 0.0
    %2351 = vmatpush1.msra.mxu0 0.0
    %2352 = vmatprep.subr.mxu0 0.0
    %2353 = vmatpush1.msra.mxu0 0.0
    %2354 = vmatprep.subr.mxu0 0.0
    %2355 = vmatpush1.msra.mxu0 0.0
    %2356 = vmatprep.subr.mxu0 0.0
    %2357 = vmatpush1.msra.mxu0 0.0
    %2358 = vmatprep.subr.mxu0 0.0
    %2359 = vmatpush1.msra.mxu0 %v2259
    %2360 = vmatprep.subr.mxu0 0.0
    %2361 = vmatpush1.msra.mxu0 %v2258
    %2362 = vmatprep.subr.mxu0 0.0
    %2363 = vmatpush1.msra.mxu0 %v2257
    %2364 = vmatprep.subr.mxu0 0.0
    %2365 = vmatpush1.msra.mxu0 %v2256
    %2366 = vmatprep.subr.mxu0 0.0
    %2367 = vmatpush2.msra.mxu0 0.0
    %2368 = vmatprep.subr.mxu0 0.0
    %2369 = vmatpush2.msra.mxu0 0.0
    %2370 = vmatprep.subr.mxu0 0.0
    %2371 = vmatpush2.msra.mxu0 0.0
    %2372 = vmatprep.subr.mxu0 0.0
    %2373 = vmatpush2.msra.mxu0 0.0
    %2374 = vmatprep.subr.mxu0 0.0
    %2375 = vmatpush2.msra.mxu0 0.0
    %2376 = vmatprep.subr.mxu0 0.0
    %2377 = vmatpush2.msra.mxu0 0.0
    %2378 = vmatprep.subr.mxu0 0.0
    %2379 = vmatpush2.msra.mxu0 0.0
    %2380 = vmatprep.subr.mxu0 0.0
    %2381 = vmatpush2.msra.mxu0 0.0
    %2382 = vmatprep.subr.mxu0 0.0
    %2383 = vmatpush2.msra.mxu0 0.0
    %2384 = vmatprep.subr.mxu0 0.0
    %2385 = vmatpush2.msra.mxu0 0.0
    %2386 = vmatprep.subr.mxu0 0.0
    %2387 = vmatpush2.msra.mxu0 0.0
    %2388 = vmatprep.subr.mxu0 0.0
    %2389 = vmatpush2.msra.mxu0 0.0
    %2390 = vmatprep.subr.mxu0 0.0
    %2391 = vmatpush2.msra.mxu0 0.0
    %2392 = vmatprep.subr.mxu0 0.0
    %2393 = vmatpush2.msra.mxu0 0.0
    %2394 = vmatprep.subr.mxu0 0.0
    %2395 = vmatpush2.msra.mxu0 0.0
    %2396 = vmatprep.subr.mxu0 0.0
    %2397 = vmatpush2.msra.mxu0 0.0
    %2398 = vmatprep.mubr.f32.mxu0 0.0
    %2399 = vmatmul.mubr.f32.gmra.mxu0 %v2176
    %v2400 = vpop.f32.mrf.mxu0
    %v2401 = vadd.f32 %v2331, %v2400
    %v2402 = vpop.f32.mrf.mxu0
    %2403 = vdwg.mxu0
    %v2404 = vld [vmem:[%s55] sm:$0x1]
    %v2406 = vlaneseq
    %v2407 = vshrl.u32 %v2406, 7
    %v2408 = vsub.s32 0, %v2407
    %v2409 = vrot.slane %v2404, %v2408
    %v2411 = vadd.f32 %v2401, %v2409
    %v2412 = vld [vmem:[#allocation7] sm:$0x3]
    %v2413 = vmul.f32 %v2411, 0.5
    %v2414 = vmul.f32 %v2413, 1.442695
    %v2415 = vpow.pop %v2414
    %v2416 = vmul.f32 %v2412, %v2415
    %v2417 = vadd.f32 %v2255, %v2416
    %v2418 = vld [vmem:[%s57] sm:$0xff]
    %v2419 = vld [vmem:[%s57 + $0x8] sm:$0xff]
    %v2420 = vld [vmem:[%s59] sm:$0x1]
    %v2422 = vlaneseq
    %v2423 = vshrl.u32 %v2422, 7
    %v2424 = vsub.s32 0, %v2423
    %v2425 = vrot.slane %v2420, %v2424
    %v2428 = vsel %vm617, %v2417, 0
    %2430 = vmatprep.subr.mxu0 0.0
    %2431 = vmatpush1.msra.mxu0 0.0
    %2432 = vmatprep.subr.mxu0 0.0
    %2433 = vmatpush1.msra.mxu0 0.0
    %2434 = vmatprep.subr.mxu0 0.0
    %2435 = vmatpush1.msra.mxu0 0.0
    %2436 = vmatprep.subr.mxu0 0.0
    %2437 = vmatpush1.msra.mxu0 0.0
    %2438 = vmatprep.subr.mxu0 0.0
    %2439 = vmatpush1.msra.mxu0 0.0
    %2440 = vmatprep.subr.mxu0 0.0
    %2441 = vmatpush1.msra.mxu0 0.0
    %2442 = vmatprep.subr.mxu0 0.0
    %2443 = vmatpush1.msra.mxu0 0.0
    %2444 = vmatprep.subr.mxu0 0.0
    %2445 = vmatpush1.msra.mxu0 0.0
    %2446 = vmatprep.subr.mxu0 0.0
    %2447 = vmatpush1.msra.mxu0 0.0
    %2448 = vmatprep.subr.mxu0 0.0
    %2449 = vmatpush1.msra.mxu0 0.0
    %2450 = vmatprep.subr.mxu0 0.0
    %2451 = vmatpush1.msra.mxu0 0.0
    %2452 = vmatprep.subr.mxu0 0.0
    %2453 = vmatpush1.msra.mxu0 0.0
    %2454 = vmatprep.subr.mxu0 0.0
    %2455 = vmatpush1.msra.mxu0 0.0
    %2456 = vmatprep.subr.mxu0 0.0
    %2457 = vmatpush1.msra.mxu0 0.0
    %2458 = vmatprep.subr.mxu0 0.0
    %2459 = vmatpush1.msra.mxu0 %v2419
    %2460 = vmatprep.subr.mxu0 0.0
    %2461 = vmatpush1.msra.mxu0 %v2418
    %2462 = vmatprep.subr.mxu0 0.0
    %2463 = vmatpush2.msra.mxu0 0.0
    %2464 = vmatprep.subr.mxu0 0.0
    %2465 = vmatpush2.msra.mxu0 0.0
    %2466 = vmatprep.subr.mxu0 0.0
    %2467 = vmatpush2.msra.mxu0 0.0
    %2468 = vmatprep.subr.mxu0 0.0
    %2469 = vmatpush2.msra.mxu0 0.0
    %2470 = vmatprep.subr.mxu0 0.0
    %2471 = vmatpush2.msra.mxu0 0.0
    %2472 = vmatprep.subr.mxu0 0.0
    %2473 = vmatpush2.msra.mxu0 0.0
    %2474 = vmatprep.subr.mxu0 0.0
    %2475 = vmatpush2.msra.mxu0 0.0
    %2476 = vmatprep.subr.mxu0 0.0
    %2477 = vmatpush2.msra.mxu0 0.0
    %2478 = vmatprep.subr.mxu0 0.0
    %2479 = vmatpush2.msra.mxu0 0.0
    %2480 = vmatprep.subr.mxu0 0.0
    %2481 = vmatpush2.msra.mxu0 0.0
    %2482 = vmatprep.subr.mxu0 0.0
    %2483 = vmatpush2.msra.mxu0 0.0
    %2484 = vmatprep.subr.mxu0 0.0
    %2485 = vmatpush2.msra.mxu0 0.0
    %2486 = vmatprep.subr.mxu0 0.0
    %2487 = vmatpush2.msra.mxu0 0.0
    %2488 = vmatprep.subr.mxu0 0.0
    %2489 = vmatpush2.msra.mxu0 0.0
    %2490 = vmatprep.subr.mxu0 0.0
    %2491 = vmatpush2.msra.mxu0 0.0
    %2492 = vmatprep.subr.mxu0 0.0
    %2493 = vmatpush2.msra.mxu0 0.0
    %2494 = vmatprep.mubr.f32.mxu0 0.0
    %2495 = vmatmul.mubr.f32.gmra.mxu0 %v2428
    %v2496 = vpop.f32.mrf.mxu0
    %v2497 = vadd.f32 %v2425, %v2496
    %v2498 = vpop.f32.mrf.mxu0
    %2499 = vdwg.mxu0
    %2501 = vrot.lane.b32.xlu0 %v2411, 16
    %v2502 = vpop.permute.xlu0 %2501
    %2504 = vrot.lane.b32.xlu0 %v2417, 32
    %v2505 = vpop.permute.xlu0 %2504
    %2508 = vrot.lane.b32.xlu0 %v2497, 48
    %v2509 = vpop.permute.xlu0 %2508
    %v2511 = vsel %vm617, %v2255, %v2502
    %v2512 = vsel %vm269, %v2511, %v2505
    %vm2513 = vcmask 392192
    %v2514 = vsel %vm2513, %v2512, %v2509
    %vm2515 = vcmask 654336
    %v2516 = vsel %vm2515, %v2514, 0.0
    %2517 = vst [vmem:[#allocation20] sm:$0x3] %v2516
    // Predicated region
    $region166: #{tpu_custom_call.1} parent=1 // pred_check
      _
    $region167: #{tpu_custom_call.1} parent=1 // pred_check_branch
      %2519 = sbr.rel (0) target = $region169
    $region168: #{tpu_custom_call.1} parent=1 // pred_region
      %s2521 = ssub.s32 32, 32
      %2522 = vsyncadd [#allocation4], %s2521
      %s2524 = sshll.u32 [#allocation20], 4
      %s2525 = int_to_ptr.vmem [resolvable:$true] %s2524
      %2527 = dma.vmem_to_hbm [thread:$0]  %s2525, 32, %s61, [#allocation4]
    $region169: #{tpu_custom_call.1} parent=1 // pred_fallthru
      _
    // Predicated region
    $region170: #{tpu_custom_call.1} parent=1 // pred_check
      _
    $region171: #{tpu_custom_call.1} parent=1 // pred_check_branch
      %2529 = sbr.rel (0) target = $region173
    $region172: #{tpu_custom_call.1} parent=1 // pred_region
      %2530 = dma.done [#allocation4], 32
    $region173: #{tpu_custom_call.1} parent=1 // pred_fallthru
      _
    %2531 = vsyncpa [#allocation3], 1
    %2532 = vsyncpa [#allocation6], 1
    %2533 = vsyncpa [#allocation9], 1
    %2534 = vsyncpa [#allocation12], 1
    %2535 = vsyncpa [#allocation15], 1
    %2536 = vsyncpa [#allocation18], 1
    %2537 = vsyncpa [#allocation4], 1

</llo_original>
